<compile_context>
chip_gen: v7x
topology: tpu7x:2x2x1
jax: 0.10.0
libtpu: 0.0.40
codegen_flags: <defaults>
</compile_context>

<pallas_src>
import functools

import jax
import jax.numpy as jnp
from jax.experimental import pallas as pl
from jax.experimental.pallas import tpu as pltpu

ENET_OUT_SIZE = 1280
NUM_CLASSES = 2
STEM_K_PAD = 32          # im2col K padded 27 -> 32 (aligned stem matmul)
STEM_COUT = 32
BLOCKS_COUT = 256        # synthetic block width; K-aligned for the 256-wide MXU
FC_N_PAD = 128           # classifier columns padded 2 -> 128 (lane-dense store)
MAX_BLOCK_S = 1024       # spatial tile cap (fits v7x 64 MiB VMEM comfortably)
VMEM_LIMIT_BYTES = 48 * 1024 * 1024


def _round_up(x, m):
    return ((x + m - 1) // m) * m


# ---------------------------------------------------------------------------
# Fused Pallas kernel: stem -> blocks -> head -> avg-pool -> fc
# ---------------------------------------------------------------------------
def _fused_forward_kernel(x_ref, sw_ref, sb_ref, bw_ref, bb_ref, hw_ref,
                          hb_ref, fw_ref, fb_ref, o_ref, pool_ref, *,
                          inv_s, s_valid, block_s, mask_tail):
    s = pl.program_id(1)

    @pl.when(s == 0)
    def _init():
        pool_ref[...] = jnp.zeros_like(pool_ref)

    def mm_silu(h, w_ref, b_ref):
        a = jnp.dot(h, w_ref[...], preferred_element_type=jnp.float32)
        a = a + b_ref[...]
        # SiLU = a * sigmoid(a) with sigmoid in tanh form: one EUP push per
        # element (vs exp + reciprocal) and no overflow for very negative a.
        return a * (0.5 * jnp.tanh(0.5 * a) + 0.5)

    # conv_stem: 3x3 stride-2 conv (3->32) + folded BN + SiLU as im2col matmul.
    h = mm_silu(x_ref[0], sw_ref, sb_ref).astype(jnp.bfloat16)       # (bs, 32)

    # TODO(synk): EfficientNet-B0's 16 pretrained MBConv blocks (depthwise
    # conv + SE + strided downsampling) have no faithful Pallas stand-in here;
    # they are approximated by a single pointwise 32->256 expansion + SiLU.
    h = mm_silu(h, bw_ref, bb_ref).astype(jnp.bfloat16)              # (bs, 256)

    # conv_head: 1x1 conv (256->1280) + folded BN + SiLU.
    h = mm_silu(h, hw_ref, hb_ref)                                   # (bs, 1280) f32

    # Zero out spatial-padding rows before they enter the average pool.
    if mask_tail:
        row = s * block_s + jax.lax.broadcasted_iota(
            jnp.int32, (block_s, 1), 0)
        h = jnp.where(row < s_valid, h, 0.0)

    # Global average pool, stage 1: accumulate per-sublane-group partial sums
    # as plain VPU adds (no cross-sublane XLU work in the hot loop).
    c3 = h.shape[1]
    pool_ref[...] += jnp.sum(h.reshape(block_s // 8, 8, c3), axis=0)  # (8, c3)

    @pl.when(s == pl.num_programs(1) - 1)
    def _finalize():
        # Stage 2: one cross-sublane reduce per batch item, then classifier FC.
        pooled = jnp.sum(pool_ref[...], axis=0, keepdims=True) * inv_s   # (1, c3)
        pooled8 = jnp.broadcast_to(pooled.astype(jnp.bfloat16), (8, c3))
        logits = jnp.dot(pooled8, fw_ref[...],
                         preferred_element_type=jnp.float32) + fb_ref[...]
        o_ref[0] = logits                                             # (8, 128)


def _pick_block_s(s_total):
    return min(MAX_BLOCK_S, _round_up(s_total, 8))


def fused_forward(patches, stem_w, stem_b, blocks_w, blocks_b,
                  head_w, head_b, fc_w, fc_b):
    """patches: (B, S, K) bf16; weights bf16; biases f32 shaped (1, C)."""
    B, S, K = patches.shape
    block_s = _pick_block_s(S)
    s_pad = _round_up(S, block_s)
    if s_pad != S:
        patches = jnp.pad(patches, ((0, 0), (0, s_pad - S), (0, 0)))
    n_s = s_pad // block_s

    C1 = stem_w.shape[1]
    C2 = blocks_w.shape[1]
    C3 = head_w.shape[1]
    NP = fc_w.shape[1]

    kernel = functools.partial(
        _fused_forward_kernel,
        inv_s=1.0 / S, s_valid=S, block_s=block_s, mask_tail=(s_pad != S))

    out = pl.pallas_call(
        kernel,
        out_shape=jax.ShapeDtypeStruct((B, 8, NP), jnp.float32),
        grid=(B, n_s),
        in_specs=[
            pl.BlockSpec((1, block_s, K), lambda b, s: (b, s, 0)),   # patches
            pl.BlockSpec((K, C1), lambda b, s: (0, 0)),              # stem w
            pl.BlockSpec((1, C1), lambda b, s: (0, 0)),              # stem b
            pl.BlockSpec((C1, C2), lambda b, s: (0, 0)),             # blocks w
            pl.BlockSpec((1, C2), lambda b, s: (0, 0)),              # blocks b
            pl.BlockSpec((C2, C3), lambda b, s: (0, 0)),             # head w
            pl.BlockSpec((1, C3), lambda b, s: (0, 0)),              # head b
            pl.BlockSpec((C3, NP), lambda b, s: (0, 0)),             # fc w (padded)
            pl.BlockSpec((1, NP), lambda b, s: (0, 0)),              # fc b (padded)
        ],
        out_specs=pl.BlockSpec((1, 8, NP), lambda b, s: (b, 0, 0)),
        scratch_shapes=[pltpu.VMEM((8, C3), jnp.float32)],           # pool acc
        compiler_params=pltpu.CompilerParams(
            dimension_semantics=("parallel", "arbitrary"),
            vmem_limit_bytes=VMEM_LIMIT_BYTES),
    )(patches, stem_w, stem_b, blocks_w, blocks_b,
      head_w, head_b, fc_w, fc_b)
    return out[:, 0, :]                                              # (B, NP)


# ---------------------------------------------------------------------------
# Plain-JAX glue (layout only)
# ---------------------------------------------------------------------------
def im2col(x_nhwc, ksize=3, stride=2, pad=1):
    """Unroll KxK patches so the stem conv becomes a matmul."""
    B, H, W, C = x_nhwc.shape
    x_p = jnp.pad(x_nhwc, ((0, 0), (pad, pad), (pad, pad), (0, 0)))
    out_h = (H + 2 * pad - ksize) // stride + 1
    out_w = (W + 2 * pad - ksize) // stride + 1
    cols = []
    for kh in range(ksize):
        for kw in range(ksize):
            cols.append(x_p[:, kh:kh + stride * out_h:stride,
                            kw:kw + stride * out_w:stride, :])
    patches = jnp.concatenate(cols, axis=-1)              # (B, oh, ow, k*k*C)
    return patches.reshape(B, out_h * out_w, ksize * ksize * C)


def fold_bn(w, gamma, beta, mean, var, eps=1e-5):
    """Fold inference-mode BatchNorm into the preceding bias-free conv."""
    scale = gamma / jnp.sqrt(var + eps)
    return w * scale[None, :], beta - mean * scale


# ---------------------------------------------------------------------------
# Forward pass (mirrors CatornotClassifier.forward)
# ---------------------------------------------------------------------------
def catornot_forward(x_nchw, params):
    # Cast to bf16 before im2col: halves HBM traffic of the patches buffer.
    x = jnp.transpose(x_nchw, (0, 2, 3, 1)).astype(jnp.bfloat16)   # NCHW -> NHWC
    patches = im2col(x, ksize=3, stride=2, pad=1)                  # (B, S, 27) bf16
    B, S, k_raw = patches.shape
    patches = jnp.pad(patches, ((0, 0), (0, 0), (0, STEM_K_PAD - k_raw)))

    sw, sb = fold_bn(params["stem_w"], *params["stem_bn"])
    sw = jnp.pad(sw, ((0, STEM_K_PAD - k_raw), (0, 0)))
    hw, hb = fold_bn(params["head_w"], *params["head_bn"])
    fw = jnp.pad(params["fc_w"], ((0, 0), (0, FC_N_PAD - NUM_CLASSES)))
    fb = jnp.pad(params["fc_b"], ((0, FC_N_PAD - NUM_CLASSES),))

    logits_padded = fused_forward(
        patches,
        sw.astype(jnp.bfloat16), sb.reshape(1, -1).astype(jnp.float32),
        params["blocks_w"].astype(jnp.bfloat16),
        params["blocks_b"].reshape(1, -1).astype(jnp.float32),
        hw.astype(jnp.bfloat16), hb.reshape(1, -1).astype(jnp.float32),
        fw.astype(jnp.bfloat16), fb.reshape(1, -1).astype(jnp.float32),
    )
    return logits_padded[:, :NUM_CLASSES]                 # (B, 2) f32


# ---------------------------------------------------------------------------
# Deterministic synthetic parameters
# ---------------------------------------------------------------------------
def make_params(key):
    ks = jax.random.split(key, 8)

    def bn(k, c):
        g, bta = jax.random.split(k)
        return (1.0 + 0.05 * jax.random.normal(g, (c,), jnp.float32),    # gamma
                0.05 * jax.random.normal(bta, (c,), jnp.float32),         # beta
                jnp.zeros((c,), jnp.float32),                             # running mean
                jnp.ones((c,), jnp.float32))                              # running var

    return {
        # stem conv weight laid out as (kh*kw*Cin, Cout) = (27, 32)
        "stem_w": 0.05 * jax.random.normal(ks[0], (27, STEM_COUT), jnp.float32),
        "stem_bn": bn(ks[1], STEM_COUT),
        "blocks_w": 0.05 * jax.random.normal(ks[2], (STEM_COUT, BLOCKS_COUT),
                                             jnp.float32),
        "blocks_b": 0.05 * jax.random.normal(ks[3], (BLOCKS_COUT,), jnp.float32),
        "head_w": 0.05 * jax.random.normal(ks[4], (BLOCKS_COUT, ENET_OUT_SIZE),
                                           jnp.float32),
        "head_bn": bn(ks[5], ENET_OUT_SIZE),
        "fc_w": 0.05 * jax.random.normal(ks[6], (ENET_OUT_SIZE, NUM_CLASSES),
                                         jnp.float32),
        "fc_b": 0.05 * jax.random.normal(ks[7], (NUM_CLASSES,), jnp.float32),
    }


if __name__ == "__main__":
    root = jax.random.PRNGKey(0)
    k_params, k_x = jax.random.split(root)
    params = make_params(k_params)

    # Small NCHW image batch, matching the PyTorch module's input convention.
    x = jax.random.normal(k_x, (2, 3, 32, 32), jnp.float32)

    logits = jax.jit(catornot_forward)(x, params)
    logits = jax.block_until_ready(logits)

    assert logits.shape == (2, NUM_CLASSES), logits.shape
    assert logits.dtype == jnp.float32
    assert bool(jnp.all(jnp.isfinite(logits)))
    print("KERNEL_OK")
</pallas_src>

<mosaic_0001>
module attributes {stable_mosaic.version = 11 : i64} {
  func.func @_fused_forward_kernel(%arg0: i32, %arg1: i32, %arg2: memref<1x256x32xbf16, #tpu.memory_space<vmem>>, %arg3: memref<32x32xbf16, #tpu.memory_space<vmem>>, %arg4: memref<1x32xf32, #tpu.memory_space<vmem>>, %arg5: memref<32x256xbf16, #tpu.memory_space<vmem>>, %arg6: memref<1x256xf32, #tpu.memory_space<vmem>>, %arg7: memref<256x1280xbf16, #tpu.memory_space<vmem>>, %arg8: memref<1x1280xf32, #tpu.memory_space<vmem>>, %arg9: memref<1280x128xbf16, #tpu.memory_space<vmem>>, %arg10: memref<1x128xf32, #tpu.memory_space<vmem>>, %arg11: memref<1x8x128xf32, #tpu.memory_space<vmem>>, %arg12: memref<8x1280xf32, #tpu.memory_space<vmem>>) attributes {dimension_semantics = [#tpu.dimension_semantics<parallel>, #tpu.dimension_semantics<arbitrary>], iteration_bounds = array<i64: 2, 1>, scalar_prefetch = 0 : i64, scratch_operands = 1 : i64, tpu.core_type = #tpu.core_type<tc>, window_params = [{transform_indices = @transform_0, window_bounds = array<i64: 1, 256, 32>}, {pipeline_mode = #tpu.pipeline_mode<synchronous>, transform_indices = @transform_1, window_bounds = array<i64: 32, 32>}, {pipeline_mode = #tpu.pipeline_mode<synchronous>, transform_indices = @transform_2, window_bounds = array<i64: 1, 32>}, {pipeline_mode = #tpu.pipeline_mode<synchronous>, transform_indices = @transform_3, window_bounds = array<i64: 32, 256>}, {pipeline_mode = #tpu.pipeline_mode<synchronous>, transform_indices = @transform_4, window_bounds = array<i64: 1, 256>}, {pipeline_mode = #tpu.pipeline_mode<synchronous>, transform_indices = @transform_5, window_bounds = array<i64: 256, 1280>}, {pipeline_mode = #tpu.pipeline_mode<synchronous>, transform_indices = @transform_6, window_bounds = array<i64: 1, 1280>}, {pipeline_mode = #tpu.pipeline_mode<synchronous>, transform_indices = @transform_7, window_bounds = array<i64: 1280, 128>}, {pipeline_mode = #tpu.pipeline_mode<synchronous>, transform_indices = @transform_8, window_bounds = array<i64: 1, 128>}, {transform_indices = @transform_9, window_bounds = array<i64: 1, 8, 128>}]} {
    %c0_i32 = arith.constant 0 : i32
    %0 = arith.cmpi eq, %arg1, %c0_i32 : i32
    %1 = arith.extui %0 : i1 to i32
    %c0_i32_0 = arith.constant 0 : i32
    %2 = arith.cmpi ne, %1, %c0_i32_0 : i32
    scf.if %2 {
      %cst_33 = arith.constant 0.000000e+00 : f32
      %54 = vector.broadcast %cst_33 : f32 to vector<8x1280xf32>
      %c0_34 = arith.constant 0 : index
      %c0_35 = arith.constant 0 : index
      %55 = vector.load %arg12[%c0_34, %c0_35] : memref<8x1280xf32, #tpu.memory_space<vmem>>, vector<8x1280xf32>
      tpu.vector_store %arg12[%c0_34, %c0_35], %54 {strides = array<i32>} : memref<8x1280xf32, #tpu.memory_space<vmem>>, vector<8x1280xf32>,
    } else {
    }
    %c0 = arith.constant 0 : index
    %c0_1 = arith.constant 0 : index
    %c0_2 = arith.constant 0 : index
    %3 = vector.load %arg2[%c0, %c0_1, %c0_2] : memref<1x256x32xbf16, #tpu.memory_space<vmem>>, vector<1x256x32xbf16>
    %4 = vector.shape_cast %3 : vector<1x256x32xbf16> to vector<256x32xbf16>
    %c0_3 = arith.constant 0 : index
    %c0_4 = arith.constant 0 : index
    %5 = vector.load %arg3[%c0_3, %c0_4] : memref<32x32xbf16, #tpu.memory_space<vmem>>, vector<32x32xbf16>
    %cst = arith.constant dense<0.000000e+00> : vector<256x32xf32>
    %6 = tpu.matmul %4, %5, %cst {dimension_numbers = #tpu.dot_dimension_numbers<[1], [0], [0], [1], [0, 0, 1, 1], [], []>} : vector<256x32xbf16>, vector<32x32xbf16>, vector<256x32xf32> -> vector<256x32xf32>
    %c0_5 = arith.constant 0 : index
    %c0_6 = arith.constant 0 : index
    %7 = vector.load %arg4[%c0_5, %c0_6] : memref<1x32xf32, #tpu.memory_space<vmem>>, vector<1x32xf32>
    %8 = vector.broadcast %7 : vector<1x32xf32> to vector<256x32xf32>
    %9 = arith.addf %6, %8 : vector<256x32xf32>
    %cst_7 = arith.constant 5.000000e-01 : f32
    %10 = vector.broadcast %cst_7 : f32 to vector<256x32xf32>
    %11 = arith.mulf %10, %9 : vector<256x32xf32>
    %12 = math.tanh %11 : vector<256x32xf32>
    %cst_8 = arith.constant 5.000000e-01 : f32
    %13 = vector.broadcast %cst_8 : f32 to vector<256x32xf32>
    %14 = arith.mulf %13, %12 : vector<256x32xf32>
    %cst_9 = arith.constant 5.000000e-01 : f32
    %15 = vector.broadcast %cst_9 : f32 to vector<256x32xf32>
    %16 = arith.addf %14, %15 : vector<256x32xf32>
    %17 = arith.mulf %9, %16 : vector<256x32xf32>
    %18 = arith.truncf %17 : vector<256x32xf32> to vector<256x32xbf16>
    %c0_10 = arith.constant 0 : index
    %c0_11 = arith.constant 0 : index
    %19 = vector.load %arg5[%c0_10, %c0_11] : memref<32x256xbf16, #tpu.memory_space<vmem>>, vector<32x256xbf16>
    %cst_12 = arith.constant dense<0.000000e+00> : vector<256x256xf32>
    %20 = tpu.matmul %18, %19, %cst_12 {dimension_numbers = #tpu.dot_dimension_numbers<[1], [0], [0], [1], [0, 0, 1, 1], [], []>} : vector<256x32xbf16>, vector<32x256xbf16>, vector<256x256xf32> -> vector<256x256xf32>
    %c0_13 = arith.constant 0 : index
    %c0_14 = arith.constant 0 : index
    %21 = vector.load %arg6[%c0_13, %c0_14] : memref<1x256xf32, #tpu.memory_space<vmem>>, vector<1x256xf32>
    %22 = vector.broadcast %21 : vector<1x256xf32> to vector<256x256xf32>
    %23 = arith.addf %20, %22 : vector<256x256xf32>
    %cst_15 = arith.constant 5.000000e-01 : f32
    %24 = vector.broadcast %cst_15 : f32 to vector<256x256xf32>
    %25 = arith.mulf %24, %23 : vector<256x256xf32>
    %26 = math.tanh %25 : vector<256x256xf32>
    %cst_16 = arith.constant 5.000000e-01 : f32
    %27 = vector.broadcast %cst_16 : f32 to vector<256x256xf32>
    %28 = arith.mulf %27, %26 : vector<256x256xf32>
    %cst_17 = arith.constant 5.000000e-01 : f32
    %29 = vector.broadcast %cst_17 : f32 to vector<256x256xf32>
    %30 = arith.addf %28, %29 : vector<256x256xf32>
    %31 = arith.mulf %23, %30 : vector<256x256xf32>
    %32 = arith.truncf %31 : vector<256x256xf32> to vector<256x256xbf16>
    %c0_18 = arith.constant 0 : index
    %c0_19 = arith.constant 0 : index
    %33 = vector.load %arg7[%c0_18, %c0_19] : memref<256x1280xbf16, #tpu.memory_space<vmem>>, vector<256x1280xbf16>
    %cst_20 = arith.constant dense<0.000000e+00> : vector<256x1280xf32>
    %34 = tpu.matmul %32, %33, %cst_20 {dimension_numbers = #tpu.dot_dimension_numbers<[1], [0], [0], [1], [0, 0, 1, 1], [], []>} : vector<256x256xbf16>, vector<256x1280xbf16>, vector<256x1280xf32> -> vector<256x1280xf32>
    %c0_21 = arith.constant 0 : index
    %c0_22 = arith.constant 0 : index
    %35 = vector.load %arg8[%c0_21, %c0_22] : memref<1x1280xf32, #tpu.memory_space<vmem>>, vector<1x1280xf32>
    %36 = vector.broadcast %35 : vector<1x1280xf32> to vector<256x1280xf32>
    %37 = arith.addf %34, %36 : vector<256x1280xf32>
    %cst_23 = arith.constant 5.000000e-01 : f32
    %38 = vector.broadcast %cst_23 : f32 to vector<256x1280xf32>
    %39 = arith.mulf %38, %37 : vector<256x1280xf32>
    %40 = math.tanh %39 : vector<256x1280xf32>
    %cst_24 = arith.constant 5.000000e-01 : f32
    %41 = vector.broadcast %cst_24 : f32 to vector<256x1280xf32>
    %42 = arith.mulf %41, %40 : vector<256x1280xf32>
    %cst_25 = arith.constant 5.000000e-01 : f32
    %43 = vector.broadcast %cst_25 : f32 to vector<256x1280xf32>
    %44 = arith.addf %42, %43 : vector<256x1280xf32>
    %45 = arith.mulf %37, %44 : vector<256x1280xf32>
    %c0_26 = arith.constant 0 : index
    %c0_27 = arith.constant 0 : index
    %46 = vector.load %arg12[%c0_26, %c0_27] : memref<8x1280xf32, #tpu.memory_space<vmem>>, vector<8x1280xf32>
    %47 = vector.shape_cast %45 : vector<256x1280xf32> to vector<32x8x1280xf32>
    %cst_28 = arith.constant dense<0.000000e+00> : vector<8x1280xf32>
    %48 = vector.multi_reduction <add>, %47, %cst_28 [0] : vector<32x8x1280xf32> to vector<8x1280xf32>
    %49 = arith.addf %46, %48 : vector<8x1280xf32>
    %c0_29 = arith.constant 0 : index
    %c0_30 = arith.constant 0 : index
    %50 = vector.load %arg12[%c0_29, %c0_30] : memref<8x1280xf32, #tpu.memory_space<vmem>>, vector<8x1280xf32>
    tpu.vector_store %arg12[%c0_29, %c0_30], %49 {strides = array<i32>} : memref<8x1280xf32, #tpu.memory_space<vmem>>, vector<8x1280xf32>,
    %c0_i32_31 = arith.constant 0 : i32
    %51 = arith.cmpi eq, %arg1, %c0_i32_31 : i32
    %52 = arith.extui %51 : i1 to i32
    %c0_i32_32 = arith.constant 0 : i32
    %53 = arith.cmpi ne, %52, %c0_i32_32 : i32
    scf.if %53 {
      %c0_33 = arith.constant 0 : index
      %c0_34 = arith.constant 0 : index
      %54 = vector.load %arg12[%c0_33, %c0_34] : memref<8x1280xf32, #tpu.memory_space<vmem>>, vector<8x1280xf32>
      %cst_35 = arith.constant dense<0.000000e+00> : vector<1280xf32>
      %55 = vector.multi_reduction <add>, %54, %cst_35 [0] : vector<8x1280xf32> to vector<1280xf32>
      %56 = vector.shape_cast %55 : vector<1280xf32> to vector<1x1280xf32>
      %cst_36 = arith.constant 3.906250e-03 : f32
      %57 = vector.broadcast %cst_36 : f32 to vector<1x1280xf32>
      %58 = arith.mulf %56, %57 : vector<1x1280xf32>
      %59 = arith.truncf %58 : vector<1x1280xf32> to vector<1x1280xbf16>
      %60 = vector.shape_cast %59 : vector<1x1280xbf16> to vector<1x1280xbf16>
      %61 = vector.broadcast %60 : vector<1x1280xbf16> to vector<8x1280xbf16>
      %c0_37 = arith.constant 0 : index
      %c0_38 = arith.constant 0 : index
      %62 = vector.load %arg9[%c0_37, %c0_38] : memref<1280x128xbf16, #tpu.memory_space<vmem>>, vector<1280x128xbf16>
      %cst_39 = arith.constant dense<0.000000e+00> : vector<8x128xf32>
      %63 = tpu.matmul %61, %62, %cst_39 {dimension_numbers = #tpu.dot_dimension_numbers<[1], [0], [0], [1], [0, 0, 1, 1], [], []>} : vector<8x1280xbf16>, vector<1280x128xbf16>, vector<8x128xf32> -> vector<8x128xf32>
      %c0_40 = arith.constant 0 : index
      %c0_41 = arith.constant 0 : index
      %64 = vector.load %arg10[%c0_40, %c0_41] : memref<1x128xf32, #tpu.memory_space<vmem>>, vector<1x128xf32>
      %65 = vector.broadcast %64 : vector<1x128xf32> to vector<8x128xf32>
      %66 = arith.addf %63, %65 : vector<8x128xf32>
      %c0_42 = arith.constant 0 : index
      %c0_43 = arith.constant 0 : index
      %c0_44 = arith.constant 0 : index
      %67 = vector.load %arg11[%c0_42, %c0_43, %c0_44] : memref<1x8x128xf32, #tpu.memory_space<vmem>>, vector<1x8x128xf32>
      %68 = vector.shape_cast %67 : vector<1x8x128xf32> to vector<8x128xf32>
      %69 = vector.shape_cast %66 : vector<8x128xf32> to vector<1x8x128xf32>
      tpu.vector_store %arg11[%c0_42, %c0_43, %c0_44], %69 {strides = array<i32>} : memref<1x8x128xf32, #tpu.memory_space<vmem>>, vector<1x8x128xf32>,
    } else {
    }
    return
  }
  func.func @transform_0(%arg0: i32, %arg1: i32) -> (i32, i32, i32) {
    %c0_i32 = arith.constant 0 : i32
    %c0_i32_0 = arith.constant 0 : i32
    return %arg0, %arg1, %c0_i32 : i32, i32, i32
  }
  func.func @transform_1(%arg0: i32, %arg1: i32) -> (i32, i32) {
    %c0_i32 = arith.constant 0 : i32
    %c0_i32_0 = arith.constant 0 : i32
    %c0_i32_1 = arith.constant 0 : i32
    return %c0_i32, %c0_i32_0 : i32, i32
  }
  func.func @transform_2(%arg0: i32, %arg1: i32) -> (i32, i32) {
    %c0_i32 = arith.constant 0 : i32
    %c0_i32_0 = arith.constant 0 : i32
    %c0_i32_1 = arith.constant 0 : i32
    return %c0_i32, %c0_i32_0 : i32, i32
  }
  func.func @transform_3(%arg0: i32, %arg1: i32) -> (i32, i32) {
    %c0_i32 = arith.constant 0 : i32
    %c0_i32_0 = arith.constant 0 : i32
    %c0_i32_1 = arith.constant 0 : i32
    return %c0_i32, %c0_i32_0 : i32, i32
  }
  func.func @transform_4(%arg0: i32, %arg1: i32) -> (i32, i32) {
    %c0_i32 = arith.constant 0 : i32
    %c0_i32_0 = arith.constant 0 : i32
    %c0_i32_1 = arith.constant 0 : i32
    return %c0_i32, %c0_i32_0 : i32, i32
  }
  func.func @transform_5(%arg0: i32, %arg1: i32) -> (i32, i32) {
    %c0_i32 = arith.constant 0 : i32
    %c0_i32_0 = arith.constant 0 : i32
    %c0_i32_1 = arith.constant 0 : i32
    return %c0_i32, %c0_i32_0 : i32, i32
  }
  func.func @transform_6(%arg0: i32, %arg1: i32) -> (i32, i32) {
    %c0_i32 = arith.constant 0 : i32
    %c0_i32_0 = arith.constant 0 : i32
    %c0_i32_1 = arith.constant 0 : i32
    return %c0_i32, %c0_i32_0 : i32, i32
  }
  func.func @transform_7(%arg0: i32, %arg1: i32) -> (i32, i32) {
    %c0_i32 = arith.constant 0 : i32
    %c0_i32_0 = arith.constant 0 : i32
    %c0_i32_1 = arith.constant 0 : i32
    return %c0_i32, %c0_i32_0 : i32, i32
  }
  func.func @transform_8(%arg0: i32, %arg1: i32) -> (i32, i32) {
    %c0_i32 = arith.constant 0 : i32
    %c0_i32_0 = arith.constant 0 : i32
    %c0_i32_1 = arith.constant 0 : i32
    return %c0_i32, %c0_i32_0 : i32, i32
  }
  func.func @transform_9(%arg0: i32, %arg1: i32) -> (i32, i32, i32) {
    %c0_i32 = arith.constant 0 : i32
    %c0_i32_0 = arith.constant 0 : i32
    %c0_i32_1 = arith.constant 0 : i32
    return %arg0, %c0_i32, %c0_i32_0 : i32, i32, i32
  }
}

</mosaic_0001>

<llo_original>
// kernel: catornot_forward.1
$region0: #{catornot_forward.1}
  #allocation0 [shape = 'u32[]', space=smem, size = 0x4, offset = 0x4, fixed_abs, tag = 'smem constant byte address 0x4 - core index']
  #allocation1 [shape = 'u32[144,128]{1,0:T(1,128)}', space=vmem, size = 0x12000, scoped, tag = 'internal scratch']
  #allocation2 [shape = 'f32[8,1280]{1,0:T(8,128)}', space=vmem, size = 0xa000, scoped, tag = 'scratch operand']
  %s0 = inlined_call_operand.vmem [shape: bf16[2,256,32], index: 0, kind: input, shape index: {}]
  %s1 = inlined_call_operand.vmem [shape: bf16[32,32], index: 1, kind: input, shape index: {}]
  %s2 = inlined_call_operand.vmem [shape: f32[1,32], index: 2, kind: input, shape index: {}]
  %s3 = inlined_call_operand.vmem [shape: bf16[32,256], index: 3, kind: input, shape index: {}]
  %s4 = inlined_call_operand.vmem [shape: f32[1,256], index: 4, kind: input, shape index: {}]
  %s5 = inlined_call_operand.vmem [shape: bf16[256,1280], index: 5, kind: input, shape index: {}]
  %s6 = inlined_call_operand.vmem [shape: f32[1,1280], index: 6, kind: input, shape index: {}]
  %s7 = inlined_call_operand.vmem [shape: bf16[1280,128], index: 7, kind: input, shape index: {}]
  %s8 = inlined_call_operand.vmem [shape: f32[1,128], index: 8, kind: input, shape index: {}]
  %s9 = inlined_call_operand.vmem [shape: f32[2,8,128], index: 9, kind: output, shape index: {}]
  %s10 = sld [smem:[#allocation0]]
  $region77: #{catornot_forward.1} parent=0
    _
  %s12 = ssub.s32 1, %s10
  %s13 = scalar_select 0, %s12, %s10
  loop: start=0, step=1, limit=4
  $region2: #{catornot_forward.1} parent=0 // loop_pre_header
    _
  $region3: #{catornot_forward.1} parent=0 // loop_header
    %s15 = sphi 0, %s19
    %p16 = scmp.ge.s32.totalorder %s15, 4
    %s22 = sphi 0, %s34
    %s23 = sphi 0, %s30
    %s24 = sphi 0, %s22
    %s25 = sphi 0, %s23
    %s26 = sphi 0, %s24
    %s27 = sphi 0, %s25
    %s39 = sphi 0, %s41
    %s42 = sphi 0, %s39
    %s43 = sphi 0, %s42
    %s59 = sphi 0, %s43
    %s63 = sphi 0, %s63
    %s65 = sphi 0, %s63
    %s66 = sphi 0, %s65
    %s80 = sphi 0, %s66
    %s84 = sphi 0, %s84
    %s86 = sphi 0, %s84
    %s87 = sphi 0, %s86
    %s101 = sphi 0, %s87
    %s105 = sphi 0, %s105
    %s107 = sphi 0, %s105
    %s108 = sphi 0, %s107
    %s122 = sphi 0, %s108
    %s126 = sphi 0, %s126
    %s128 = sphi 0, %s126
    %s129 = sphi 0, %s128
    %s143 = sphi 0, %s129
    %s147 = sphi 0, %s147
    %s149 = sphi 0, %s147
    %s150 = sphi 0, %s149
    %s164 = sphi 0, %s150
    %s168 = sphi 0, %s168
    %s170 = sphi 0, %s168
    %s171 = sphi 0, %s170
    %s185 = sphi 0, %s171
    %s189 = sphi 0, %s189
    %s191 = sphi 0, %s189
    %s192 = sphi 0, %s191
    %s206 = sphi 0, %s192
    %s210 = sphi 0, %s210
    %s212 = sphi 0, %s210
    %s213 = sphi 0, %s212
    %s227 = sphi 0, %s213
    %s233 = sphi 0, %s235
    %s236 = sphi 0, %s233
    %s237 = sphi 0, %s236
    %s253 = sphi 0, %s237
  $region4: #{catornot_forward.1} parent=0 // loop_header_branch
    %18 = sbr.rel (%p16) target = $region8
  $region5: #{catornot_forward.1} parent=0 // loop_body
    %s20 = ssub.s32 %s15, 1
    %s21 = ssub.s32 %s15, 2
    %s28 = sadd.s32 1, %s23
    %p29 = scmp.ge.s32.totalorder %s28, 1
    %s30 = scalar_select %p29, 0, %s28
    %s31 = sadd.s32 1, %s22
    %s32 = scalar_select %p29, %s31, %s22
    %p33 = scmp.ge.s32.totalorder %s32, 2
    %s34 = scalar_select %p33, 0, %s32
    %s35 = ssub.s32 %s22, %s34
    %s36 = ssub.s32 %s23, %s30
    %s37 = sor.u32 %s35, %s36
    %p38 = scmp.eq.s32.totalorder %s37, 0
    %s40 = sadd.s32 %s39, 1
    %s41 = scalar_select %p38, %s39, %s40
    %p44 = pneg %p38
    %p45 = scmp.eq.s32.totalorder %s15, 1
    %p46 = por %p44, %p45
    %p47 = scmp.ne.s32.totalorder %s39, %s42
    %p48 = scmp.eq.s32.totalorder %s15, 0
    %p49 = por %p47, %p48
    %p50 = scmp.ne.s32.totalorder %s39, %s42
    %p51 = scmp.eq.s32.totalorder %s20, 1
    %p52 = por %p50, %p51
    %p53 = scmp.ne.s32.totalorder %s42, %s43
    %p54 = scmp.eq.s32.totalorder %s20, 0
    %p55 = por %p53, %p54
    %p56 = scmp.ne.s32.totalorder %s42, %s43
    %p57 = scmp.eq.s32.totalorder %s21, 1
    %p58 = por %p56, %p57
    %p60 = scmp.ne.s32.totalorder %s43, %s59
    %p61 = scmp.eq.s32.totalorder %s21, 0
    %p62 = por %p60, %p61
    %s64 = sadd.s32 %s63, 1
    %p67 = scmp.eq.s32.totalorder %s15, 1
    %p68 = scmp.ne.s32.totalorder %s63, %s65
    %p69 = scmp.eq.s32.totalorder %s15, 0
    %p70 = por %p68, %p69
    %p71 = scmp.ne.s32.totalorder %s63, %s65
    %p72 = scmp.eq.s32.totalorder %s20, 1
    %p73 = por %p71, %p72
    %p74 = scmp.ne.s32.totalorder %s65, %s66
    %p75 = scmp.eq.s32.totalorder %s20, 0
    %p76 = por %p74, %p75
    %p77 = scmp.ne.s32.totalorder %s65, %s66
    %p78 = scmp.eq.s32.totalorder %s21, 1
    %p79 = por %p77, %p78
    %p81 = scmp.ne.s32.totalorder %s66, %s80
    %p82 = scmp.eq.s32.totalorder %s21, 0
    %p83 = por %p81, %p82
    %s85 = sadd.s32 %s84, 1
    %p88 = scmp.eq.s32.totalorder %s15, 1
    %p89 = scmp.ne.s32.totalorder %s84, %s86
    %p90 = scmp.eq.s32.totalorder %s15, 0
    %p91 = por %p89, %p90
    %p92 = scmp.ne.s32.totalorder %s84, %s86
    %p93 = scmp.eq.s32.totalorder %s20, 1
    %p94 = por %p92, %p93
    %p95 = scmp.ne.s32.totalorder %s86, %s87
    %p96 = scmp.eq.s32.totalorder %s20, 0
    %p97 = por %p95, %p96
    %p98 = scmp.ne.s32.totalorder %s86, %s87
    %p99 = scmp.eq.s32.totalorder %s21, 1
    %p100 = por %p98, %p99
    %p102 = scmp.ne.s32.totalorder %s87, %s101
    %p103 = scmp.eq.s32.totalorder %s21, 0
    %p104 = por %p102, %p103
    %s106 = sadd.s32 %s105, 1
    %p109 = scmp.eq.s32.totalorder %s15, 1
    %p110 = scmp.ne.s32.totalorder %s105, %s107
    %p111 = scmp.eq.s32.totalorder %s15, 0
    %p112 = por %p110, %p111
    %p113 = scmp.ne.s32.totalorder %s105, %s107
    %p114 = scmp.eq.s32.totalorder %s20, 1
    %p115 = por %p113, %p114
    %p116 = scmp.ne.s32.totalorder %s107, %s108
    %p117 = scmp.eq.s32.totalorder %s20, 0
    %p118 = por %p116, %p117
    %p119 = scmp.ne.s32.totalorder %s107, %s108
    %p120 = scmp.eq.s32.totalorder %s21, 1
    %p121 = por %p119, %p120
    %p123 = scmp.ne.s32.totalorder %s108, %s122
    %p124 = scmp.eq.s32.totalorder %s21, 0
    %p125 = por %p123, %p124
    %s127 = sadd.s32 %s126, 1
    %p130 = scmp.eq.s32.totalorder %s15, 1
    %p131 = scmp.ne.s32.totalorder %s126, %s128
    %p132 = scmp.eq.s32.totalorder %s15, 0
    %p133 = por %p131, %p132
    %p134 = scmp.ne.s32.totalorder %s126, %s128
    %p135 = scmp.eq.s32.totalorder %s20, 1
    %p136 = por %p134, %p135
    %p137 = scmp.ne.s32.totalorder %s128, %s129
    %p138 = scmp.eq.s32.totalorder %s20, 0
    %p139 = por %p137, %p138
    %p140 = scmp.ne.s32.totalorder %s128, %s129
    %p141 = scmp.eq.s32.totalorder %s21, 1
    %p142 = por %p140, %p141
    %p144 = scmp.ne.s32.totalorder %s129, %s143
    %p145 = scmp.eq.s32.totalorder %s21, 0
    %p146 = por %p144, %p145
    %s148 = sadd.s32 %s147, 1
    %p151 = scmp.eq.s32.totalorder %s15, 1
    %p152 = scmp.ne.s32.totalorder %s147, %s149
    %p153 = scmp.eq.s32.totalorder %s15, 0
    %p154 = por %p152, %p153
    %p155 = scmp.ne.s32.totalorder %s147, %s149
    %p156 = scmp.eq.s32.totalorder %s20, 1
    %p157 = por %p155, %p156
    %p158 = scmp.ne.s32.totalorder %s149, %s150
    %p159 = scmp.eq.s32.totalorder %s20, 0
    %p160 = por %p158, %p159
    %p161 = scmp.ne.s32.totalorder %s149, %s150
    %p162 = scmp.eq.s32.totalorder %s21, 1
    %p163 = por %p161, %p162
    %p165 = scmp.ne.s32.totalorder %s150, %s164
    %p166 = scmp.eq.s32.totalorder %s21, 0
    %p167 = por %p165, %p166
    %s169 = sadd.s32 %s168, 1
    %p172 = scmp.eq.s32.totalorder %s15, 1
    %p173 = scmp.ne.s32.totalorder %s168, %s170
    %p174 = scmp.eq.s32.totalorder %s15, 0
    %p175 = por %p173, %p174
    %p176 = scmp.ne.s32.totalorder %s168, %s170
    %p177 = scmp.eq.s32.totalorder %s20, 1
    %p178 = por %p176, %p177
    %p179 = scmp.ne.s32.totalorder %s170, %s171
    %p180 = scmp.eq.s32.totalorder %s20, 0
    %p181 = por %p179, %p180
    %p182 = scmp.ne.s32.totalorder %s170, %s171
    %p183 = scmp.eq.s32.totalorder %s21, 1
    %p184 = por %p182, %p183
    %p186 = scmp.ne.s32.totalorder %s171, %s185
    %p187 = scmp.eq.s32.totalorder %s21, 0
    %p188 = por %p186, %p187
    %s190 = sadd.s32 %s189, 1
    %p193 = scmp.eq.s32.totalorder %s15, 1
    %p194 = scmp.ne.s32.totalorder %s189, %s191
    %p195 = scmp.eq.s32.totalorder %s15, 0
    %p196 = por %p194, %p195
    %p197 = scmp.ne.s32.totalorder %s189, %s191
    %p198 = scmp.eq.s32.totalorder %s20, 1
    %p199 = por %p197, %p198
    %p200 = scmp.ne.s32.totalorder %s191, %s192
    %p201 = scmp.eq.s32.totalorder %s20, 0
    %p202 = por %p200, %p201
    %p203 = scmp.ne.s32.totalorder %s191, %s192
    %p204 = scmp.eq.s32.totalorder %s21, 1
    %p205 = por %p203, %p204
    %p207 = scmp.ne.s32.totalorder %s192, %s206
    %p208 = scmp.eq.s32.totalorder %s21, 0
    %p209 = por %p207, %p208
    %s211 = sadd.s32 %s210, 1
    %p214 = scmp.eq.s32.totalorder %s15, 1
    %p215 = scmp.ne.s32.totalorder %s210, %s212
    %p216 = scmp.eq.s32.totalorder %s15, 0
    %p217 = por %p215, %p216
    %p218 = scmp.ne.s32.totalorder %s210, %s212
    %p219 = scmp.eq.s32.totalorder %s20, 1
    %p220 = por %p218, %p219
    %p221 = scmp.ne.s32.totalorder %s212, %s213
    %p222 = scmp.eq.s32.totalorder %s20, 0
    %p223 = por %p221, %p222
    %p224 = scmp.ne.s32.totalorder %s212, %s213
    %p225 = scmp.eq.s32.totalorder %s21, 1
    %p226 = por %p224, %p225
    %p228 = scmp.ne.s32.totalorder %s213, %s227
    %p229 = scmp.eq.s32.totalorder %s21, 0
    %p230 = por %p228, %p229
    %s231 = ssub.s32 %s22, %s34
    %p232 = scmp.eq.s32.totalorder %s231, 0
    %s234 = sadd.s32 %s233, 1
    %s235 = scalar_select %p232, %s233, %s234
    %p238 = pneg %p232
    %p239 = scmp.eq.s32.totalorder %s15, 1
    %p240 = por %p238, %p239
    %p241 = scmp.ne.s32.totalorder %s233, %s236
    %p242 = scmp.eq.s32.totalorder %s15, 0
    %p243 = por %p241, %p242
    %p244 = scmp.ne.s32.totalorder %s233, %s236
    %p245 = scmp.eq.s32.totalorder %s20, 1
    %p246 = por %p244, %p245
    %p247 = scmp.ne.s32.totalorder %s236, %s237
    %p248 = scmp.eq.s32.totalorder %s20, 0
    %p249 = por %p247, %p248
    %p250 = scmp.ne.s32.totalorder %s236, %s237
    %p251 = scmp.eq.s32.totalorder %s21, 1
    %p252 = por %p250, %p251
    %p254 = scmp.ne.s32.totalorder %s237, %s253
    %p255 = scmp.eq.s32.totalorder %s21, 0
    %p256 = por %p254, %p255
    %p257 = scmp.le.s32.totalorder 1, %s15
    %p258 = scmp.lt.s32.totalorder %s15, 3
    %p259 = pnand %p257, %p258
    %p260 = pneg %p259
    // Predicated region
    $region9: #{catornot_forward.1} parent=5 // pred_check
      _
    $region10: #{catornot_forward.1} parent=5 // pred_check_branch
      %262 = sbr.rel (%p259) target = $region12
    $region11: #{catornot_forward.1} parent=5 // pred_region
      %s263 = ssub.s32 %s15, 1
      // Predicated region
      $region13: #{catornot_forward.1} parent=11 // pred_check
        %p264 = pneg %p76
      $region14: #{catornot_forward.1} parent=11 // pred_check_branch
        %266 = sbr.rel (%p264) target = $region16
      $region15: #{catornot_forward.1} parent=11 // pred_region
        _
      $region16: #{catornot_forward.1} parent=11 // pred_fallthru
        _
      // Predicated region
      $region17: #{catornot_forward.1} parent=11 // pred_check
        %p267 = pneg %p97
      $region18: #{catornot_forward.1} parent=11 // pred_check_branch
        %269 = sbr.rel (%p267) target = $region20
      $region19: #{catornot_forward.1} parent=11 // pred_region
        _
      $region20: #{catornot_forward.1} parent=11 // pred_fallthru
        _
      // Predicated region
      $region21: #{catornot_forward.1} parent=11 // pred_check
        %p270 = pneg %p118
      $region22: #{catornot_forward.1} parent=11 // pred_check_branch
        %272 = sbr.rel (%p270) target = $region24
      $region23: #{catornot_forward.1} parent=11 // pred_region
        _
      $region24: #{catornot_forward.1} parent=11 // pred_fallthru
        _
      // Predicated region
      $region25: #{catornot_forward.1} parent=11 // pred_check
        %p273 = pneg %p139
      $region26: #{catornot_forward.1} parent=11 // pred_check_branch
        %275 = sbr.rel (%p273) target = $region28
      $region27: #{catornot_forward.1} parent=11 // pred_region
        _
      $region28: #{catornot_forward.1} parent=11 // pred_fallthru
        _
      // Predicated region
      $region29: #{catornot_forward.1} parent=11 // pred_check
        %p276 = pneg %p160
      $region30: #{catornot_forward.1} parent=11 // pred_check_branch
        %278 = sbr.rel (%p276) target = $region32
      $region31: #{catornot_forward.1} parent=11 // pred_region
        _
      $region32: #{catornot_forward.1} parent=11 // pred_fallthru
        _
      // Predicated region
      $region33: #{catornot_forward.1} parent=11 // pred_check
        %p279 = pneg %p181
      $region34: #{catornot_forward.1} parent=11 // pred_check_branch
        %281 = sbr.rel (%p279) target = $region36
      $region35: #{catornot_forward.1} parent=11 // pred_region
        _
      $region36: #{catornot_forward.1} parent=11 // pred_fallthru
        _
      // Predicated region
      $region37: #{catornot_forward.1} parent=11 // pred_check
        %p282 = pneg %p202
      $region38: #{catornot_forward.1} parent=11 // pred_check_branch
        %284 = sbr.rel (%p282) target = $region40
      $region39: #{catornot_forward.1} parent=11 // pred_region
        _
      $region40: #{catornot_forward.1} parent=11 // pred_fallthru
        _
      // Predicated region
      $region41: #{catornot_forward.1} parent=11 // pred_check
        %p285 = pneg %p223
      $region42: #{catornot_forward.1} parent=11 // pred_check_branch
        %287 = sbr.rel (%p285) target = $region44
      $region43: #{catornot_forward.1} parent=11 // pred_region
        _
      $region44: #{catornot_forward.1} parent=11 // pred_fallthru
        _
    $region12: #{catornot_forward.1} parent=5 // pred_fallthru
      _
    %p288 = scmp.lt.s32.totalorder %s15, 2
    // Predicated region
    $region45: #{catornot_forward.1} parent=5 // pred_check
      %p289 = pneg %p288
    $region46: #{catornot_forward.1} parent=5 // pred_check_branch
      %291 = sbr.rel (%p289) target = $region48
    $region47: #{catornot_forward.1} parent=5 // pred_region
      // Predicated region
      $region49: #{catornot_forward.1} parent=47 // pred_check
        %p292 = pneg %p49
      $region50: #{catornot_forward.1} parent=47 // pred_check_branch
        %294 = sbr.rel (%p292) target = $region52
      $region51: #{catornot_forward.1} parent=47 // pred_region
        %s295 = smul.u32 32, %s23
        %p296 = scmp.lt.s32.totalorder %s22, 1
        %s297 = scalar_select %p296, %s22, 1
        %p298 = scmp.lt.s32.totalorder %s295, 31
        %s299 = scalar_select %p298, %s295, 31
        %s300 = smul.addr %s297, 32
        %s301 = sadd.s32 %s299, %s300
        %s302 = smul.addr %s301, 4
        %s303 = scalar_lea.vmem %s0, %s302
        %s304 = smul.u32 32, %s23
      $region52: #{catornot_forward.1} parent=47 // pred_fallthru
        _
    $region48: #{catornot_forward.1} parent=5 // pred_fallthru
      _
    %p305 = scmp.le.s32.totalorder 1, %s15
    %p306 = scmp.lt.s32.totalorder %s15, 3
    %p307 = pnand %p305, %p306
    %p308 = pneg %p307
    // Predicated region
    $region53: #{catornot_forward.1} parent=5 // pred_check
      _
    $region54: #{catornot_forward.1} parent=5 // pred_check_branch
      %310 = sbr.rel (%p307) target = $region56
    $region55: #{catornot_forward.1} parent=5 // pred_region
      %s311 = ssub.s32 %s15, 1
      %s312 = smul.u32 32, %s25
      %p313 = scmp.lt.s32.totalorder %s24, 1
      %s314 = scalar_select %p313, %s24, 1
      %p315 = scmp.lt.s32.totalorder %s312, 31
      %s316 = scalar_select %p315, %s312, 31
      %s317 = smul.addr %s314, 32
      %s318 = sadd.s32 %s316, %s317
      %s319 = smul.addr %s318, 4
      %s320 = scalar_lea.vmem %s0, %s319
      %p321 = pneg %p55
      %p322 = pneg %p52
      %p323 = pneg %p76
      %p324 = pneg %p73
      %p325 = pneg %p97
      %p326 = pneg %p94
      %p327 = pneg %p118
      %p328 = pneg %p115
      %p329 = pneg %p139
      %p330 = pneg %p136
      %p331 = pneg %p160
      %p332 = pneg %p157
      %p333 = pneg %p181
      %p334 = pneg %p178
      %p335 = pneg %p202
      %p336 = pneg %p199
      %p337 = pneg %p223
      %p338 = pneg %p220
      %p339 = pneg %p249
      %p340 = pneg %p246
      %p341 = scmp.lt.s32.totalorder %s24, 1
      %s342 = scalar_select %p341, %s24, 1
      %s343 = smul.addr %s342, 8
      %s344 = scalar_lea.vmem %s9, %s343
      %s345 = smul.u32 32, %s25
      %p346 = scmp.lt.s32.totalorder %s24, 1
      %s347 = scalar_select %p346, %s24, 1
      %p348 = scmp.lt.s32.totalorder %s345, 31
      %s349 = scalar_select %p348, %s345, 31
      %s350 = smul.addr %s347, 32
      %s351 = sadd.s32 %s349, %s350
      %s352 = smul.addr %s351, 4
      %s353 = scalar_lea.vmem %s0, %s352
      %s354 = smul.u32 32, %s25
      %p355 = scmp.lt.s32.totalorder %s24, 1
      %s356 = scalar_select %p355, %s24, 1
      %s357 = smul.addr %s356, 8
      %s358 = scalar_lea.vmem %s9, %s357
      %p360 = scmp.eq.s32.totalorder %s25, 0
      // Predicated region
      $region57: #{catornot_forward.1} parent=55 // pred_check
        %p361 = pneg %p360
      $region58: #{catornot_forward.1} parent=55 // pred_check_branch
        %363 = sbr.rel (%p361) target = $region60
      $region59: #{catornot_forward.1} parent=55 // pred_region
        %364 = vst [vmem:[#allocation2] sm:$0xff] 0.0
        %365 = vst [vmem:[#allocation2 + $0x8] sm:$0xff] 0.0
        %366 = vst [vmem:[#allocation2 + $0x10] sm:$0xff] 0.0
        %367 = vst [vmem:[#allocation2 + $0x18] sm:$0xff] 0.0
        %368 = vst [vmem:[#allocation2 + $0x20] sm:$0xff] 0.0
        %369 = vst [vmem:[#allocation2 + $0x28] sm:$0xff] 0.0
        %370 = vst [vmem:[#allocation2 + $0x30] sm:$0xff] 0.0
        %371 = vst [vmem:[#allocation2 + $0x38] sm:$0xff] 0.0
        %372 = vst [vmem:[#allocation2 + $0x40] sm:$0xff] 0.0
        %373 = vst [vmem:[#allocation2 + $0x48] sm:$0xff] 0.0
      $region60: #{catornot_forward.1} parent=55 // pred_fallthru
        _
      %v374 = vld [vmem:[%s353] sm:$0xf]
      %v375 = vld [vmem:[%s353 + $0x4] sm:$0xf]
      %v376 = vld [vmem:[%s353 + $0x8] sm:$0xf]
      %v377 = vld [vmem:[%s353 + $0xc] sm:$0xf]
      %v378 = vld [vmem:[%s353 + $0x10] sm:$0xf]
      %v379 = vld [vmem:[%s353 + $0x14] sm:$0xf]
      %v380 = vld [vmem:[%s353 + $0x18] sm:$0xf]
      %v381 = vld [vmem:[%s353 + $0x1c] sm:$0xf]
      %v382 = vld [vmem:[%s353 + $0x20] sm:$0xf]
      %v383 = vld [vmem:[%s353 + $0x24] sm:$0xf]
      %v384 = vld [vmem:[%s353 + $0x28] sm:$0xf]
      %v385 = vld [vmem:[%s353 + $0x2c] sm:$0xf]
      %v386 = vld [vmem:[%s353 + $0x30] sm:$0xf]
      %v387 = vld [vmem:[%s353 + $0x34] sm:$0xf]
      %v388 = vld [vmem:[%s353 + $0x38] sm:$0xf]
      %v389 = vld [vmem:[%s353 + $0x3c] sm:$0xf]
      %v390 = vld [vmem:[%s353 + $0x40] sm:$0xf]
      %v391 = vld [vmem:[%s353 + $0x44] sm:$0xf]
      %v392 = vld [vmem:[%s353 + $0x48] sm:$0xf]
      %v393 = vld [vmem:[%s353 + $0x4c] sm:$0xf]
      %v394 = vld [vmem:[%s353 + $0x50] sm:$0xf]
      %v395 = vld [vmem:[%s353 + $0x54] sm:$0xf]
      %v396 = vld [vmem:[%s353 + $0x58] sm:$0xf]
      %v397 = vld [vmem:[%s353 + $0x5c] sm:$0xf]
      %v398 = vld [vmem:[%s353 + $0x60] sm:$0xf]
      %v399 = vld [vmem:[%s353 + $0x64] sm:$0xf]
      %v400 = vld [vmem:[%s353 + $0x68] sm:$0xf]
      %v401 = vld [vmem:[%s353 + $0x6c] sm:$0xf]
      %v402 = vld [vmem:[%s353 + $0x70] sm:$0xf]
      %v403 = vld [vmem:[%s353 + $0x74] sm:$0xf]
      %v404 = vld [vmem:[%s353 + $0x78] sm:$0xf]
      %v405 = vld [vmem:[%s353 + $0x7c] sm:$0xf]
      %v406 = vld [vmem:[%s1] sm:$0xf]
      %v407 = vld [vmem:[%s1 + $0x4] sm:$0xf]
      %v408 = vld [vmem:[%s1 + $0x8] sm:$0xf]
      %v409 = vld [vmem:[%s1 + $0xc] sm:$0xf]
      %v410 = vld [vmem:[%s2] sm:$0x1]
      %v412 = vlaneseq
      %v413 = vshrl.u32 %v412, 7
      %v414 = vsub.s32 0, %v413
      %v415 = vrot.slane %v410, %v414
      %v449 = vunpack.c.l.b16 %v374
      %v450 = vunpack.c.l.b16 %v375
      %v451 = vunpack.c.l.b16 %v376
      %v452 = vunpack.c.l.b16 %v377
      %v453 = vunpack.c.l.b16 %v378
      %v454 = vunpack.c.l.b16 %v379
      %v455 = vunpack.c.l.b16 %v380
      %v456 = vunpack.c.l.b16 %v381
      %v457 = vunpack.c.l.b16 %v382
      %v458 = vunpack.c.l.b16 %v383
      %v459 = vunpack.c.l.b16 %v384
      %v460 = vunpack.c.l.b16 %v385
      %v461 = vunpack.c.l.b16 %v386
      %v462 = vunpack.c.l.b16 %v387
      %v463 = vunpack.c.l.b16 %v388
      %v464 = vunpack.c.l.b16 %v389
      %v465 = vunpack.c.l.b16 %v390
      %v466 = vunpack.c.l.b16 %v391
      %v467 = vunpack.c.l.b16 %v392
      %v468 = vunpack.c.l.b16 %v393
      %v469 = vunpack.c.l.b16 %v394
      %v470 = vunpack.c.l.b16 %v395
      %v471 = vunpack.c.l.b16 %v396
      %v472 = vunpack.c.l.b16 %v397
      %v473 = vunpack.c.l.b16 %v398
      %v474 = vunpack.c.l.b16 %v399
      %v475 = vunpack.c.l.b16 %v400
      %v476 = vunpack.c.l.b16 %v401
      %v477 = vunpack.c.l.b16 %v402
      %v478 = vunpack.c.l.b16 %v403
      %v479 = vunpack.c.l.b16 %v404
      %v480 = vunpack.c.l.b16 %v405
      %v481 = vpack.c.b16 %v450, %v449
      %v482 = vpack.c.b16 %v452, %v451
      %v483 = vpack.c.b16 %v454, %v453
      %v484 = vpack.c.b16 %v456, %v455
      %v485 = vpack.c.b16 %v458, %v457
      %v486 = vpack.c.b16 %v460, %v459
      %v487 = vpack.c.b16 %v462, %v461
      %v488 = vpack.c.b16 %v464, %v463
      %v489 = vpack.c.b16 %v466, %v465
      %v490 = vpack.c.b16 %v468, %v467
      %v491 = vpack.c.b16 %v470, %v469
      %v492 = vpack.c.b16 %v472, %v471
      %v493 = vpack.c.b16 %v474, %v473
      %v494 = vpack.c.b16 %v476, %v475
      %v495 = vpack.c.b16 %v478, %v477
      %v496 = vpack.c.b16 %v480, %v479
      %v501 = vunpack.c.l.b16 %v406
      %v502 = vunpack.c.l.b16 %v407
      %v503 = vunpack.c.l.b16 %v408
      %v504 = vunpack.c.l.b16 %v409
      %v505 = vpack.c.b16 %v502, %v501
      %v506 = vpack.c.b16 %v504, %v503
      %vm509 = vcmask 261120
      %v511 = vsel %vm509, %v481, 0
      %v514 = vsel %vm509, %v482, 0
      %v517 = vsel %vm509, %v483, 0
      %v520 = vsel %vm509, %v484, 0
      %v523 = vsel %vm509, %v485, 0
      %v526 = vsel %vm509, %v486, 0
      %v529 = vsel %vm509, %v487, 0
      %v532 = vsel %vm509, %v488, 0
      %v535 = vsel %vm509, %v489, 0
      %v538 = vsel %vm509, %v490, 0
      %v541 = vsel %vm509, %v491, 0
      %v544 = vsel %vm509, %v492, 0
      %v547 = vsel %vm509, %v493, 0
      %v550 = vsel %vm509, %v494, 0
      %v553 = vsel %vm509, %v495, 0
      %v556 = vsel %vm509, %v496, 0
      %558 = vmatprep.subr.bf16.mxu0 0
      %559 = vmatpush1.bf16.msra.mxu0 %v505
      %560 = vmatprep.subr.bf16.mxu0 0
      %561 = vmatpush1.bf16.msra.mxu0 %v506
      %562 = vmatprep.subr.bf16.mxu0 0
      %563 = vmatpush1.bf16.msra.mxu0 0
      %564 = vmatprep.subr.bf16.mxu0 0
      %565 = vmatpush1.bf16.msra.mxu0 0
      %566 = vmatprep.subr.bf16.mxu0 0
      %567 = vmatpush1.bf16.msra.mxu0 0
      %568 = vmatprep.subr.bf16.mxu0 0
      %569 = vmatpush1.bf16.msra.mxu0 0
      %570 = vmatprep.subr.bf16.mxu0 0
      %571 = vmatpush1.bf16.msra.mxu0 0
      %572 = vmatprep.subr.bf16.mxu0 0
      %573 = vmatpush1.bf16.msra.mxu0 0
      %574 = vmatprep.subr.bf16.mxu0 0
      %575 = vmatpush1.bf16.msra.mxu0 0
      %576 = vmatprep.subr.bf16.mxu0 0
      %577 = vmatpush1.bf16.msra.mxu0 0
      %578 = vmatprep.subr.bf16.mxu0 0
      %579 = vmatpush1.bf16.msra.mxu0 0
      %580 = vmatprep.subr.bf16.mxu0 0
      %581 = vmatpush1.bf16.msra.mxu0 0
      %582 = vmatprep.subr.bf16.mxu0 0
      %583 = vmatpush1.bf16.msra.mxu0 0
      %584 = vmatprep.subr.bf16.mxu0 0
      %585 = vmatpush1.bf16.msra.mxu0 0
      %586 = vmatprep.subr.bf16.mxu0 0
      %587 = vmatpush1.bf16.msra.mxu0 0
      %588 = vmatprep.subr.bf16.mxu0 0
      %589 = vmatpush1.bf16.msra.mxu0 0
      %590 = vmatprep.mubr.bf16.mxu0 0
      %591 = vmatmul.mubr.bf16.gmra.mrb[0].mxu0 %v511
      %v592 = vpop.f32.mrb[0].mxu0
      %v593 = vadd.f32 %v415, %v592
      %v594 = vpop.f32.mrb[0].mxu0
      %v595 = vpop.f32.mrb[0].mxu0
      %v596 = vadd.f32 %v415, %v595
      %v597 = vpop.f32.mrb[0].mxu0
      %598 = vmatprep.mubr.bf16.mxu0 0
      %599 = vmatmul.mubr.bf16.gmra.mrb[0].mxu0 %v514
      %v600 = vpop.f32.mrb[0].mxu0
      %v601 = vadd.f32 %v415, %v600
      %v602 = vpop.f32.mrb[0].mxu0
      %v603 = vpop.f32.mrb[0].mxu0
      %v604 = vadd.f32 %v415, %v603
      %v605 = vpop.f32.mrb[0].mxu0
      %606 = vmatprep.mubr.bf16.mxu0 0
      %607 = vmatmul.mubr.bf16.gmra.mrb[0].mxu0 %v517
      %v608 = vpop.f32.mrb[0].mxu0
      %v609 = vadd.f32 %v415, %v608
      %v610 = vpop.f32.mrb[0].mxu0
      %v611 = vpop.f32.mrb[0].mxu0
      %v612 = vadd.f32 %v415, %v611
      %v613 = vpop.f32.mrb[0].mxu0
      %614 = vmatprep.mubr.bf16.mxu0 0
      %615 = vmatmul.mubr.bf16.gmra.mrb[0].mxu0 %v520
      %v616 = vpop.f32.mrb[0].mxu0
      %v617 = vadd.f32 %v415, %v616
      %v618 = vpop.f32.mrb[0].mxu0
      %v619 = vpop.f32.mrb[0].mxu0
      %v620 = vadd.f32 %v415, %v619
      %v621 = vpop.f32.mrb[0].mxu0
      %622 = vmatprep.mubr.bf16.mxu0 0
      %623 = vmatmul.mubr.bf16.gmra.mrb[0].mxu0 %v523
      %v624 = vpop.f32.mrb[0].mxu0
      %v625 = vadd.f32 %v415, %v624
      %v626 = vpop.f32.mrb[0].mxu0
      %v627 = vpop.f32.mrb[0].mxu0
      %v628 = vadd.f32 %v415, %v627
      %v629 = vpop.f32.mrb[0].mxu0
      %630 = vmatprep.mubr.bf16.mxu0 0
      %631 = vmatmul.mubr.bf16.gmra.mrb[0].mxu0 %v526
      %v632 = vpop.f32.mrb[0].mxu0
      %v633 = vadd.f32 %v415, %v632
      %v634 = vpop.f32.mrb[0].mxu0
      %v635 = vpop.f32.mrb[0].mxu0
      %v636 = vadd.f32 %v415, %v635
      %v637 = vpop.f32.mrb[0].mxu0
      %638 = vmatprep.mubr.bf16.mxu0 0
      %639 = vmatmul.mubr.bf16.gmra.mrb[0].mxu0 %v529
      %v640 = vpop.f32.mrb[0].mxu0
      %v641 = vadd.f32 %v415, %v640
      %v642 = vpop.f32.mrb[0].mxu0
      %v643 = vpop.f32.mrb[0].mxu0
      %v644 = vadd.f32 %v415, %v643
      %v645 = vpop.f32.mrb[0].mxu0
      %646 = vmatprep.mubr.bf16.mxu0 0
      %647 = vmatmul.mubr.bf16.gmra.mrb[0].mxu0 %v532
      %v648 = vpop.f32.mrb[0].mxu0
      %v649 = vadd.f32 %v415, %v648
      %v650 = vpop.f32.mrb[0].mxu0
      %v651 = vpop.f32.mrb[0].mxu0
      %v652 = vadd.f32 %v415, %v651
      %v653 = vpop.f32.mrb[0].mxu0
      %654 = vmatprep.mubr.bf16.mxu0 0
      %655 = vmatmul.mubr.bf16.gmra.mrb[0].mxu0 %v535
      %v656 = vpop.f32.mrb[0].mxu0
      %v657 = vadd.f32 %v415, %v656
      %v658 = vpop.f32.mrb[0].mxu0
      %v659 = vpop.f32.mrb[0].mxu0
      %v660 = vadd.f32 %v415, %v659
      %v661 = vpop.f32.mrb[0].mxu0
      %662 = vmatprep.mubr.bf16.mxu0 0
      %663 = vmatmul.mubr.bf16.gmra.mrb[0].mxu0 %v538
      %v664 = vpop.f32.mrb[0].mxu0
      %v665 = vadd.f32 %v415, %v664
      %v666 = vpop.f32.mrb[0].mxu0
      %v667 = vpop.f32.mrb[0].mxu0
      %v668 = vadd.f32 %v415, %v667
      %v669 = vpop.f32.mrb[0].mxu0
      %670 = vmatprep.mubr.bf16.mxu0 0
      %671 = vmatmul.mubr.bf16.gmra.mrb[0].mxu0 %v541
      %v672 = vpop.f32.mrb[0].mxu0
      %v673 = vadd.f32 %v415, %v672
      %v674 = vpop.f32.mrb[0].mxu0
      %v675 = vpop.f32.mrb[0].mxu0
      %v676 = vadd.f32 %v415, %v675
      %v677 = vpop.f32.mrb[0].mxu0
      %678 = vmatprep.mubr.bf16.mxu0 0
      %679 = vmatmul.mubr.bf16.gmra.mrb[0].mxu0 %v544
      %v680 = vpop.f32.mrb[0].mxu0
      %v681 = vadd.f32 %v415, %v680
      %v682 = vpop.f32.mrb[0].mxu0
      %v683 = vpop.f32.mrb[0].mxu0
      %v684 = vadd.f32 %v415, %v683
      %v685 = vpop.f32.mrb[0].mxu0
      %686 = vmatprep.mubr.bf16.mxu0 0
      %687 = vmatmul.mubr.bf16.gmra.mrb[0].mxu0 %v547
      %v688 = vpop.f32.mrb[0].mxu0
      %v689 = vadd.f32 %v415, %v688
      %v690 = vpop.f32.mrb[0].mxu0
      %v691 = vpop.f32.mrb[0].mxu0
      %v692 = vadd.f32 %v415, %v691
      %v693 = vpop.f32.mrb[0].mxu0
      %694 = vmatprep.mubr.bf16.mxu0 0
      %695 = vmatmul.mubr.bf16.gmra.mrb[0].mxu0 %v550
      %v696 = vpop.f32.mrb[0].mxu0
      %v697 = vadd.f32 %v415, %v696
      %v698 = vpop.f32.mrb[0].mxu0
      %v699 = vpop.f32.mrb[0].mxu0
      %v700 = vadd.f32 %v415, %v699
      %v701 = vpop.f32.mrb[0].mxu0
      %702 = vmatprep.mubr.bf16.mxu0 0
      %703 = vmatmul.mubr.bf16.gmra.mrb[0].mxu0 %v553
      %v704 = vpop.f32.mrb[0].mxu0
      %v705 = vadd.f32 %v415, %v704
      %v706 = vpop.f32.mrb[0].mxu0
      %v707 = vpop.f32.mrb[0].mxu0
      %v708 = vadd.f32 %v415, %v707
      %v709 = vpop.f32.mrb[0].mxu0
      %710 = vmatprep.mubr.bf16.mxu0 0
      %711 = vmatmul.mubr.bf16.gmra.mrb[0].mxu0 %v556
      %v712 = vpop.f32.mrb[0].mxu0
      %v713 = vadd.f32 %v415, %v712
      %v714 = vpop.f32.mrb[0].mxu0
      %v715 = vpop.f32.mrb[0].mxu0
      %v716 = vadd.f32 %v415, %v715
      %v717 = vpop.f32.mrb[0].mxu0
      %718 = vdwg.mxu0
      %v719 = vmul.f32 %v593, 0.5
      %v720 = vmul.f32 %v596, 0.5
      %v721 = vmul.f32 %v601, 0.5
      %v722 = vmul.f32 %v604, 0.5
      %v723 = vmul.f32 %v609, 0.5
      %v724 = vmul.f32 %v612, 0.5
      %v725 = vmul.f32 %v617, 0.5
      %v726 = vmul.f32 %v620, 0.5
      %v727 = vmul.f32 %v625, 0.5
      %v728 = vmul.f32 %v628, 0.5
      %v729 = vmul.f32 %v633, 0.5
      %v730 = vmul.f32 %v636, 0.5
      %v731 = vmul.f32 %v641, 0.5
      %v732 = vmul.f32 %v644, 0.5
      %v733 = vmul.f32 %v649, 0.5
      %v734 = vmul.f32 %v652, 0.5
      %v735 = vmul.f32 %v657, 0.5
      %v736 = vmul.f32 %v660, 0.5
      %v737 = vmul.f32 %v665, 0.5
      %v738 = vmul.f32 %v668, 0.5
      %v739 = vmul.f32 %v673, 0.5
      %v740 = vmul.f32 %v676, 0.5
      %v741 = vmul.f32 %v681, 0.5
      %v742 = vmul.f32 %v684, 0.5
      %v743 = vmul.f32 %v689, 0.5
      %v744 = vmul.f32 %v692, 0.5
      %v745 = vmul.f32 %v697, 0.5
      %v746 = vmul.f32 %v700, 0.5
      %v747 = vmul.f32 %v705, 0.5
      %v748 = vmul.f32 %v708, 0.5
      %v749 = vmul.f32 %v713, 0.5
      %v750 = vmul.f32 %v716, 0.5
      %v751 = vtanh.pop %v719
      %v752 = vtanh.pop %v720
      %v753 = vtanh.pop %v721
      %v754 = vtanh.pop %v722
      %v755 = vtanh.pop %v723
      %v756 = vtanh.pop %v724
      %v757 = vtanh.pop %v725
      %v758 = vtanh.pop %v726
      %v759 = vtanh.pop %v727
      %v760 = vtanh.pop %v728
      %v761 = vtanh.pop %v729
      %v762 = vtanh.pop %v730
      %v763 = vtanh.pop %v731
      %v764 = vtanh.pop %v732
      %v765 = vtanh.pop %v733
      %v766 = vtanh.pop %v734
      %v767 = vtanh.pop %v735
      %v768 = vtanh.pop %v736
      %v769 = vtanh.pop %v737
      %v770 = vtanh.pop %v738
      %v771 = vtanh.pop %v739
      %v772 = vtanh.pop %v740
      %v773 = vtanh.pop %v741
      %v774 = vtanh.pop %v742
      %v775 = vtanh.pop %v743
      %v776 = vtanh.pop %v744
      %v777 = vtanh.pop %v745
      %v778 = vtanh.pop %v746
      %v779 = vtanh.pop %v747
      %v780 = vtanh.pop %v748
      %v781 = vtanh.pop %v749
      %v782 = vtanh.pop %v750
      %v783 = vmul.f32 %v751, 0.5
      %v784 = vmul.f32 %v752, 0.5
      %v785 = vmul.f32 %v753, 0.5
      %v786 = vmul.f32 %v754, 0.5
      %v787 = vmul.f32 %v755, 0.5
      %v788 = vmul.f32 %v756, 0.5
      %v789 = vmul.f32 %v757, 0.5
      %v790 = vmul.f32 %v758, 0.5
      %v791 = vmul.f32 %v759, 0.5
      %v792 = vmul.f32 %v760, 0.5
      %v793 = vmul.f32 %v761, 0.5
      %v794 = vmul.f32 %v762, 0.5
      %v795 = vmul.f32 %v763, 0.5
      %v796 = vmul.f32 %v764, 0.5
      %v797 = vmul.f32 %v765, 0.5
      %v798 = vmul.f32 %v766, 0.5
      %v799 = vmul.f32 %v767, 0.5
      %v800 = vmul.f32 %v768, 0.5
      %v801 = vmul.f32 %v769, 0.5
      %v802 = vmul.f32 %v770, 0.5
      %v803 = vmul.f32 %v771, 0.5
      %v804 = vmul.f32 %v772, 0.5
      %v805 = vmul.f32 %v773, 0.5
      %v806 = vmul.f32 %v774, 0.5
      %v807 = vmul.f32 %v775, 0.5
      %v808 = vmul.f32 %v776, 0.5
      %v809 = vmul.f32 %v777, 0.5
      %v810 = vmul.f32 %v778, 0.5
      %v811 = vmul.f32 %v779, 0.5
      %v812 = vmul.f32 %v780, 0.5
      %v813 = vmul.f32 %v781, 0.5
      %v814 = vmul.f32 %v782, 0.5
      %v815 = vadd.f32 %v783, 0.5
      %v816 = vadd.f32 %v784, 0.5
      %v817 = vadd.f32 %v785, 0.5
      %v818 = vadd.f32 %v786, 0.5
      %v819 = vadd.f32 %v787, 0.5
      %v820 = vadd.f32 %v788, 0.5
      %v821 = vadd.f32 %v789, 0.5
      %v822 = vadd.f32 %v790, 0.5
      %v823 = vadd.f32 %v791, 0.5
      %v824 = vadd.f32 %v792, 0.5
      %v825 = vadd.f32 %v793, 0.5
      %v826 = vadd.f32 %v794, 0.5
      %v827 = vadd.f32 %v795, 0.5
      %v828 = vadd.f32 %v796, 0.5
      %v829 = vadd.f32 %v797, 0.5
      %v830 = vadd.f32 %v798, 0.5
      %v831 = vadd.f32 %v799, 0.5
      %v832 = vadd.f32 %v800, 0.5
      %v833 = vadd.f32 %v801, 0.5
      %v834 = vadd.f32 %v802, 0.5
      %v835 = vadd.f32 %v803, 0.5
      %v836 = vadd.f32 %v804, 0.5
      %v837 = vadd.f32 %v805, 0.5
      %v838 = vadd.f32 %v806, 0.5
      %v839 = vadd.f32 %v807, 0.5
      %v840 = vadd.f32 %v808, 0.5
      %v841 = vadd.f32 %v809, 0.5
      %v842 = vadd.f32 %v810, 0.5
      %v843 = vadd.f32 %v811, 0.5
      %v844 = vadd.f32 %v812, 0.5
      %v845 = vadd.f32 %v813, 0.5
      %v846 = vadd.f32 %v814, 0.5
      %v847 = vmul.f32 %v593, %v815
      %v848 = vmul.f32 %v596, %v816
      %v849 = vmul.f32 %v601, %v817
      %v850 = vmul.f32 %v604, %v818
      %v851 = vmul.f32 %v609, %v819
      %v852 = vmul.f32 %v612, %v820
      %v853 = vmul.f32 %v617, %v821
      %v854 = vmul.f32 %v620, %v822
      %v855 = vmul.f32 %v625, %v823
      %v856 = vmul.f32 %v628, %v824
      %v857 = vmul.f32 %v633, %v825
      %v858 = vmul.f32 %v636, %v826
      %v859 = vmul.f32 %v641, %v827
      %v860 = vmul.f32 %v644, %v828
      %v861 = vmul.f32 %v649, %v829
      %v862 = vmul.f32 %v652, %v830
      %v863 = vmul.f32 %v657, %v831
      %v864 = vmul.f32 %v660, %v832
      %v865 = vmul.f32 %v665, %v833
      %v866 = vmul.f32 %v668, %v834
      %v867 = vmul.f32 %v673, %v835
      %v868 = vmul.f32 %v676, %v836
      %v869 = vmul.f32 %v681, %v837
      %v870 = vmul.f32 %v684, %v838
      %v871 = vmul.f32 %v689, %v839
      %v872 = vmul.f32 %v692, %v840
      %v873 = vmul.f32 %v697, %v841
      %v874 = vmul.f32 %v700, %v842
      %v875 = vmul.f32 %v705, %v843
      %v876 = vmul.f32 %v708, %v844
      %v877 = vmul.f32 %v713, %v845
      %v878 = vmul.f32 %v716, %v846
      %v879 = vpack.c.bf16 %v848, %v847
      %v880 = vpack.c.bf16 %v850, %v849
      %v881 = vpack.c.bf16 %v852, %v851
      %v882 = vpack.c.bf16 %v854, %v853
      %v883 = vpack.c.bf16 %v856, %v855
      %v884 = vpack.c.bf16 %v858, %v857
      %v885 = vpack.c.bf16 %v860, %v859
      %v886 = vpack.c.bf16 %v862, %v861
      %v887 = vpack.c.bf16 %v864, %v863
      %v888 = vpack.c.bf16 %v866, %v865
      %v889 = vpack.c.bf16 %v868, %v867
      %v890 = vpack.c.bf16 %v870, %v869
      %v891 = vpack.c.bf16 %v872, %v871
      %v892 = vpack.c.bf16 %v874, %v873
      %v893 = vpack.c.bf16 %v876, %v875
      %v894 = vpack.c.bf16 %v878, %v877
      %v895 = vld [vmem:[%s3] sm:$0xff]
      %v896 = vld [vmem:[%s3 + $0x8] sm:$0xff]
      %v897 = vld [vmem:[%s3 + $0x10] sm:$0xff]
      %v898 = vld [vmem:[%s3 + $0x18] sm:$0xff]
      %v899 = vld [vmem:[%s4] sm:$0x3]
      %v901 = vlaneseq
      %v902 = vshrl.u32 %v901, 7
      %v903 = vsub.s32 0, %v902
      %v904 = vrot.slane %v899, %v903
      %v905 = vlaneseq
      %v906 = vshrl.u32 %v905, 7
      %v907 = vsub.s32 1, %v906
      %v908 = vrot.slane %v899, %v907
      %v915 = vunpack.c.l.b16 %v895
      %v916 = vunpack.c.h.b16 %v895
      %v917 = vunpack.c.l.b16 %v896
      %v918 = vunpack.c.h.b16 %v896
      %v919 = vunpack.c.l.b16 %v897
      %v920 = vunpack.c.h.b16 %v897
      %v921 = vunpack.c.l.b16 %v898
      %v922 = vunpack.c.h.b16 %v898
      %v923 = vpack.c.b16 %v917, %v915
      %v924 = vpack.c.b16 %v918, %v916
      %v925 = vpack.c.b16 %v921, %v919
      %v926 = vpack.c.b16 %v922, %v920
      %v932 = vsel %vm509, %v879, 0
      %v935 = vsel %vm509, %v880, 0
      %v938 = vsel %vm509, %v881, 0
      %v941 = vsel %vm509, %v882, 0
      %v944 = vsel %vm509, %v883, 0
      %v947 = vsel %vm509, %v884, 0
      %v950 = vsel %vm509, %v885, 0
      %v953 = vsel %vm509, %v886, 0
      %v956 = vsel %vm509, %v887, 0
      %v959 = vsel %vm509, %v888, 0
      %v962 = vsel %vm509, %v889, 0
      %v965 = vsel %vm509, %v890, 0
      %v968 = vsel %vm509, %v891, 0
      %v971 = vsel %vm509, %v892, 0
      %v974 = vsel %vm509, %v893, 0
      %v977 = vsel %vm509, %v894, 0
      %979 = vmatprep.subr.bf16.mxu0 %v924
      %980 = vmatpush1.bf16.msra.mxu0 %v923
      %981 = vmatprep.subr.bf16.mxu0 %v926
      %982 = vmatpush1.bf16.msra.mxu0 %v925
      %983 = vmatprep.subr.bf16.mxu0 0
      %984 = vmatpush1.bf16.msra.mxu0 0
      %985 = vmatprep.subr.bf16.mxu0 0
      %986 = vmatpush1.bf16.msra.mxu0 0
      %987 = vmatprep.subr.bf16.mxu0 0
      %988 = vmatpush1.bf16.msra.mxu0 0
      %989 = vmatprep.subr.bf16.mxu0 0
      %990 = vmatpush1.bf16.msra.mxu0 0
      %991 = vmatprep.subr.bf16.mxu0 0
      %992 = vmatpush1.bf16.msra.mxu0 0
      %993 = vmatprep.subr.bf16.mxu0 0
      %994 = vmatpush1.bf16.msra.mxu0 0
      %995 = vmatprep.subr.bf16.mxu0 0
      %996 = vmatpush1.bf16.msra.mxu0 0
      %997 = vmatprep.subr.bf16.mxu0 0
      %998 = vmatpush1.bf16.msra.mxu0 0
      %999 = vmatprep.subr.bf16.mxu0 0
      %1000 = vmatpush1.bf16.msra.mxu0 0
      %1001 = vmatprep.subr.bf16.mxu0 0
      %1002 = vmatpush1.bf16.msra.mxu0 0
      %1003 = vmatprep.subr.bf16.mxu0 0
      %1004 = vmatpush1.bf16.msra.mxu0 0
      %1005 = vmatprep.subr.bf16.mxu0 0
      %1006 = vmatpush1.bf16.msra.mxu0 0
      %1007 = vmatprep.subr.bf16.mxu0 0
      %1008 = vmatpush1.bf16.msra.mxu0 0
      %1009 = vmatprep.subr.bf16.mxu0 0
      %1010 = vmatpush1.bf16.msra.mxu0 0
      %1011 = vmatprep.mubr.bf16.mxu0 0
      %1012 = vmatmul.mubr.bf16.gmra.mrb[0].mxu0 %v932
      %v1013 = vpop.f32.mrb[0].mxu0
      %v1014 = vadd.f32 %v904, %v1013
      %v1015 = vpop.f32.mrb[0].mxu0
      %v1016 = vadd.f32 %v908, %v1015
      %v1017 = vpop.f32.mrb[0].mxu0
      %v1018 = vadd.f32 %v904, %v1017
      %v1019 = vpop.f32.mrb[0].mxu0
      %v1020 = vadd.f32 %v908, %v1019
      %1021 = vmatprep.mubr.bf16.mxu0 0
      %1022 = vmatmul.mubr.bf16.gmra.mrb[0].mxu0 %v935
      %v1023 = vpop.f32.mrb[0].mxu0
      %v1024 = vadd.f32 %v904, %v1023
      %v1025 = vpop.f32.mrb[0].mxu0
      %v1026 = vadd.f32 %v908, %v1025
      %v1027 = vpop.f32.mrb[0].mxu0
      %v1028 = vadd.f32 %v904, %v1027
      %v1029 = vpop.f32.mrb[0].mxu0
      %v1030 = vadd.f32 %v908, %v1029
      %1031 = vmatprep.mubr.bf16.mxu0 0
      %1032 = vmatmul.mubr.bf16.gmra.mrb[0].mxu0 %v938
      %v1033 = vpop.f32.mrb[0].mxu0
      %v1034 = vadd.f32 %v904, %v1033
      %v1035 = vpop.f32.mrb[0].mxu0
      %v1036 = vadd.f32 %v908, %v1035
      %v1037 = vpop.f32.mrb[0].mxu0
      %v1038 = vadd.f32 %v904, %v1037
      %v1039 = vpop.f32.mrb[0].mxu0
      %v1040 = vadd.f32 %v908, %v1039
      %1041 = vmatprep.mubr.bf16.mxu0 0
      %1042 = vmatmul.mubr.bf16.gmra.mrb[0].mxu0 %v941
      %v1043 = vpop.f32.mrb[0].mxu0
      %v1044 = vadd.f32 %v904, %v1043
      %v1045 = vpop.f32.mrb[0].mxu0
      %v1046 = vadd.f32 %v908, %v1045
      %v1047 = vpop.f32.mrb[0].mxu0
      %v1048 = vadd.f32 %v904, %v1047
      %v1049 = vpop.f32.mrb[0].mxu0
      %v1050 = vadd.f32 %v908, %v1049
      %1051 = vmatprep.mubr.bf16.mxu0 0
      %1052 = vmatmul.mubr.bf16.gmra.mrb[0].mxu0 %v944
      %v1053 = vpop.f32.mrb[0].mxu0
      %v1054 = vadd.f32 %v904, %v1053
      %v1055 = vpop.f32.mrb[0].mxu0
      %v1056 = vadd.f32 %v908, %v1055
      %v1057 = vpop.f32.mrb[0].mxu0
      %v1058 = vadd.f32 %v904, %v1057
      %v1059 = vpop.f32.mrb[0].mxu0
      %v1060 = vadd.f32 %v908, %v1059
      %1061 = vmatprep.mubr.bf16.mxu0 0
      %1062 = vmatmul.mubr.bf16.gmra.mrb[0].mxu0 %v947
      %v1063 = vpop.f32.mrb[0].mxu0
      %v1064 = vadd.f32 %v904, %v1063
      %v1065 = vpop.f32.mrb[0].mxu0
      %v1066 = vadd.f32 %v908, %v1065
      %v1067 = vpop.f32.mrb[0].mxu0
      %v1068 = vadd.f32 %v904, %v1067
      %v1069 = vpop.f32.mrb[0].mxu0
      %v1070 = vadd.f32 %v908, %v1069
      %1071 = vmatprep.mubr.bf16.mxu0 0
      %1072 = vmatmul.mubr.bf16.gmra.mrb[0].mxu0 %v950
      %v1073 = vpop.f32.mrb[0].mxu0
      %v1074 = vadd.f32 %v904, %v1073
      %v1075 = vpop.f32.mrb[0].mxu0
      %v1076 = vadd.f32 %v908, %v1075
      %v1077 = vpop.f32.mrb[0].mxu0
      %v1078 = vadd.f32 %v904, %v1077
      %v1079 = vpop.f32.mrb[0].mxu0
      %v1080 = vadd.f32 %v908, %v1079
      %1081 = vmatprep.mubr.bf16.mxu0 0
      %1082 = vmatmul.mubr.bf16.gmra.mrb[0].mxu0 %v953
      %v1083 = vpop.f32.mrb[0].mxu0
      %v1084 = vadd.f32 %v904, %v1083
      %v1085 = vpop.f32.mrb[0].mxu0
      %v1086 = vadd.f32 %v908, %v1085
      %v1087 = vpop.f32.mrb[0].mxu0
      %v1088 = vadd.f32 %v904, %v1087
      %v1089 = vpop.f32.mrb[0].mxu0
      %v1090 = vadd.f32 %v908, %v1089
      %1091 = vmatprep.mubr.bf16.mxu0 0
      %1092 = vmatmul.mubr.bf16.gmra.mrb[0].mxu0 %v956
      %v1093 = vpop.f32.mrb[0].mxu0
      %v1094 = vadd.f32 %v904, %v1093
      %v1095 = vpop.f32.mrb[0].mxu0
      %v1096 = vadd.f32 %v908, %v1095
      %v1097 = vpop.f32.mrb[0].mxu0
      %v1098 = vadd.f32 %v904, %v1097
      %v1099 = vpop.f32.mrb[0].mxu0
      %v1100 = vadd.f32 %v908, %v1099
      %1101 = vmatprep.mubr.bf16.mxu0 0
      %1102 = vmatmul.mubr.bf16.gmra.mrb[0].mxu0 %v959
      %v1103 = vpop.f32.mrb[0].mxu0
      %v1104 = vadd.f32 %v904, %v1103
      %v1105 = vpop.f32.mrb[0].mxu0
      %v1106 = vadd.f32 %v908, %v1105
      %v1107 = vpop.f32.mrb[0].mxu0
      %v1108 = vadd.f32 %v904, %v1107
      %v1109 = vpop.f32.mrb[0].mxu0
      %v1110 = vadd.f32 %v908, %v1109
      %1111 = vmatprep.mubr.bf16.mxu0 0
      %1112 = vmatmul.mubr.bf16.gmra.mrb[0].mxu0 %v962
      %v1113 = vpop.f32.mrb[0].mxu0
      %v1114 = vadd.f32 %v904, %v1113
      %v1115 = vpop.f32.mrb[0].mxu0
      %v1116 = vadd.f32 %v908, %v1115
      %v1117 = vpop.f32.mrb[0].mxu0
      %v1118 = vadd.f32 %v904, %v1117
      %v1119 = vpop.f32.mrb[0].mxu0
      %v1120 = vadd.f32 %v908, %v1119
      %1121 = vmatprep.mubr.bf16.mxu0 0
      %1122 = vmatmul.mubr.bf16.gmra.mrb[0].mxu0 %v965
      %v1123 = vpop.f32.mrb[0].mxu0
      %v1124 = vadd.f32 %v904, %v1123
      %v1125 = vpop.f32.mrb[0].mxu0
      %v1126 = vadd.f32 %v908, %v1125
      %v1127 = vpop.f32.mrb[0].mxu0
      %v1128 = vadd.f32 %v904, %v1127
      %v1129 = vpop.f32.mrb[0].mxu0
      %v1130 = vadd.f32 %v908, %v1129
      %1131 = vmatprep.mubr.bf16.mxu0 0
      %1132 = vmatmul.mubr.bf16.gmra.mrb[0].mxu0 %v968
      %v1133 = vpop.f32.mrb[0].mxu0
      %v1134 = vadd.f32 %v904, %v1133
      %v1135 = vpop.f32.mrb[0].mxu0
      %v1136 = vadd.f32 %v908, %v1135
      %v1137 = vpop.f32.mrb[0].mxu0
      %v1138 = vadd.f32 %v904, %v1137
      %v1139 = vpop.f32.mrb[0].mxu0
      %v1140 = vadd.f32 %v908, %v1139
      %1141 = vmatprep.mubr.bf16.mxu0 0
      %1142 = vmatmul.mubr.bf16.gmra.mrb[0].mxu0 %v971
      %v1143 = vpop.f32.mrb[0].mxu0
      %v1144 = vadd.f32 %v904, %v1143
      %v1145 = vpop.f32.mrb[0].mxu0
      %v1146 = vadd.f32 %v908, %v1145
      %v1147 = vpop.f32.mrb[0].mxu0
      %v1148 = vadd.f32 %v904, %v1147
      %v1149 = vpop.f32.mrb[0].mxu0
      %v1150 = vadd.f32 %v908, %v1149
      %1151 = vmatprep.mubr.bf16.mxu0 0
      %1152 = vmatmul.mubr.bf16.gmra.mrb[0].mxu0 %v974
      %v1153 = vpop.f32.mrb[0].mxu0
      %v1154 = vadd.f32 %v904, %v1153
      %v1155 = vpop.f32.mrb[0].mxu0
      %v1156 = vadd.f32 %v908, %v1155
      %v1157 = vpop.f32.mrb[0].mxu0
      %v1158 = vadd.f32 %v904, %v1157
      %v1159 = vpop.f32.mrb[0].mxu0
      %v1160 = vadd.f32 %v908, %v1159
      %1161 = vmatprep.mubr.bf16.mxu0 0
      %1162 = vmatmul.mubr.bf16.gmra.mrb[0].mxu0 %v977
      %v1163 = vpop.f32.mrb[0].mxu0
      %v1164 = vadd.f32 %v904, %v1163
      %v1165 = vpop.f32.mrb[0].mxu0
      %v1166 = vadd.f32 %v908, %v1165
      %v1167 = vpop.f32.mrb[0].mxu0
      %v1168 = vadd.f32 %v904, %v1167
      %v1169 = vpop.f32.mrb[0].mxu0
      %v1170 = vadd.f32 %v908, %v1169
      %1171 = vdwg.mxu0
      %v1172 = vmul.f32 %v1014, 0.5
      %v1173 = vmul.f32 %v1016, 0.5
      %v1174 = vmul.f32 %v1018, 0.5
      %v1175 = vmul.f32 %v1020, 0.5
      %v1176 = vmul.f32 %v1024, 0.5
      %v1177 = vmul.f32 %v1026, 0.5
      %v1178 = vmul.f32 %v1028, 0.5
      %v1179 = vmul.f32 %v1030, 0.5
      %v1180 = vmul.f32 %v1034, 0.5
      %v1181 = vmul.f32 %v1036, 0.5
      %v1182 = vmul.f32 %v1038, 0.5
      %v1183 = vmul.f32 %v1040, 0.5
      %v1184 = vmul.f32 %v1044, 0.5
      %v1185 = vmul.f32 %v1046, 0.5
      %v1186 = vmul.f32 %v1048, 0.5
      %v1187 = vmul.f32 %v1050, 0.5
      %v1188 = vmul.f32 %v1054, 0.5
      %v1189 = vmul.f32 %v1056, 0.5
      %v1190 = vmul.f32 %v1058, 0.5
      %v1191 = vmul.f32 %v1060, 0.5
      %v1192 = vmul.f32 %v1064, 0.5
      %v1193 = vmul.f32 %v1066, 0.5
      %v1194 = vmul.f32 %v1068, 0.5
      %v1195 = vmul.f32 %v1070, 0.5
      %v1196 = vmul.f32 %v1074, 0.5
      %v1197 = vmul.f32 %v1076, 0.5
      %v1198 = vmul.f32 %v1078, 0.5
      %v1199 = vmul.f32 %v1080, 0.5
      %v1200 = vmul.f32 %v1084, 0.5
      %v1201 = vmul.f32 %v1086, 0.5
      %v1202 = vmul.f32 %v1088, 0.5
      %v1203 = vmul.f32 %v1090, 0.5
      %v1204 = vmul.f32 %v1094, 0.5
      %v1205 = vmul.f32 %v1096, 0.5
      %v1206 = vmul.f32 %v1098, 0.5
      %v1207 = vmul.f32 %v1100, 0.5
      %v1208 = vmul.f32 %v1104, 0.5
      %v1209 = vmul.f32 %v1106, 0.5
      %v1210 = vmul.f32 %v1108, 0.5
      %v1211 = vmul.f32 %v1110, 0.5
      %v1212 = vmul.f32 %v1114, 0.5
      %v1213 = vmul.f32 %v1116, 0.5
      %v1214 = vmul.f32 %v1118, 0.5
      %v1215 = vmul.f32 %v1120, 0.5
      %v1216 = vmul.f32 %v1124, 0.5
      %v1217 = vmul.f32 %v1126, 0.5
      %v1218 = vmul.f32 %v1128, 0.5
      %v1219 = vmul.f32 %v1130, 0.5
      %v1220 = vmul.f32 %v1134, 0.5
      %v1221 = vmul.f32 %v1136, 0.5
      %v1222 = vmul.f32 %v1138, 0.5
      %v1223 = vmul.f32 %v1140, 0.5
      %v1224 = vmul.f32 %v1144, 0.5
      %v1225 = vmul.f32 %v1146, 0.5
      %v1226 = vmul.f32 %v1148, 0.5
      %v1227 = vmul.f32 %v1150, 0.5
      %v1228 = vmul.f32 %v1154, 0.5
      %v1229 = vmul.f32 %v1156, 0.5
      %v1230 = vmul.f32 %v1158, 0.5
      %v1231 = vmul.f32 %v1160, 0.5
      %v1232 = vmul.f32 %v1164, 0.5
      %v1233 = vmul.f32 %v1166, 0.5
      %v1234 = vmul.f32 %v1168, 0.5
      %v1235 = vmul.f32 %v1170, 0.5
      %v1236 = vtanh.pop %v1172
      %v1237 = vtanh.pop %v1173
      %v1238 = vtanh.pop %v1174
      %v1239 = vtanh.pop %v1175
      %v1240 = vtanh.pop %v1176
      %v1241 = vtanh.pop %v1177
      %v1242 = vtanh.pop %v1178
      %v1243 = vtanh.pop %v1179
      %v1244 = vtanh.pop %v1180
      %v1245 = vtanh.pop %v1181
      %v1246 = vtanh.pop %v1182
      %v1247 = vtanh.pop %v1183
      %v1248 = vtanh.pop %v1184
      %v1249 = vtanh.pop %v1185
      %v1250 = vtanh.pop %v1186
      %v1251 = vtanh.pop %v1187
      %v1252 = vtanh.pop %v1188
      %v1253 = vtanh.pop %v1189
      %v1254 = vtanh.pop %v1190
      %v1255 = vtanh.pop %v1191
      %v1256 = vtanh.pop %v1192
      %v1257 = vtanh.pop %v1193
      %v1258 = vtanh.pop %v1194
      %v1259 = vtanh.pop %v1195
      %v1260 = vtanh.pop %v1196
      %v1261 = vtanh.pop %v1197
      %v1262 = vtanh.pop %v1198
      %v1263 = vtanh.pop %v1199
      %v1264 = vtanh.pop %v1200
      %v1265 = vtanh.pop %v1201
      %v1266 = vtanh.pop %v1202
      %v1267 = vtanh.pop %v1203
      %v1268 = vtanh.pop %v1204
      %v1269 = vtanh.pop %v1205
      %v1270 = vtanh.pop %v1206
      %v1271 = vtanh.pop %v1207
      %v1272 = vtanh.pop %v1208
      %v1273 = vtanh.pop %v1209
      %v1274 = vtanh.pop %v1210
      %v1275 = vtanh.pop %v1211
      %v1276 = vtanh.pop %v1212
      %v1277 = vtanh.pop %v1213
      %v1278 = vtanh.pop %v1214
      %v1279 = vtanh.pop %v1215
      %v1280 = vtanh.pop %v1216
      %v1281 = vtanh.pop %v1217
      %v1282 = vtanh.pop %v1218
      %v1283 = vtanh.pop %v1219
      %v1284 = vtanh.pop %v1220
      %v1285 = vtanh.pop %v1221
      %v1286 = vtanh.pop %v1222
      %v1287 = vtanh.pop %v1223
      %v1288 = vtanh.pop %v1224
      %v1289 = vtanh.pop %v1225
      %v1290 = vtanh.pop %v1226
      %v1291 = vtanh.pop %v1227
      %v1292 = vtanh.pop %v1228
      %v1293 = vtanh.pop %v1229
      %v1294 = vtanh.pop %v1230
      %v1295 = vtanh.pop %v1231
      %v1296 = vtanh.pop %v1232
      %v1297 = vtanh.pop %v1233
      %v1298 = vtanh.pop %v1234
      %v1299 = vtanh.pop %v1235
      %v1300 = vmul.f32 %v1236, 0.5
      %v1301 = vmul.f32 %v1237, 0.5
      %v1302 = vmul.f32 %v1238, 0.5
      %v1303 = vmul.f32 %v1239, 0.5
      %v1304 = vmul.f32 %v1240, 0.5
      %v1305 = vmul.f32 %v1241, 0.5
      %v1306 = vmul.f32 %v1242, 0.5
      %v1307 = vmul.f32 %v1243, 0.5
      %v1308 = vmul.f32 %v1244, 0.5
      %v1309 = vmul.f32 %v1245, 0.5
      %v1310 = vmul.f32 %v1246, 0.5
      %v1311 = vmul.f32 %v1247, 0.5
      %v1312 = vmul.f32 %v1248, 0.5
      %v1313 = vmul.f32 %v1249, 0.5
      %v1314 = vmul.f32 %v1250, 0.5
      %v1315 = vmul.f32 %v1251, 0.5
      %v1316 = vmul.f32 %v1252, 0.5
      %v1317 = vmul.f32 %v1253, 0.5
      %v1318 = vmul.f32 %v1254, 0.5
      %v1319 = vmul.f32 %v1255, 0.5
      %v1320 = vmul.f32 %v1256, 0.5
      %v1321 = vmul.f32 %v1257, 0.5
      %v1322 = vmul.f32 %v1258, 0.5
      %v1323 = vmul.f32 %v1259, 0.5
      %v1324 = vmul.f32 %v1260, 0.5
      %v1325 = vmul.f32 %v1261, 0.5
      %v1326 = vmul.f32 %v1262, 0.5
      %v1327 = vmul.f32 %v1263, 0.5
      %v1328 = vmul.f32 %v1264, 0.5
      %v1329 = vmul.f32 %v1265, 0.5
      %v1330 = vmul.f32 %v1266, 0.5
      %v1331 = vmul.f32 %v1267, 0.5
      %v1332 = vmul.f32 %v1268, 0.5
      %v1333 = vmul.f32 %v1269, 0.5
      %v1334 = vmul.f32 %v1270, 0.5
      %v1335 = vmul.f32 %v1271, 0.5
      %v1336 = vmul.f32 %v1272, 0.5
      %v1337 = vmul.f32 %v1273, 0.5
      %v1338 = vmul.f32 %v1274, 0.5
      %v1339 = vmul.f32 %v1275, 0.5
      %v1340 = vmul.f32 %v1276, 0.5
      %v1341 = vmul.f32 %v1277, 0.5
      %v1342 = vmul.f32 %v1278, 0.5
      %v1343 = vmul.f32 %v1279, 0.5
      %v1344 = vmul.f32 %v1280, 0.5
      %v1345 = vmul.f32 %v1281, 0.5
      %v1346 = vmul.f32 %v1282, 0.5
      %v1347 = vmul.f32 %v1283, 0.5
      %v1348 = vmul.f32 %v1284, 0.5
      %v1349 = vmul.f32 %v1285, 0.5
      %v1350 = vmul.f32 %v1286, 0.5
      %v1351 = vmul.f32 %v1287, 0.5
      %v1352 = vmul.f32 %v1288, 0.5
      %v1353 = vmul.f32 %v1289, 0.5
      %v1354 = vmul.f32 %v1290, 0.5
      %v1355 = vmul.f32 %v1291, 0.5
      %v1356 = vmul.f32 %v1292, 0.5
      %v1357 = vmul.f32 %v1293, 0.5
      %v1358 = vmul.f32 %v1294, 0.5
      %v1359 = vmul.f32 %v1295, 0.5
      %v1360 = vmul.f32 %v1296, 0.5
      %v1361 = vmul.f32 %v1297, 0.5
      %v1362 = vmul.f32 %v1298, 0.5
      %v1363 = vmul.f32 %v1299, 0.5
      %v1364 = vadd.f32 %v1300, 0.5
      %v1365 = vadd.f32 %v1301, 0.5
      %v1366 = vadd.f32 %v1302, 0.5
      %v1367 = vadd.f32 %v1303, 0.5
      %v1368 = vadd.f32 %v1304, 0.5
      %v1369 = vadd.f32 %v1305, 0.5
      %v1370 = vadd.f32 %v1306, 0.5
      %v1371 = vadd.f32 %v1307, 0.5
      %v1372 = vadd.f32 %v1308, 0.5
      %v1373 = vadd.f32 %v1309, 0.5
      %v1374 = vadd.f32 %v1310, 0.5
      %v1375 = vadd.f32 %v1311, 0.5
      %v1376 = vadd.f32 %v1312, 0.5
      %v1377 = vadd.f32 %v1313, 0.5
      %v1378 = vadd.f32 %v1314, 0.5
      %v1379 = vadd.f32 %v1315, 0.5
      %v1380 = vadd.f32 %v1316, 0.5
      %v1381 = vadd.f32 %v1317, 0.5
      %v1382 = vadd.f32 %v1318, 0.5
      %v1383 = vadd.f32 %v1319, 0.5
      %v1384 = vadd.f32 %v1320, 0.5
      %v1385 = vadd.f32 %v1321, 0.5
      %v1386 = vadd.f32 %v1322, 0.5
      %v1387 = vadd.f32 %v1323, 0.5
      %v1388 = vadd.f32 %v1324, 0.5
      %v1389 = vadd.f32 %v1325, 0.5
      %v1390 = vadd.f32 %v1326, 0.5
      %v1391 = vadd.f32 %v1327, 0.5
      %v1392 = vadd.f32 %v1328, 0.5
      %v1393 = vadd.f32 %v1329, 0.5
      %v1394 = vadd.f32 %v1330, 0.5
      %v1395 = vadd.f32 %v1331, 0.5
      %v1396 = vadd.f32 %v1332, 0.5
      %v1397 = vadd.f32 %v1333, 0.5
      %v1398 = vadd.f32 %v1334, 0.5
      %v1399 = vadd.f32 %v1335, 0.5
      %v1400 = vadd.f32 %v1336, 0.5
      %v1401 = vadd.f32 %v1337, 0.5
      %v1402 = vadd.f32 %v1338, 0.5
      %v1403 = vadd.f32 %v1339, 0.5
      %v1404 = vadd.f32 %v1340, 0.5
      %v1405 = vadd.f32 %v1341, 0.5
      %v1406 = vadd.f32 %v1342, 0.5
      %v1407 = vadd.f32 %v1343, 0.5
      %v1408 = vadd.f32 %v1344, 0.5
      %v1409 = vadd.f32 %v1345, 0.5
      %v1410 = vadd.f32 %v1346, 0.5
      %v1411 = vadd.f32 %v1347, 0.5
      %v1412 = vadd.f32 %v1348, 0.5
      %v1413 = vadd.f32 %v1349, 0.5
      %v1414 = vadd.f32 %v1350, 0.5
      %v1415 = vadd.f32 %v1351, 0.5
      %v1416 = vadd.f32 %v1352, 0.5
      %v1417 = vadd.f32 %v1353, 0.5
      %v1418 = vadd.f32 %v1354, 0.5
      %v1419 = vadd.f32 %v1355, 0.5
      %v1420 = vadd.f32 %v1356, 0.5
      %v1421 = vadd.f32 %v1357, 0.5
      %v1422 = vadd.f32 %v1358, 0.5
      %v1423 = vadd.f32 %v1359, 0.5
      %v1424 = vadd.f32 %v1360, 0.5
      %v1425 = vadd.f32 %v1361, 0.5
      %v1426 = vadd.f32 %v1362, 0.5
      %v1427 = vadd.f32 %v1363, 0.5
      %v1428 = vmul.f32 %v1014, %v1364
      %v1429 = vmul.f32 %v1016, %v1365
      %v1430 = vmul.f32 %v1018, %v1366
      %v1431 = vmul.f32 %v1020, %v1367
      %v1432 = vmul.f32 %v1024, %v1368
      %v1433 = vmul.f32 %v1026, %v1369
      %v1434 = vmul.f32 %v1028, %v1370
      %v1435 = vmul.f32 %v1030, %v1371
      %v1436 = vmul.f32 %v1034, %v1372
      %v1437 = vmul.f32 %v1036, %v1373
      %v1438 = vmul.f32 %v1038, %v1374
      %v1439 = vmul.f32 %v1040, %v1375
      %v1440 = vmul.f32 %v1044, %v1376
      %v1441 = vmul.f32 %v1046, %v1377
      %v1442 = vmul.f32 %v1048, %v1378
      %v1443 = vmul.f32 %v1050, %v1379
      %v1444 = vmul.f32 %v1054, %v1380
      %v1445 = vmul.f32 %v1056, %v1381
      %v1446 = vmul.f32 %v1058, %v1382
      %v1447 = vmul.f32 %v1060, %v1383
      %v1448 = vmul.f32 %v1064, %v1384
      %v1449 = vmul.f32 %v1066, %v1385
      %v1450 = vmul.f32 %v1068, %v1386
      %v1451 = vmul.f32 %v1070, %v1387
      %v1452 = vmul.f32 %v1074, %v1388
      %v1453 = vmul.f32 %v1076, %v1389
      %v1454 = vmul.f32 %v1078, %v1390
      %v1455 = vmul.f32 %v1080, %v1391
      %v1456 = vmul.f32 %v1084, %v1392
      %v1457 = vmul.f32 %v1086, %v1393
      %v1458 = vmul.f32 %v1088, %v1394
      %v1459 = vmul.f32 %v1090, %v1395
      %v1460 = vmul.f32 %v1094, %v1396
      %v1461 = vmul.f32 %v1096, %v1397
      %v1462 = vmul.f32 %v1098, %v1398
      %v1463 = vmul.f32 %v1100, %v1399
      %v1464 = vmul.f32 %v1104, %v1400
      %v1465 = vmul.f32 %v1106, %v1401
      %v1466 = vmul.f32 %v1108, %v1402
      %v1467 = vmul.f32 %v1110, %v1403
      %v1468 = vmul.f32 %v1114, %v1404
      %v1469 = vmul.f32 %v1116, %v1405
      %v1470 = vmul.f32 %v1118, %v1406
      %v1471 = vmul.f32 %v1120, %v1407
      %v1472 = vmul.f32 %v1124, %v1408
      %v1473 = vmul.f32 %v1126, %v1409
      %v1474 = vmul.f32 %v1128, %v1410
      %v1475 = vmul.f32 %v1130, %v1411
      %v1476 = vmul.f32 %v1134, %v1412
      %v1477 = vmul.f32 %v1136, %v1413
      %v1478 = vmul.f32 %v1138, %v1414
      %v1479 = vmul.f32 %v1140, %v1415
      %v1480 = vmul.f32 %v1144, %v1416
      %v1481 = vmul.f32 %v1146, %v1417
      %v1482 = vmul.f32 %v1148, %v1418
      %v1483 = vmul.f32 %v1150, %v1419
      %v1484 = vmul.f32 %v1154, %v1420
      %v1485 = vmul.f32 %v1156, %v1421
      %v1486 = vmul.f32 %v1158, %v1422
      %v1487 = vmul.f32 %v1160, %v1423
      %v1488 = vmul.f32 %v1164, %v1424
      %v1489 = vmul.f32 %v1166, %v1425
      %v1490 = vmul.f32 %v1168, %v1426
      %v1491 = vmul.f32 %v1170, %v1427
      %v1492 = vpack.c.bf16 %v1430, %v1428
      %v1493 = vpack.c.bf16 %v1431, %v1429
      %v1494 = vpack.c.bf16 %v1434, %v1432
      %v1495 = vpack.c.bf16 %v1435, %v1433
      %v1496 = vpack.c.bf16 %v1438, %v1436
      %v1497 = vpack.c.bf16 %v1439, %v1437
      %v1498 = vpack.c.bf16 %v1442, %v1440
      %v1499 = vpack.c.bf16 %v1443, %v1441
      %v1500 = vpack.c.bf16 %v1446, %v1444
      %v1501 = vpack.c.bf16 %v1447, %v1445
      %v1502 = vpack.c.bf16 %v1450, %v1448
      %v1503 = vpack.c.bf16 %v1451, %v1449
      %v1504 = vpack.c.bf16 %v1454, %v1452
      %v1505 = vpack.c.bf16 %v1455, %v1453
      %v1506 = vpack.c.bf16 %v1458, %v1456
      %v1507 = vpack.c.bf16 %v1459, %v1457
      %v1508 = vpack.c.bf16 %v1462, %v1460
      %v1509 = vpack.c.bf16 %v1463, %v1461
      %v1510 = vpack.c.bf16 %v1466, %v1464
      %v1511 = vpack.c.bf16 %v1467, %v1465
      %v1512 = vpack.c.bf16 %v1470, %v1468
      %v1513 = vpack.c.bf16 %v1471, %v1469
      %v1514 = vpack.c.bf16 %v1474, %v1472
      %v1515 = vpack.c.bf16 %v1475, %v1473
      %v1516 = vpack.c.bf16 %v1478, %v1476
      %v1517 = vpack.c.bf16 %v1479, %v1477
      %v1518 = vpack.c.bf16 %v1482, %v1480
      %v1519 = vpack.c.bf16 %v1483, %v1481
      %v1520 = vpack.c.bf16 %v1486, %v1484
      %v1521 = vpack.c.bf16 %v1487, %v1485
      %v1522 = vpack.c.bf16 %v1490, %v1488
      %v1523 = vpack.c.bf16 %v1491, %v1489
      %v1524 = vld [vmem:[%s5] sm:$0xff]
      %v1525 = vld [vmem:[%s5 + $0x8] sm:$0xff]
      %v1526 = vld [vmem:[%s5 + $0x10] sm:$0xff]
      %v1527 = vld [vmem:[%s5 + $0x18] sm:$0xff]
      %v1528 = vld [vmem:[%s5 + $0x20] sm:$0xff]
      %v1529 = vld [vmem:[%s5 + $0x28] sm:$0xff]
      %v1530 = vld [vmem:[%s5 + $0x30] sm:$0xff]
      %v1531 = vld [vmem:[%s5 + $0x38] sm:$0xff]
      %v1532 = vld [vmem:[%s5 + $0x40] sm:$0xff]
      %v1533 = vld [vmem:[%s5 + $0x48] sm:$0xff]
      %v1534 = vld [vmem:[%s5 + $0x50] sm:$0xff]
      %v1535 = vld [vmem:[%s5 + $0x58] sm:$0xff]
      %v1536 = vld [vmem:[%s5 + $0x60] sm:$0xff]
      %v1537 = vld [vmem:[%s5 + $0x68] sm:$0xff]
      %v1538 = vld [vmem:[%s5 + $0x70] sm:$0xff]
      %v1539 = vld [vmem:[%s5 + $0x78] sm:$0xff]
      %v1540 = vld [vmem:[%s5 + $0x80] sm:$0xff]
      %v1541 = vld [vmem:[%s5 + $0x88] sm:$0xff]
      %v1542 = vld [vmem:[%s5 + $0x90] sm:$0xff]
      %v1543 = vld [vmem:[%s5 + $0x98] sm:$0xff]
      %v1544 = vld [vmem:[%s5 + $0xa0] sm:$0xff]
      %v1545 = vld [vmem:[%s5 + $0xa8] sm:$0xff]
      %v1546 = vld [vmem:[%s5 + $0xb0] sm:$0xff]
      %v1547 = vld [vmem:[%s5 + $0xb8] sm:$0xff]
      %v1548 = vld [vmem:[%s5 + $0xc0] sm:$0xff]
      %v1549 = vld [vmem:[%s5 + $0xc8] sm:$0xff]
      %v1550 = vld [vmem:[%s5 + $0xd0] sm:$0xff]
      %v1551 = vld [vmem:[%s5 + $0xd8] sm:$0xff]
      %v1552 = vld [vmem:[%s5 + $0xe0] sm:$0xff]
      %v1553 = vld [vmem:[%s5 + $0xe8] sm:$0xff]
      %v1554 = vld [vmem:[%s5 + $0xf0] sm:$0xff]
      %v1555 = vld [vmem:[%s5 + $0xf8] sm:$0xff]
      %v1556 = vld [vmem:[%s5 + $0x100] sm:$0xff]
      %v1557 = vld [vmem:[%s5 + $0x108] sm:$0xff]
      %v1558 = vld [vmem:[%s5 + $0x110] sm:$0xff]
      %v1559 = vld [vmem:[%s5 + $0x118] sm:$0xff]
      %v1560 = vld [vmem:[%s5 + $0x120] sm:$0xff]
      %v1561 = vld [vmem:[%s5 + $0x128] sm:$0xff]
      %v1562 = vld [vmem:[%s5 + $0x130] sm:$0xff]
      %v1563 = vld [vmem:[%s5 + $0x138] sm:$0xff]
      %v1564 = vld [vmem:[%s5 + $0x140] sm:$0xff]
      %v1565 = vld [vmem:[%s5 + $0x148] sm:$0xff]
      %v1566 = vld [vmem:[%s5 + $0x150] sm:$0xff]
      %v1567 = vld [vmem:[%s5 + $0x158] sm:$0xff]
      %v1568 = vld [vmem:[%s5 + $0x160] sm:$0xff]
      %v1569 = vld [vmem:[%s5 + $0x168] sm:$0xff]
      %v1570 = vld [vmem:[%s5 + $0x170] sm:$0xff]
      %v1571 = vld [vmem:[%s5 + $0x178] sm:$0xff]
      %v1572 = vld [vmem:[%s5 + $0x180] sm:$0xff]
      %v1573 = vld [vmem:[%s5 + $0x188] sm:$0xff]
      %v1574 = vld [vmem:[%s5 + $0x190] sm:$0xff]
      %v1575 = vld [vmem:[%s5 + $0x198] sm:$0xff]
      %v1576 = vld [vmem:[%s5 + $0x1a0] sm:$0xff]
      %v1577 = vld [vmem:[%s5 + $0x1a8] sm:$0xff]
      %v1578 = vld [vmem:[%s5 + $0x1b0] sm:$0xff]
      %v1579 = vld [vmem:[%s5 + $0x1b8] sm:$0xff]
      %v1580 = vld [vmem:[%s5 + $0x1c0] sm:$0xff]
      %v1581 = vld [vmem:[%s5 + $0x1c8] sm:$0xff]
      %v1582 = vld [vmem:[%s5 + $0x1d0] sm:$0xff]
      %v1583 = vld [vmem:[%s5 + $0x1d8] sm:$0xff]
      %v1584 = vld [vmem:[%s5 + $0x1e0] sm:$0xff]
      %v1585 = vld [vmem:[%s5 + $0x1e8] sm:$0xff]
      %v1586 = vld [vmem:[%s5 + $0x1f0] sm:$0xff]
      %v1587 = vld [vmem:[%s5 + $0x1f8] sm:$0xff]
      %v1588 = vld [vmem:[%s5 + $0x200] sm:$0xff]
      %v1589 = vld [vmem:[%s5 + $0x208] sm:$0xff]
      %v1590 = vld [vmem:[%s5 + $0x210] sm:$0xff]
      %v1591 = vld [vmem:[%s5 + $0x218] sm:$0xff]
      %v1592 = vld [vmem:[%s5 + $0x220] sm:$0xff]
      %v1593 = vld [vmem:[%s5 + $0x228] sm:$0xff]
      %v1594 = vld [vmem:[%s5 + $0x230] sm:$0xff]
      %v1595 = vld [vmem:[%s5 + $0x238] sm:$0xff]
      %v1596 = vld [vmem:[%s5 + $0x240] sm:$0xff]
      %v1597 = vld [vmem:[%s5 + $0x248] sm:$0xff]
      %v1598 = vld [vmem:[%s5 + $0x250] sm:$0xff]
      %v1599 = vld [vmem:[%s5 + $0x258] sm:$0xff]
      %v1600 = vld [vmem:[%s5 + $0x260] sm:$0xff]
      %v1601 = vld [vmem:[%s5 + $0x268] sm:$0xff]
      %v1602 = vld [vmem:[%s5 + $0x270] sm:$0xff]
      %v1603 = vld [vmem:[%s5 + $0x278] sm:$0xff]
      %v1604 = vld [vmem:[%s5 + $0x280] sm:$0xff]
      %v1605 = vld [vmem:[%s5 + $0x288] sm:$0xff]
      %v1606 = vld [vmem:[%s5 + $0x290] sm:$0xff]
      %v1607 = vld [vmem:[%s5 + $0x298] sm:$0xff]
      %v1608 = vld [vmem:[%s5 + $0x2a0] sm:$0xff]
      %v1609 = vld [vmem:[%s5 + $0x2a8] sm:$0xff]
      %v1610 = vld [vmem:[%s5 + $0x2b0] sm:$0xff]
      %v1611 = vld [vmem:[%s5 + $0x2b8] sm:$0xff]
      %v1612 = vld [vmem:[%s5 + $0x2c0] sm:$0xff]
      %v1613 = vld [vmem:[%s5 + $0x2c8] sm:$0xff]
      %v1614 = vld [vmem:[%s5 + $0x2d0] sm:$0xff]
      %v1615 = vld [vmem:[%s5 + $0x2d8] sm:$0xff]
      %v1616 = vld [vmem:[%s5 + $0x2e0] sm:$0xff]
      %v1617 = vld [vmem:[%s5 + $0x2e8] sm:$0xff]
      %v1618 = vld [vmem:[%s5 + $0x2f0] sm:$0xff]
      %v1619 = vld [vmem:[%s5 + $0x2f8] sm:$0xff]
      %v1620 = vld [vmem:[%s5 + $0x300] sm:$0xff]
      %v1621 = vld [vmem:[%s5 + $0x308] sm:$0xff]
      %v1622 = vld [vmem:[%s5 + $0x310] sm:$0xff]
      %v1623 = vld [vmem:[%s5 + $0x318] sm:$0xff]
      %v1624 = vld [vmem:[%s5 + $0x320] sm:$0xff]
      %v1625 = vld [vmem:[%s5 + $0x328] sm:$0xff]
      %v1626 = vld [vmem:[%s5 + $0x330] sm:$0xff]
      %v1627 = vld [vmem:[%s5 + $0x338] sm:$0xff]
      %v1628 = vld [vmem:[%s5 + $0x340] sm:$0xff]
      %v1629 = vld [vmem:[%s5 + $0x348] sm:$0xff]
      %v1630 = vld [vmem:[%s5 + $0x350] sm:$0xff]
      %v1631 = vld [vmem:[%s5 + $0x358] sm:$0xff]
      %v1632 = vld [vmem:[%s5 + $0x360] sm:$0xff]
      %v1633 = vld [vmem:[%s5 + $0x368] sm:$0xff]
      %v1634 = vld [vmem:[%s5 + $0x370] sm:$0xff]
      %v1635 = vld [vmem:[%s5 + $0x378] sm:$0xff]
      %v1636 = vld [vmem:[%s5 + $0x380] sm:$0xff]
      %v1637 = vld [vmem:[%s5 + $0x388] sm:$0xff]
      %v1638 = vld [vmem:[%s5 + $0x390] sm:$0xff]
      %v1639 = vld [vmem:[%s5 + $0x398] sm:$0xff]
      %v1640 = vld [vmem:[%s5 + $0x3a0] sm:$0xff]
      %v1641 = vld [vmem:[%s5 + $0x3a8] sm:$0xff]
      %v1642 = vld [vmem:[%s5 + $0x3b0] sm:$0xff]
      %v1643 = vld [vmem:[%s5 + $0x3b8] sm:$0xff]
      %v1644 = vld [vmem:[%s5 + $0x3c0] sm:$0xff]
      %v1645 = vld [vmem:[%s5 + $0x3c8] sm:$0xff]
      %v1646 = vld [vmem:[%s5 + $0x3d0] sm:$0xff]
      %v1647 = vld [vmem:[%s5 + $0x3d8] sm:$0xff]
      %v1648 = vld [vmem:[%s5 + $0x3e0] sm:$0xff]
      %v1649 = vld [vmem:[%s5 + $0x3e8] sm:$0xff]
      %v1650 = vld [vmem:[%s5 + $0x3f0] sm:$0xff]
      %v1651 = vld [vmem:[%s5 + $0x3f8] sm:$0xff]
      %v1652 = vld [vmem:[%s5 + $0x400] sm:$0xff]
      %v1653 = vld [vmem:[%s5 + $0x408] sm:$0xff]
      %v1654 = vld [vmem:[%s5 + $0x410] sm:$0xff]
      %v1655 = vld [vmem:[%s5 + $0x418] sm:$0xff]
      %v1656 = vld [vmem:[%s5 + $0x420] sm:$0xff]
      %v1657 = vld [vmem:[%s5 + $0x428] sm:$0xff]
      %v1658 = vld [vmem:[%s5 + $0x430] sm:$0xff]
      %v1659 = vld [vmem:[%s5 + $0x438] sm:$0xff]
      %v1660 = vld [vmem:[%s5 + $0x440] sm:$0xff]
      %v1661 = vld [vmem:[%s5 + $0x448] sm:$0xff]
      %v1662 = vld [vmem:[%s5 + $0x450] sm:$0xff]
      %v1663 = vld [vmem:[%s5 + $0x458] sm:$0xff]
      %v1664 = vld [vmem:[%s5 + $0x460] sm:$0xff]
      %v1665 = vld [vmem:[%s5 + $0x468] sm:$0xff]
      %v1666 = vld [vmem:[%s5 + $0x470] sm:$0xff]
      %v1667 = vld [vmem:[%s5 + $0x478] sm:$0xff]
      %v1668 = vld [vmem:[%s5 + $0x480] sm:$0xff]
      %v1669 = vld [vmem:[%s5 + $0x488] sm:$0xff]
      %v1670 = vld [vmem:[%s5 + $0x490] sm:$0xff]
      %v1671 = vld [vmem:[%s5 + $0x498] sm:$0xff]
      %v1672 = vld [vmem:[%s5 + $0x4a0] sm:$0xff]
      %v1673 = vld [vmem:[%s5 + $0x4a8] sm:$0xff]
      %v1674 = vld [vmem:[%s5 + $0x4b0] sm:$0xff]
      %v1675 = vld [vmem:[%s5 + $0x4b8] sm:$0xff]
      %v1676 = vld [vmem:[%s5 + $0x4c0] sm:$0xff]
      %v1677 = vld [vmem:[%s5 + $0x4c8] sm:$0xff]
      %v1678 = vld [vmem:[%s5 + $0x4d0] sm:$0xff]
      %v1679 = vld [vmem:[%s5 + $0x4d8] sm:$0xff]
      %v1680 = vld [vmem:[%s5 + $0x4e0] sm:$0xff]
      %v1681 = vld [vmem:[%s5 + $0x4e8] sm:$0xff]
      %v1682 = vld [vmem:[%s5 + $0x4f0] sm:$0xff]
      %v1683 = vld [vmem:[%s5 + $0x4f8] sm:$0xff]
      %v1684 = vld [vmem:[%s6] sm:$0xff]
      %v1685 = vld [vmem:[%s6 + $0x8] sm:$0x3]
      %v1688 = vlaneseq
      %v1689 = vshrl.u32 %v1688, 7
      %v1690 = vsub.s32 0, %v1689
      %v1691 = vrot.slane %v1684, %v1690
      %v1692 = vlaneseq
      %v1693 = vshrl.u32 %v1692, 7
      %v1694 = vsub.s32 1, %v1693
      %v1695 = vrot.slane %v1684, %v1694
      %v1696 = vlaneseq
      %v1697 = vshrl.u32 %v1696, 7
      %v1698 = vsub.s32 2, %v1697
      %v1699 = vrot.slane %v1684, %v1698
      %v1700 = vlaneseq
      %v1701 = vshrl.u32 %v1700, 7
      %v1702 = vsub.s32 3, %v1701
      %v1703 = vrot.slane %v1684, %v1702
      %v1704 = vlaneseq
      %v1705 = vshrl.u32 %v1704, 7
      %v1706 = vsub.s32 4, %v1705
      %v1707 = vrot.slane %v1684, %v1706
      %v1708 = vlaneseq
      %v1709 = vshrl.u32 %v1708, 7
      %v1710 = vsub.s32 5, %v1709
      %v1711 = vrot.slane %v1684, %v1710
      %v1712 = vlaneseq
      %v1713 = vshrl.u32 %v1712, 7
      %v1714 = vsub.s32 6, %v1713
      %v1715 = vrot.slane %v1684, %v1714
      %v1716 = vlaneseq
      %v1717 = vshrl.u32 %v1716, 7
      %v1718 = vsub.s32 7, %v1717
      %v1719 = vrot.slane %v1684, %v1718
      %v1720 = vlaneseq
      %v1721 = vshrl.u32 %v1720, 7
      %v1722 = vsub.s32 0, %v1721
      %v1723 = vrot.slane %v1685, %v1722
      %v1724 = vlaneseq
      %v1725 = vshrl.u32 %v1724, 7
      %v1726 = vsub.s32 1, %v1725
      %v1727 = vrot.slane %v1685, %v1726
      %v1898 = vunpack.c.l.b16 %v1524
      %v1899 = vunpack.c.h.b16 %v1524
      %v1900 = vunpack.c.l.b16 %v1525
      %v1901 = vunpack.c.h.b16 %v1525
      %v1902 = vunpack.c.l.b16 %v1526
      %v1903 = vunpack.c.h.b16 %v1526
      %v1904 = vunpack.c.l.b16 %v1527
      %v1905 = vunpack.c.h.b16 %v1527
      %v1906 = vunpack.c.l.b16 %v1528
      %v1907 = vunpack.c.h.b16 %v1528
      %v1908 = vunpack.c.l.b16 %v1529
      %v1909 = vunpack.c.h.b16 %v1529
      %v1910 = vunpack.c.l.b16 %v1530
      %v1911 = vunpack.c.h.b16 %v1530
      %v1912 = vunpack.c.l.b16 %v1531
      %v1913 = vunpack.c.h.b16 %v1531
      %v1914 = vunpack.c.l.b16 %v1532
      %v1915 = vunpack.c.h.b16 %v1532
      %v1916 = vunpack.c.l.b16 %v1533
      %v1917 = vunpack.c.h.b16 %v1533
      %v1918 = vunpack.c.l.b16 %v1534
      %v1919 = vunpack.c.h.b16 %v1534
      %v1920 = vunpack.c.l.b16 %v1535
      %v1921 = vunpack.c.h.b16 %v1535
      %v1922 = vunpack.c.l.b16 %v1536
      %v1923 = vunpack.c.h.b16 %v1536
      %v1924 = vunpack.c.l.b16 %v1537
      %v1925 = vunpack.c.h.b16 %v1537
      %v1926 = vunpack.c.l.b16 %v1538
      %v1927 = vunpack.c.h.b16 %v1538
      %v1928 = vunpack.c.l.b16 %v1539
      %v1929 = vunpack.c.h.b16 %v1539
      %v1930 = vunpack.c.l.b16 %v1540
      %v1931 = vunpack.c.h.b16 %v1540
      %v1932 = vunpack.c.l.b16 %v1541
      %v1933 = vunpack.c.h.b16 %v1541
      %v1934 = vunpack.c.l.b16 %v1542
      %v1935 = vunpack.c.h.b16 %v1542
      %v1936 = vunpack.c.l.b16 %v1543
      %v1937 = vunpack.c.h.b16 %v1543
      %v1938 = vunpack.c.l.b16 %v1544
      %v1939 = vunpack.c.h.b16 %v1544
      %v1940 = vunpack.c.l.b16 %v1545
      %v1941 = vunpack.c.h.b16 %v1545
      %v1942 = vunpack.c.l.b16 %v1546
      %v1943 = vunpack.c.h.b16 %v1546
      %v1944 = vunpack.c.l.b16 %v1547
      %v1945 = vunpack.c.h.b16 %v1547
      %v1946 = vunpack.c.l.b16 %v1548
      %v1947 = vunpack.c.h.b16 %v1548
      %v1948 = vunpack.c.l.b16 %v1549
      %v1949 = vunpack.c.h.b16 %v1549
      %v1950 = vunpack.c.l.b16 %v1550
      %v1951 = vunpack.c.h.b16 %v1550
      %v1952 = vunpack.c.l.b16 %v1551
      %v1953 = vunpack.c.h.b16 %v1551
      %v1954 = vunpack.c.l.b16 %v1552
      %v1955 = vunpack.c.h.b16 %v1552
      %v1956 = vunpack.c.l.b16 %v1553
      %v1957 = vunpack.c.h.b16 %v1553
      %v1958 = vunpack.c.l.b16 %v1554
      %v1959 = vunpack.c.h.b16 %v1554
      %v1960 = vunpack.c.l.b16 %v1555
      %v1961 = vunpack.c.h.b16 %v1555
      %v1962 = vunpack.c.l.b16 %v1556
      %v1963 = vunpack.c.h.b16 %v1556
      %v1964 = vunpack.c.l.b16 %v1557
      %v1965 = vunpack.c.h.b16 %v1557
      %v1966 = vunpack.c.l.b16 %v1558
      %v1967 = vunpack.c.h.b16 %v1558
      %v1968 = vunpack.c.l.b16 %v1559
      %v1969 = vunpack.c.h.b16 %v1559
      %v1970 = vunpack.c.l.b16 %v1560
      %v1971 = vunpack.c.h.b16 %v1560
      %v1972 = vunpack.c.l.b16 %v1561
      %v1973 = vunpack.c.h.b16 %v1561
      %v1974 = vunpack.c.l.b16 %v1562
      %v1975 = vunpack.c.h.b16 %v1562
      %v1976 = vunpack.c.l.b16 %v1563
      %v1977 = vunpack.c.h.b16 %v1563
      %v1978 = vunpack.c.l.b16 %v1564
      %v1979 = vunpack.c.h.b16 %v1564
      %v1980 = vunpack.c.l.b16 %v1565
      %v1981 = vunpack.c.h.b16 %v1565
      %v1982 = vunpack.c.l.b16 %v1566
      %v1983 = vunpack.c.h.b16 %v1566
      %v1984 = vunpack.c.l.b16 %v1567
      %v1985 = vunpack.c.h.b16 %v1567
      %v1986 = vunpack.c.l.b16 %v1568
      %v1987 = vunpack.c.h.b16 %v1568
      %v1988 = vunpack.c.l.b16 %v1569
      %v1989 = vunpack.c.h.b16 %v1569
      %v1990 = vunpack.c.l.b16 %v1570
      %v1991 = vunpack.c.h.b16 %v1570
      %v1992 = vunpack.c.l.b16 %v1571
      %v1993 = vunpack.c.h.b16 %v1571
      %v1994 = vunpack.c.l.b16 %v1572
      %v1995 = vunpack.c.h.b16 %v1572
      %v1996 = vunpack.c.l.b16 %v1573
      %v1997 = vunpack.c.h.b16 %v1573
      %v1998 = vunpack.c.l.b16 %v1574
      %v1999 = vunpack.c.h.b16 %v1574
      %v2000 = vunpack.c.l.b16 %v1575
      %v2001 = vunpack.c.h.b16 %v1575
      %v2002 = vunpack.c.l.b16 %v1576
      %v2003 = vunpack.c.h.b16 %v1576
      %v2004 = vunpack.c.l.b16 %v1577
      %v2005 = vunpack.c.h.b16 %v1577
      %v2006 = vunpack.c.l.b16 %v1578
      %v2007 = vunpack.c.h.b16 %v1578
      %v2008 = vunpack.c.l.b16 %v1579
      %v2009 = vunpack.c.h.b16 %v1579
      %v2010 = vunpack.c.l.b16 %v1580
      %v2011 = vunpack.c.h.b16 %v1580
      %v2012 = vunpack.c.l.b16 %v1581
      %v2013 = vunpack.c.h.b16 %v1581
      %v2014 = vunpack.c.l.b16 %v1582
      %v2015 = vunpack.c.h.b16 %v1582
      %v2016 = vunpack.c.l.b16 %v1583
      %v2017 = vunpack.c.h.b16 %v1583
      %v2018 = vunpack.c.l.b16 %v1584
      %v2019 = vunpack.c.h.b16 %v1584
      %v2020 = vunpack.c.l.b16 %v1585
      %v2021 = vunpack.c.h.b16 %v1585
      %v2022 = vunpack.c.l.b16 %v1586
      %v2023 = vunpack.c.h.b16 %v1586
      %v2024 = vunpack.c.l.b16 %v1587
      %v2025 = vunpack.c.h.b16 %v1587
      %v2026 = vunpack.c.l.b16 %v1588
      %v2027 = vunpack.c.h.b16 %v1588
      %v2028 = vunpack.c.l.b16 %v1589
      %v2029 = vunpack.c.h.b16 %v1589
      %v2030 = vunpack.c.l.b16 %v1590
      %v2031 = vunpack.c.h.b16 %v1590
      %v2032 = vunpack.c.l.b16 %v1591
      %v2033 = vunpack.c.h.b16 %v1591
      %v2034 = vunpack.c.l.b16 %v1592
      %v2035 = vunpack.c.h.b16 %v1592
      %v2036 = vunpack.c.l.b16 %v1593
      %v2037 = vunpack.c.h.b16 %v1593
      %v2038 = vunpack.c.l.b16 %v1594
      %v2039 = vunpack.c.h.b16 %v1594
      %v2040 = vunpack.c.l.b16 %v1595
      %v2041 = vunpack.c.h.b16 %v1595
      %v2042 = vunpack.c.l.b16 %v1596
      %v2043 = vunpack.c.h.b16 %v1596
      %v2044 = vunpack.c.l.b16 %v1597
      %v2045 = vunpack.c.h.b16 %v1597
      %v2046 = vunpack.c.l.b16 %v1598
      %v2047 = vunpack.c.h.b16 %v1598
      %v2048 = vunpack.c.l.b16 %v1599
      %v2049 = vunpack.c.h.b16 %v1599
      %v2050 = vunpack.c.l.b16 %v1600
      %v2051 = vunpack.c.h.b16 %v1600
      %v2052 = vunpack.c.l.b16 %v1601
      %v2053 = vunpack.c.h.b16 %v1601
      %v2054 = vunpack.c.l.b16 %v1602
      %v2055 = vunpack.c.h.b16 %v1602
      %v2056 = vunpack.c.l.b16 %v1603
      %v2057 = vunpack.c.h.b16 %v1603
      %v2058 = vunpack.c.l.b16 %v1604
      %v2059 = vunpack.c.h.b16 %v1604
      %v2060 = vunpack.c.l.b16 %v1605
      %v2061 = vunpack.c.h.b16 %v1605
      %v2062 = vunpack.c.l.b16 %v1606
      %v2063 = vunpack.c.h.b16 %v1606
      %v2064 = vunpack.c.l.b16 %v1607
      %v2065 = vunpack.c.h.b16 %v1607
      %v2066 = vunpack.c.l.b16 %v1608
      %v2067 = vunpack.c.h.b16 %v1608
      %v2068 = vunpack.c.l.b16 %v1609
      %v2069 = vunpack.c.h.b16 %v1609
      %v2070 = vunpack.c.l.b16 %v1610
      %v2071 = vunpack.c.h.b16 %v1610
      %v2072 = vunpack.c.l.b16 %v1611
      %v2073 = vunpack.c.h.b16 %v1611
      %v2074 = vunpack.c.l.b16 %v1612
      %v2075 = vunpack.c.h.b16 %v1612
      %v2076 = vunpack.c.l.b16 %v1613
      %v2077 = vunpack.c.h.b16 %v1613
      %v2078 = vunpack.c.l.b16 %v1614
      %v2079 = vunpack.c.h.b16 %v1614
      %v2080 = vunpack.c.l.b16 %v1615
      %v2081 = vunpack.c.h.b16 %v1615
      %v2082 = vunpack.c.l.b16 %v1616
      %v2083 = vunpack.c.h.b16 %v1616
      %v2084 = vunpack.c.l.b16 %v1617
      %v2085 = vunpack.c.h.b16 %v1617
      %v2086 = vunpack.c.l.b16 %v1618
      %v2087 = vunpack.c.h.b16 %v1618
      %v2088 = vunpack.c.l.b16 %v1619
      %v2089 = vunpack.c.h.b16 %v1619
      %v2090 = vunpack.c.l.b16 %v1620
      %v2091 = vunpack.c.h.b16 %v1620
      %v2092 = vunpack.c.l.b16 %v1621
      %v2093 = vunpack.c.h.b16 %v1621
      %v2094 = vunpack.c.l.b16 %v1622
      %v2095 = vunpack.c.h.b16 %v1622
      %v2096 = vunpack.c.l.b16 %v1623
      %v2097 = vunpack.c.h.b16 %v1623
      %v2098 = vunpack.c.l.b16 %v1624
      %v2099 = vunpack.c.h.b16 %v1624
      %v2100 = vunpack.c.l.b16 %v1625
      %v2101 = vunpack.c.h.b16 %v1625
      %v2102 = vunpack.c.l.b16 %v1626
      %v2103 = vunpack.c.h.b16 %v1626
      %v2104 = vunpack.c.l.b16 %v1627
      %v2105 = vunpack.c.h.b16 %v1627
      %v2106 = vunpack.c.l.b16 %v1628
      %v2107 = vunpack.c.h.b16 %v1628
      %v2108 = vunpack.c.l.b16 %v1629
      %v2109 = vunpack.c.h.b16 %v1629
      %v2110 = vunpack.c.l.b16 %v1630
      %v2111 = vunpack.c.h.b16 %v1630
      %v2112 = vunpack.c.l.b16 %v1631
      %v2113 = vunpack.c.h.b16 %v1631
      %v2114 = vunpack.c.l.b16 %v1632
      %v2115 = vunpack.c.h.b16 %v1632
      %v2116 = vunpack.c.l.b16 %v1633
      %v2117 = vunpack.c.h.b16 %v1633
      %v2118 = vunpack.c.l.b16 %v1634
      %v2119 = vunpack.c.h.b16 %v1634
      %v2120 = vunpack.c.l.b16 %v1635
      %v2121 = vunpack.c.h.b16 %v1635
      %v2122 = vunpack.c.l.b16 %v1636
      %v2123 = vunpack.c.h.b16 %v1636
      %v2124 = vunpack.c.l.b16 %v1637
      %v2125 = vunpack.c.h.b16 %v1637
      %v2126 = vunpack.c.l.b16 %v1638
      %v2127 = vunpack.c.h.b16 %v1638
      %v2128 = vunpack.c.l.b16 %v1639
      %v2129 = vunpack.c.h.b16 %v1639
      %v2130 = vunpack.c.l.b16 %v1640
      %v2131 = vunpack.c.h.b16 %v1640
      %v2132 = vunpack.c.l.b16 %v1641
      %v2133 = vunpack.c.h.b16 %v1641
      %v2134 = vunpack.c.l.b16 %v1642
      %v2135 = vunpack.c.h.b16 %v1642
      %v2136 = vunpack.c.l.b16 %v1643
      %v2137 = vunpack.c.h.b16 %v1643
      %v2138 = vunpack.c.l.b16 %v1644
      %v2139 = vunpack.c.h.b16 %v1644
      %v2140 = vunpack.c.l.b16 %v1645
      %v2141 = vunpack.c.h.b16 %v1645
      %v2142 = vunpack.c.l.b16 %v1646
      %v2143 = vunpack.c.h.b16 %v1646
      %v2144 = vunpack.c.l.b16 %v1647
      %v2145 = vunpack.c.h.b16 %v1647
      %v2146 = vunpack.c.l.b16 %v1648
      %v2147 = vunpack.c.h.b16 %v1648
      %v2148 = vunpack.c.l.b16 %v1649
      %v2149 = vunpack.c.h.b16 %v1649
      %v2150 = vunpack.c.l.b16 %v1650
      %v2151 = vunpack.c.h.b16 %v1650
      %v2152 = vunpack.c.l.b16 %v1651
      %v2153 = vunpack.c.h.b16 %v1651
      %v2154 = vunpack.c.l.b16 %v1652
      %v2155 = vunpack.c.h.b16 %v1652
      %v2156 = vunpack.c.l.b16 %v1653
      %v2157 = vunpack.c.h.b16 %v1653
      %v2158 = vunpack.c.l.b16 %v1654
      %v2159 = vunpack.c.h.b16 %v1654
      %v2160 = vunpack.c.l.b16 %v1655
      %v2161 = vunpack.c.h.b16 %v1655
      %v2162 = vunpack.c.l.b16 %v1656
      %v2163 = vunpack.c.h.b16 %v1656
      %v2164 = vunpack.c.l.b16 %v1657
      %v2165 = vunpack.c.h.b16 %v1657
      %v2166 = vunpack.c.l.b16 %v1658
      %v2167 = vunpack.c.h.b16 %v1658
      %v2168 = vunpack.c.l.b16 %v1659
      %v2169 = vunpack.c.h.b16 %v1659
      %v2170 = vunpack.c.l.b16 %v1660
      %v2171 = vunpack.c.h.b16 %v1660
      %v2172 = vunpack.c.l.b16 %v1661
      %v2173 = vunpack.c.h.b16 %v1661
      %v2174 = vunpack.c.l.b16 %v1662
      %v2175 = vunpack.c.h.b16 %v1662
      %v2176 = vunpack.c.l.b16 %v1663
      %v2177 = vunpack.c.h.b16 %v1663
      %v2178 = vunpack.c.l.b16 %v1664
      %v2179 = vunpack.c.h.b16 %v1664
      %v2180 = vunpack.c.l.b16 %v1665
      %v2181 = vunpack.c.h.b16 %v1665
      %v2182 = vunpack.c.l.b16 %v1666
      %v2183 = vunpack.c.h.b16 %v1666
      %v2184 = vunpack.c.l.b16 %v1667
      %v2185 = vunpack.c.h.b16 %v1667
      %v2186 = vunpack.c.l.b16 %v1668
      %v2187 = vunpack.c.h.b16 %v1668
      %v2188 = vunpack.c.l.b16 %v1669
      %v2189 = vunpack.c.h.b16 %v1669
      %v2190 = vunpack.c.l.b16 %v1670
      %v2191 = vunpack.c.h.b16 %v1670
      %v2192 = vunpack.c.l.b16 %v1671
      %v2193 = vunpack.c.h.b16 %v1671
      %v2194 = vunpack.c.l.b16 %v1672
      %v2195 = vunpack.c.h.b16 %v1672
      %v2196 = vunpack.c.l.b16 %v1673
      %v2197 = vunpack.c.h.b16 %v1673
      %v2198 = vunpack.c.l.b16 %v1674
      %v2199 = vunpack.c.h.b16 %v1674
      %v2200 = vunpack.c.l.b16 %v1675
      %v2201 = vunpack.c.h.b16 %v1675
      %v2202 = vunpack.c.l.b16 %v1676
      %v2203 = vunpack.c.h.b16 %v1676
      %v2204 = vunpack.c.l.b16 %v1677
      %v2205 = vunpack.c.h.b16 %v1677
      %v2206 = vunpack.c.l.b16 %v1678
      %v2207 = vunpack.c.h.b16 %v1678
      %v2208 = vunpack.c.l.b16 %v1679
      %v2209 = vunpack.c.h.b16 %v1679
      %v2210 = vunpack.c.l.b16 %v1680
      %v2211 = vunpack.c.h.b16 %v1680
      %v2212 = vunpack.c.l.b16 %v1681
      %v2213 = vunpack.c.h.b16 %v1681
      %v2214 = vunpack.c.l.b16 %v1682
      %v2215 = vunpack.c.h.b16 %v1682
      %v2216 = vunpack.c.l.b16 %v1683
      %v2217 = vunpack.c.h.b16 %v1683
      %v2218 = vpack.c.b16 %v1908, %v1898
      %v2219 = vpack.c.b16 %v1909, %v1899
      %v2220 = vpack.c.b16 %v1910, %v1900
      %v2221 = vpack.c.b16 %v1911, %v1901
      %v2222 = vpack.c.b16 %v1912, %v1902
      %v2223 = vpack.c.b16 %v1913, %v1903
      %v2224 = vpack.c.b16 %v1914, %v1904
      %v2225 = vpack.c.b16 %v1915, %v1905
      %v2226 = vpack.c.b16 %v1916, %v1906
      %v2227 = vpack.c.b16 %v1917, %v1907
      %v2228 = vpack.c.b16 %v1928, %v1918
      %v2229 = vpack.c.b16 %v1929, %v1919
      %v2230 = vpack.c.b16 %v1930, %v1920
      %v2231 = vpack.c.b16 %v1931, %v1921
      %v2232 = vpack.c.b16 %v1932, %v1922
      %v2233 = vpack.c.b16 %v1933, %v1923
      %v2234 = vpack.c.b16 %v1934, %v1924
      %v2235 = vpack.c.b16 %v1935, %v1925
      %v2236 = vpack.c.b16 %v1936, %v1926
      %v2237 = vpack.c.b16 %v1937, %v1927
      %v2238 = vpack.c.b16 %v1948, %v1938
      %v2239 = vpack.c.b16 %v1949, %v1939
      %v2240 = vpack.c.b16 %v1950, %v1940
      %v2241 = vpack.c.b16 %v1951, %v1941
      %v2242 = vpack.c.b16 %v1952, %v1942
      %v2243 = vpack.c.b16 %v1953, %v1943
      %v2244 = vpack.c.b16 %v1954, %v1944
      %v2245 = vpack.c.b16 %v1955, %v1945
      %v2246 = vpack.c.b16 %v1956, %v1946
      %v2247 = vpack.c.b16 %v1957, %v1947
      %v2248 = vpack.c.b16 %v1968, %v1958
      %v2249 = vpack.c.b16 %v1969, %v1959
      %v2250 = vpack.c.b16 %v1970, %v1960
      %v2251 = vpack.c.b16 %v1971, %v1961
      %v2252 = vpack.c.b16 %v1972, %v1962
      %v2253 = vpack.c.b16 %v1973, %v1963
      %v2254 = vpack.c.b16 %v1974, %v1964
      %v2255 = vpack.c.b16 %v1975, %v1965
      %v2256 = vpack.c.b16 %v1976, %v1966
      %v2257 = vpack.c.b16 %v1977, %v1967
      %v2258 = vpack.c.b16 %v1988, %v1978
      %v2259 = vpack.c.b16 %v1989, %v1979
      %v2260 = vpack.c.b16 %v1990, %v1980
      %v2261 = vpack.c.b16 %v1991, %v1981
      %v2262 = vpack.c.b16 %v1992, %v1982
      %v2263 = vpack.c.b16 %v1993, %v1983
      %v2264 = vpack.c.b16 %v1994, %v1984
      %v2265 = vpack.c.b16 %v1995, %v1985
      %v2266 = vpack.c.b16 %v1996, %v1986
      %v2267 = vpack.c.b16 %v1997, %v1987
      %v2268 = vpack.c.b16 %v2008, %v1998
      %v2269 = vpack.c.b16 %v2009, %v1999
      %v2270 = vpack.c.b16 %v2010, %v2000
      %v2271 = vpack.c.b16 %v2011, %v2001
      %v2272 = vpack.c.b16 %v2012, %v2002
      %v2273 = vpack.c.b16 %v2013, %v2003
      %v2274 = vpack.c.b16 %v2014, %v2004
      %v2275 = vpack.c.b16 %v2015, %v2005
      %v2276 = vpack.c.b16 %v2016, %v2006
      %v2277 = vpack.c.b16 %v2017, %v2007
      %v2278 = vpack.c.b16 %v2028, %v2018
      %v2279 = vpack.c.b16 %v2029, %v2019
      %v2280 = vpack.c.b16 %v2030, %v2020
      %v2281 = vpack.c.b16 %v2031, %v2021
      %v2282 = vpack.c.b16 %v2032, %v2022
      %v2283 = vpack.c.b16 %v2033, %v2023
      %v2284 = vpack.c.b16 %v2034, %v2024
      %v2285 = vpack.c.b16 %v2035, %v2025
      %v2286 = vpack.c.b16 %v2036, %v2026
      %v2287 = vpack.c.b16 %v2037, %v2027
      %v2288 = vpack.c.b16 %v2048, %v2038
      %v2289 = vpack.c.b16 %v2049, %v2039
      %v2290 = vpack.c.b16 %v2050, %v2040
      %v2291 = vpack.c.b16 %v2051, %v2041
      %v2292 = vpack.c.b16 %v2052, %v2042
      %v2293 = vpack.c.b16 %v2053, %v2043
      %v2294 = vpack.c.b16 %v2054, %v2044
      %v2295 = vpack.c.b16 %v2055, %v2045
      %v2296 = vpack.c.b16 %v2056, %v2046
      %v2297 = vpack.c.b16 %v2057, %v2047
      %v2298 = vpack.c.b16 %v2068, %v2058
      %v2299 = vpack.c.b16 %v2069, %v2059
      %v2300 = vpack.c.b16 %v2070, %v2060
      %v2301 = vpack.c.b16 %v2071, %v2061
      %v2302 = vpack.c.b16 %v2072, %v2062
      %v2303 = vpack.c.b16 %v2073, %v2063
      %v2304 = vpack.c.b16 %v2074, %v2064
      %v2305 = vpack.c.b16 %v2075, %v2065
      %v2306 = vpack.c.b16 %v2076, %v2066
      %v2307 = vpack.c.b16 %v2077, %v2067
      %v2308 = vpack.c.b16 %v2088, %v2078
      %v2309 = vpack.c.b16 %v2089, %v2079
      %v2310 = vpack.c.b16 %v2090, %v2080
      %v2311 = vpack.c.b16 %v2091, %v2081
      %v2312 = vpack.c.b16 %v2092, %v2082
      %v2313 = vpack.c.b16 %v2093, %v2083
      %v2314 = vpack.c.b16 %v2094, %v2084
      %v2315 = vpack.c.b16 %v2095, %v2085
      %v2316 = vpack.c.b16 %v2096, %v2086
      %v2317 = vpack.c.b16 %v2097, %v2087
      %v2318 = vpack.c.b16 %v2108, %v2098
      %v2319 = vpack.c.b16 %v2109, %v2099
      %v2320 = vpack.c.b16 %v2110, %v2100
      %v2321 = vpack.c.b16 %v2111, %v2101
      %v2322 = vpack.c.b16 %v2112, %v2102
      %v2323 = vpack.c.b16 %v2113, %v2103
      %v2324 = vpack.c.b16 %v2114, %v2104
      %v2325 = vpack.c.b16 %v2115, %v2105
      %v2326 = vpack.c.b16 %v2116, %v2106
      %v2327 = vpack.c.b16 %v2117, %v2107
      %v2328 = vpack.c.b16 %v2128, %v2118
      %v2329 = vpack.c.b16 %v2129, %v2119
      %v2330 = vpack.c.b16 %v2130, %v2120
      %v2331 = vpack.c.b16 %v2131, %v2121
      %v2332 = vpack.c.b16 %v2132, %v2122
      %v2333 = vpack.c.b16 %v2133, %v2123
      %v2334 = vpack.c.b16 %v2134, %v2124
      %v2335 = vpack.c.b16 %v2135, %v2125
      %v2336 = vpack.c.b16 %v2136, %v2126
      %v2337 = vpack.c.b16 %v2137, %v2127
      %v2338 = vpack.c.b16 %v2148, %v2138
      %v2339 = vpack.c.b16 %v2149, %v2139
      %v2340 = vpack.c.b16 %v2150, %v2140
      %v2341 = vpack.c.b16 %v2151, %v2141
      %v2342 = vpack.c.b16 %v2152, %v2142
      %v2343 = vpack.c.b16 %v2153, %v2143
      %v2344 = vpack.c.b16 %v2154, %v2144
      %v2345 = vpack.c.b16 %v2155, %v2145
      %v2346 = vpack.c.b16 %v2156, %v2146
      %v2347 = vpack.c.b16 %v2157, %v2147
      %v2348 = vpack.c.b16 %v2168, %v2158
      %v2349 = vpack.c.b16 %v2169, %v2159
      %v2350 = vpack.c.b16 %v2170, %v2160
      %v2351 = vpack.c.b16 %v2171, %v2161
      %v2352 = vpack.c.b16 %v2172, %v2162
      %v2353 = vpack.c.b16 %v2173, %v2163
      %v2354 = vpack.c.b16 %v2174, %v2164
      %v2355 = vpack.c.b16 %v2175, %v2165
      %v2356 = vpack.c.b16 %v2176, %v2166
      %v2357 = vpack.c.b16 %v2177, %v2167
      %v2358 = vpack.c.b16 %v2188, %v2178
      %v2359 = vpack.c.b16 %v2189, %v2179
      %v2360 = vpack.c.b16 %v2190, %v2180
      %v2361 = vpack.c.b16 %v2191, %v2181
      %v2362 = vpack.c.b16 %v2192, %v2182
      %v2363 = vpack.c.b16 %v2193, %v2183
      %v2364 = vpack.c.b16 %v2194, %v2184
      %v2365 = vpack.c.b16 %v2195, %v2185
      %v2366 = vpack.c.b16 %v2196, %v2186
      %v2367 = vpack.c.b16 %v2197, %v2187
      %v2368 = vpack.c.b16 %v2208, %v2198
      %v2369 = vpack.c.b16 %v2209, %v2199
      %v2370 = vpack.c.b16 %v2210, %v2200
      %v2371 = vpack.c.b16 %v2211, %v2201
      %v2372 = vpack.c.b16 %v2212, %v2202
      %v2373 = vpack.c.b16 %v2213, %v2203
      %v2374 = vpack.c.b16 %v2214, %v2204
      %v2375 = vpack.c.b16 %v2215, %v2205
      %v2376 = vpack.c.b16 %v2216, %v2206
      %v2377 = vpack.c.b16 %v2217, %v2207
      %2538 = vmatprep.subr.bf16.mxu0 %v2219
      %2539 = vmatpush1.bf16.msra.mxu0 %v2218
      %2540 = vmatprep.subr.bf16.mxu0 %v2229
      %2541 = vmatpush1.bf16.msra.mxu0 %v2228
      %2542 = vmatprep.subr.bf16.mxu0 %v2239
      %2543 = vmatpush1.bf16.msra.mxu0 %v2238
      %2544 = vmatprep.subr.bf16.mxu0 %v2249
      %2545 = vmatpush1.bf16.msra.mxu0 %v2248
      %2546 = vmatprep.subr.bf16.mxu0 %v2259
      %2547 = vmatpush1.bf16.msra.mxu0 %v2258
      %2548 = vmatprep.subr.bf16.mxu0 %v2269
      %2549 = vmatpush1.bf16.msra.mxu0 %v2268
      %2550 = vmatprep.subr.bf16.mxu0 %v2279
      %2551 = vmatpush1.bf16.msra.mxu0 %v2278
      %2552 = vmatprep.subr.bf16.mxu0 %v2289
      %2553 = vmatpush1.bf16.msra.mxu0 %v2288
      %2554 = vmatprep.subr.bf16.mxu0 %v2299
      %2555 = vmatpush1.bf16.msra.mxu0 %v2298
      %2556 = vmatprep.subr.bf16.mxu0 %v2309
      %2557 = vmatpush1.bf16.msra.mxu0 %v2308
      %2558 = vmatprep.subr.bf16.mxu0 %v2319
      %2559 = vmatpush1.bf16.msra.mxu0 %v2318
      %2560 = vmatprep.subr.bf16.mxu0 %v2329
      %2561 = vmatpush1.bf16.msra.mxu0 %v2328
      %2562 = vmatprep.subr.bf16.mxu0 %v2339
      %2563 = vmatpush1.bf16.msra.mxu0 %v2338
      %2564 = vmatprep.subr.bf16.mxu0 %v2349
      %2565 = vmatpush1.bf16.msra.mxu0 %v2348
      %2566 = vmatprep.subr.bf16.mxu0 %v2359
      %2567 = vmatpush1.bf16.msra.mxu0 %v2358
      %2568 = vmatprep.subr.bf16.mxu0 %v2369
      %2569 = vmatpush1.bf16.msra.mxu0 %v2368
      %2570 = vmatprep.mubr.bf16.mxu0 %v1493
      %2571 = vmatmul.mubr.bf16.gmra.mrb[0].mxu0 %v1492
      %v2572 = vpop.f32.mrb[0].mxu0
      %v2573 = vadd.f32 %v1691, %v2572
      %v2574 = vpop.f32.mrb[0].mxu0
      %v2575 = vadd.f32 %v1695, %v2574
      %v2576 = vpop.f32.mrb[0].mxu0
      %v2577 = vadd.f32 %v1691, %v2576
      %v2578 = vpop.f32.mrb[0].mxu0
      %v2579 = vadd.f32 %v1695, %v2578
      %2580 = vmatprep.mubr.bf16.mxu0 %v1495
      %2581 = vmatmul.mubr.bf16.gmra.mrb[0].mxu0 %v1494
      %v2582 = vpop.f32.mrb[0].mxu0
      %v2583 = vadd.f32 %v1691, %v2582
      %v2584 = vpop.f32.mrb[0].mxu0
      %v2585 = vadd.f32 %v1695, %v2584
      %v2586 = vpop.f32.mrb[0].mxu0
      %v2587 = vadd.f32 %v1691, %v2586
      %v2588 = vpop.f32.mrb[0].mxu0
      %v2589 = vadd.f32 %v1695, %v2588
      %2590 = vmatprep.mubr.bf16.mxu0 %v1497
      %2591 = vmatmul.mubr.bf16.gmra.mrb[0].mxu0 %v1496
      %v2592 = vpop.f32.mrb[0].mxu0
      %v2593 = vadd.f32 %v1691, %v2592
      %v2594 = vpop.f32.mrb[0].mxu0
      %v2595 = vadd.f32 %v1695, %v2594
      %v2596 = vpop.f32.mrb[0].mxu0
      %v2597 = vadd.f32 %v1691, %v2596
      %v2598 = vpop.f32.mrb[0].mxu0
      %v2599 = vadd.f32 %v1695, %v2598
      %2600 = vmatprep.mubr.bf16.mxu0 %v1499
      %2601 = vmatmul.mubr.bf16.gmra.mrb[0].mxu0 %v1498
      %v2602 = vpop.f32.mrb[0].mxu0
      %v2603 = vadd.f32 %v1691, %v2602
      %v2604 = vpop.f32.mrb[0].mxu0
      %v2605 = vadd.f32 %v1695, %v2604
      %v2606 = vpop.f32.mrb[0].mxu0
      %v2607 = vadd.f32 %v1691, %v2606
      %v2608 = vpop.f32.mrb[0].mxu0
      %v2609 = vadd.f32 %v1695, %v2608
      %2610 = vmatprep.mubr.bf16.mxu0 %v1501
      %2611 = vmatmul.mubr.bf16.gmra.mrb[0].mxu0 %v1500
      %v2612 = vpop.f32.mrb[0].mxu0
      %v2613 = vadd.f32 %v1691, %v2612
      %v2614 = vpop.f32.mrb[0].mxu0
      %v2615 = vadd.f32 %v1695, %v2614
      %v2616 = vpop.f32.mrb[0].mxu0
      %v2617 = vadd.f32 %v1691, %v2616
      %v2618 = vpop.f32.mrb[0].mxu0
      %v2619 = vadd.f32 %v1695, %v2618
      %2620 = vmatprep.mubr.bf16.mxu0 %v1503
      %2621 = vmatmul.mubr.bf16.gmra.mrb[0].mxu0 %v1502
      %v2622 = vpop.f32.mrb[0].mxu0
      %v2623 = vadd.f32 %v1691, %v2622
      %v2624 = vpop.f32.mrb[0].mxu0
      %v2625 = vadd.f32 %v1695, %v2624
      %v2626 = vpop.f32.mrb[0].mxu0
      %v2627 = vadd.f32 %v1691, %v2626
      %v2628 = vpop.f32.mrb[0].mxu0
      %v2629 = vadd.f32 %v1695, %v2628
      %2630 = vmatprep.mubr.bf16.mxu0 %v1505
      %2631 = vmatmul.mubr.bf16.gmra.mrb[0].mxu0 %v1504
      %v2632 = vpop.f32.mrb[0].mxu0
      %v2633 = vadd.f32 %v1691, %v2632
      %v2634 = vpop.f32.mrb[0].mxu0
      %v2635 = vadd.f32 %v1695, %v2634
      %v2636 = vpop.f32.mrb[0].mxu0
      %v2637 = vadd.f32 %v1691, %v2636
      %v2638 = vpop.f32.mrb[0].mxu0
      %v2639 = vadd.f32 %v1695, %v2638
      %2640 = vmatprep.mubr.bf16.mxu0 %v1507
      %2641 = vmatmul.mubr.bf16.gmra.mrb[0].mxu0 %v1506
      %v2642 = vpop.f32.mrb[0].mxu0
      %v2643 = vadd.f32 %v1691, %v2642
      %v2644 = vpop.f32.mrb[0].mxu0
      %v2645 = vadd.f32 %v1695, %v2644
      %v2646 = vpop.f32.mrb[0].mxu0
      %v2647 = vadd.f32 %v1691, %v2646
      %v2648 = vpop.f32.mrb[0].mxu0
      %v2649 = vadd.f32 %v1695, %v2648
      %2650 = vmatprep.mubr.bf16.mxu0 %v1509
      %2651 = vmatmul.mubr.bf16.gmra.mrb[0].mxu0 %v1508
      %v2652 = vpop.f32.mrb[0].mxu0
      %v2653 = vadd.f32 %v1691, %v2652
      %v2654 = vpop.f32.mrb[0].mxu0
      %v2655 = vadd.f32 %v1695, %v2654
      %v2656 = vpop.f32.mrb[0].mxu0
      %v2657 = vadd.f32 %v1691, %v2656
      %v2658 = vpop.f32.mrb[0].mxu0
      %v2659 = vadd.f32 %v1695, %v2658
      %2660 = vmatprep.mubr.bf16.mxu0 %v1511
      %2661 = vmatmul.mubr.bf16.gmra.mrb[0].mxu0 %v1510
      %v2662 = vpop.f32.mrb[0].mxu0
      %v2663 = vadd.f32 %v1691, %v2662
      %v2664 = vpop.f32.mrb[0].mxu0
      %v2665 = vadd.f32 %v1695, %v2664
      %v2666 = vpop.f32.mrb[0].mxu0
      %v2667 = vadd.f32 %v1691, %v2666
      %v2668 = vpop.f32.mrb[0].mxu0
      %v2669 = vadd.f32 %v1695, %v2668
      %2670 = vmatprep.mubr.bf16.mxu0 %v1513
      %2671 = vmatmul.mubr.bf16.gmra.mrb[0].mxu0 %v1512
      %v2672 = vpop.f32.mrb[0].mxu0
      %v2673 = vadd.f32 %v1691, %v2672
      %v2674 = vpop.f32.mrb[0].mxu0
      %v2675 = vadd.f32 %v1695, %v2674
      %v2676 = vpop.f32.mrb[0].mxu0
      %v2677 = vadd.f32 %v1691, %v2676
      %v2678 = vpop.f32.mrb[0].mxu0
      %v2679 = vadd.f32 %v1695, %v2678
      %2680 = vmatprep.mubr.bf16.mxu0 %v1515
      %2681 = vmatmul.mubr.bf16.gmra.mrb[0].mxu0 %v1514
      %v2682 = vpop.f32.mrb[0].mxu0
      %v2683 = vadd.f32 %v1691, %v2682
      %v2684 = vpop.f32.mrb[0].mxu0
      %v2685 = vadd.f32 %v1695, %v2684
      %v2686 = vpop.f32.mrb[0].mxu0
      %v2687 = vadd.f32 %v1691, %v2686
      %v2688 = vpop.f32.mrb[0].mxu0
      %v2689 = vadd.f32 %v1695, %v2688
      %2690 = vmatprep.mubr.bf16.mxu0 %v1517
      %2691 = vmatmul.mubr.bf16.gmra.mrb[0].mxu0 %v1516
      %v2692 = vpop.f32.mrb[0].mxu0
      %v2693 = vadd.f32 %v1691, %v2692
      %v2694 = vpop.f32.mrb[0].mxu0
      %v2695 = vadd.f32 %v1695, %v2694
      %v2696 = vpop.f32.mrb[0].mxu0
      %v2697 = vadd.f32 %v1691, %v2696
      %v2698 = vpop.f32.mrb[0].mxu0
      %v2699 = vadd.f32 %v1695, %v2698
      %2700 = vmatprep.mubr.bf16.mxu0 %v1519
      %2701 = vmatmul.mubr.bf16.gmra.mrb[0].mxu0 %v1518
      %v2702 = vpop.f32.mrb[0].mxu0
      %v2703 = vadd.f32 %v1691, %v2702
      %v2704 = vpop.f32.mrb[0].mxu0
      %v2705 = vadd.f32 %v1695, %v2704
      %v2706 = vpop.f32.mrb[0].mxu0
      %v2707 = vadd.f32 %v1691, %v2706
      %v2708 = vpop.f32.mrb[0].mxu0
      %v2709 = vadd.f32 %v1695, %v2708
      %2710 = vmatprep.mubr.bf16.mxu0 %v1521
      %2711 = vmatmul.mubr.bf16.gmra.mrb[0].mxu0 %v1520
      %v2712 = vpop.f32.mrb[0].mxu0
      %v2713 = vadd.f32 %v1691, %v2712
      %v2714 = vpop.f32.mrb[0].mxu0
      %v2715 = vadd.f32 %v1695, %v2714
      %v2716 = vpop.f32.mrb[0].mxu0
      %v2717 = vadd.f32 %v1691, %v2716
      %v2718 = vpop.f32.mrb[0].mxu0
      %v2719 = vadd.f32 %v1695, %v2718
      %2720 = vmatprep.mubr.bf16.mxu0 %v1523
      %2721 = vmatmul.mubr.bf16.gmra.mrb[0].mxu0 %v1522
      %v2722 = vpop.f32.mrb[0].mxu0
      %v2723 = vadd.f32 %v1691, %v2722
      %v2724 = vpop.f32.mrb[0].mxu0
      %v2725 = vadd.f32 %v1695, %v2724
      %v2726 = vpop.f32.mrb[0].mxu0
      %v2727 = vadd.f32 %v1691, %v2726
      %v2728 = vpop.f32.mrb[0].mxu0
      %v2729 = vadd.f32 %v1695, %v2728
      %2730 = vdwg.mxu0
      %2731 = vmatprep.subr.bf16.mxu0 %v2221
      %2732 = vmatpush1.bf16.msra.mxu0 %v2220
      %2733 = vmatprep.subr.bf16.mxu0 %v2231
      %2734 = vmatpush1.bf16.msra.mxu0 %v2230
      %2735 = vmatprep.subr.bf16.mxu0 %v2241
      %2736 = vmatpush1.bf16.msra.mxu0 %v2240
      %2737 = vmatprep.subr.bf16.mxu0 %v2251
      %2738 = vmatpush1.bf16.msra.mxu0 %v2250
      %2739 = vmatprep.subr.bf16.mxu0 %v2261
      %2740 = vmatpush1.bf16.msra.mxu0 %v2260
      %2741 = vmatprep.subr.bf16.mxu0 %v2271
      %2742 = vmatpush1.bf16.msra.mxu0 %v2270
      %2743 = vmatprep.subr.bf16.mxu0 %v2281
      %2744 = vmatpush1.bf16.msra.mxu0 %v2280
      %2745 = vmatprep.subr.bf16.mxu0 %v2291
      %2746 = vmatpush1.bf16.msra.mxu0 %v2290
      %2747 = vmatprep.subr.bf16.mxu0 %v2301
      %2748 = vmatpush1.bf16.msra.mxu0 %v2300
      %2749 = vmatprep.subr.bf16.mxu0 %v2311
      %2750 = vmatpush1.bf16.msra.mxu0 %v2310
      %2751 = vmatprep.subr.bf16.mxu0 %v2321
      %2752 = vmatpush1.bf16.msra.mxu0 %v2320
      %2753 = vmatprep.subr.bf16.mxu0 %v2331
      %2754 = vmatpush1.bf16.msra.mxu0 %v2330
      %2755 = vmatprep.subr.bf16.mxu0 %v2341
      %2756 = vmatpush1.bf16.msra.mxu0 %v2340
      %2757 = vmatprep.subr.bf16.mxu0 %v2351
      %2758 = vmatpush1.bf16.msra.mxu0 %v2350
      %2759 = vmatprep.subr.bf16.mxu0 %v2361
      %2760 = vmatpush1.bf16.msra.mxu0 %v2360
      %2761 = vmatprep.subr.bf16.mxu0 %v2371
      %2762 = vmatpush1.bf16.msra.mxu0 %v2370
      %2763 = vmatprep.mubr.bf16.mxu0 %v1493
      %2764 = vmatmul.mubr.bf16.gmra.mrb[0].mxu0 %v1492
      %v2765 = vpop.f32.mrb[0].mxu0
      %v2766 = vadd.f32 %v1699, %v2765
      %v2767 = vpop.f32.mrb[0].mxu0
      %v2768 = vadd.f32 %v1703, %v2767
      %v2769 = vpop.f32.mrb[0].mxu0
      %v2770 = vadd.f32 %v1699, %v2769
      %v2771 = vpop.f32.mrb[0].mxu0
      %v2772 = vadd.f32 %v1703, %v2771
      %2773 = vmatprep.mubr.bf16.mxu0 %v1495
      %2774 = vmatmul.mubr.bf16.gmra.mrb[0].mxu0 %v1494
      %v2775 = vpop.f32.mrb[0].mxu0
      %v2776 = vadd.f32 %v1699, %v2775
      %v2777 = vpop.f32.mrb[0].mxu0
      %v2778 = vadd.f32 %v1703, %v2777
      %v2779 = vpop.f32.mrb[0].mxu0
      %v2780 = vadd.f32 %v1699, %v2779
      %v2781 = vpop.f32.mrb[0].mxu0
      %v2782 = vadd.f32 %v1703, %v2781
      %2783 = vmatprep.mubr.bf16.mxu0 %v1497
      %2784 = vmatmul.mubr.bf16.gmra.mrb[0].mxu0 %v1496
      %v2785 = vpop.f32.mrb[0].mxu0
      %v2786 = vadd.f32 %v1699, %v2785
      %v2787 = vpop.f32.mrb[0].mxu0
      %v2788 = vadd.f32 %v1703, %v2787
      %v2789 = vpop.f32.mrb[0].mxu0
      %v2790 = vadd.f32 %v1699, %v2789
      %v2791 = vpop.f32.mrb[0].mxu0
      %v2792 = vadd.f32 %v1703, %v2791
      %2793 = vmatprep.mubr.bf16.mxu0 %v1499
      %2794 = vmatmul.mubr.bf16.gmra.mrb[0].mxu0 %v1498
      %v2795 = vpop.f32.mrb[0].mxu0
      %v2796 = vadd.f32 %v1699, %v2795
      %v2797 = vpop.f32.mrb[0].mxu0
      %v2798 = vadd.f32 %v1703, %v2797
      %v2799 = vpop.f32.mrb[0].mxu0
      %v2800 = vadd.f32 %v1699, %v2799
      %v2801 = vpop.f32.mrb[0].mxu0
      %v2802 = vadd.f32 %v1703, %v2801
      %2803 = vmatprep.mubr.bf16.mxu0 %v1501
      %2804 = vmatmul.mubr.bf16.gmra.mrb[0].mxu0 %v1500
      %v2805 = vpop.f32.mrb[0].mxu0
      %v2806 = vadd.f32 %v1699, %v2805
      %v2807 = vpop.f32.mrb[0].mxu0
      %v2808 = vadd.f32 %v1703, %v2807
      %v2809 = vpop.f32.mrb[0].mxu0
      %v2810 = vadd.f32 %v1699, %v2809
      %v2811 = vpop.f32.mrb[0].mxu0
      %v2812 = vadd.f32 %v1703, %v2811
      %2813 = vmatprep.mubr.bf16.mxu0 %v1503
      %2814 = vmatmul.mubr.bf16.gmra.mrb[0].mxu0 %v1502
      %v2815 = vpop.f32.mrb[0].mxu0
      %v2816 = vadd.f32 %v1699, %v2815
      %v2817 = vpop.f32.mrb[0].mxu0
      %v2818 = vadd.f32 %v1703, %v2817
      %v2819 = vpop.f32.mrb[0].mxu0
      %v2820 = vadd.f32 %v1699, %v2819
      %v2821 = vpop.f32.mrb[0].mxu0
      %v2822 = vadd.f32 %v1703, %v2821
      %2823 = vmatprep.mubr.bf16.mxu0 %v1505
      %2824 = vmatmul.mubr.bf16.gmra.mrb[0].mxu0 %v1504
      %v2825 = vpop.f32.mrb[0].mxu0
      %v2826 = vadd.f32 %v1699, %v2825
      %v2827 = vpop.f32.mrb[0].mxu0
      %v2828 = vadd.f32 %v1703, %v2827
      %v2829 = vpop.f32.mrb[0].mxu0
      %v2830 = vadd.f32 %v1699, %v2829
      %v2831 = vpop.f32.mrb[0].mxu0
      %v2832 = vadd.f32 %v1703, %v2831
      %2833 = vmatprep.mubr.bf16.mxu0 %v1507
      %2834 = vmatmul.mubr.bf16.gmra.mrb[0].mxu0 %v1506
      %v2835 = vpop.f32.mrb[0].mxu0
      %v2836 = vadd.f32 %v1699, %v2835
      %v2837 = vpop.f32.mrb[0].mxu0
      %v2838 = vadd.f32 %v1703, %v2837
      %v2839 = vpop.f32.mrb[0].mxu0
      %v2840 = vadd.f32 %v1699, %v2839
      %v2841 = vpop.f32.mrb[0].mxu0
      %v2842 = vadd.f32 %v1703, %v2841
      %2843 = vmatprep.mubr.bf16.mxu0 %v1509
      %2844 = vmatmul.mubr.bf16.gmra.mrb[0].mxu0 %v1508
      %v2845 = vpop.f32.mrb[0].mxu0
      %v2846 = vadd.f32 %v1699, %v2845
      %v2847 = vpop.f32.mrb[0].mxu0
      %v2848 = vadd.f32 %v1703, %v2847
      %v2849 = vpop.f32.mrb[0].mxu0
      %v2850 = vadd.f32 %v1699, %v2849
      %v2851 = vpop.f32.mrb[0].mxu0
      %v2852 = vadd.f32 %v1703, %v2851
      %2853 = vmatprep.mubr.bf16.mxu0 %v1511
      %2854 = vmatmul.mubr.bf16.gmra.mrb[0].mxu0 %v1510
      %v2855 = vpop.f32.mrb[0].mxu0
      %v2856 = vadd.f32 %v1699, %v2855
      %v2857 = vpop.f32.mrb[0].mxu0
      %v2858 = vadd.f32 %v1703, %v2857
      %v2859 = vpop.f32.mrb[0].mxu0
      %v2860 = vadd.f32 %v1699, %v2859
      %v2861 = vpop.f32.mrb[0].mxu0
      %v2862 = vadd.f32 %v1703, %v2861
      %2863 = vmatprep.mubr.bf16.mxu0 %v1513
      %2864 = vmatmul.mubr.bf16.gmra.mrb[0].mxu0 %v1512
      %v2865 = vpop.f32.mrb[0].mxu0
      %v2866 = vadd.f32 %v1699, %v2865
      %v2867 = vpop.f32.mrb[0].mxu0
      %v2868 = vadd.f32 %v1703, %v2867
      %v2869 = vpop.f32.mrb[0].mxu0
      %v2870 = vadd.f32 %v1699, %v2869
      %v2871 = vpop.f32.mrb[0].mxu0
      %v2872 = vadd.f32 %v1703, %v2871
      %2873 = vmatprep.mubr.bf16.mxu0 %v1515
      %2874 = vmatmul.mubr.bf16.gmra.mrb[0].mxu0 %v1514
      %v2875 = vpop.f32.mrb[0].mxu0
      %v2876 = vadd.f32 %v1699, %v2875
      %v2877 = vpop.f32.mrb[0].mxu0
      %v2878 = vadd.f32 %v1703, %v2877
      %v2879 = vpop.f32.mrb[0].mxu0
      %v2880 = vadd.f32 %v1699, %v2879
      %v2881 = vpop.f32.mrb[0].mxu0
      %v2882 = vadd.f32 %v1703, %v2881
      %2883 = vmatprep.mubr.bf16.mxu0 %v1517
      %2884 = vmatmul.mubr.bf16.gmra.mrb[0].mxu0 %v1516
      %v2885 = vpop.f32.mrb[0].mxu0
      %v2886 = vadd.f32 %v1699, %v2885
      %v2887 = vpop.f32.mrb[0].mxu0
      %v2888 = vadd.f32 %v1703, %v2887
      %v2889 = vpop.f32.mrb[0].mxu0
      %v2890 = vadd.f32 %v1699, %v2889
      %v2891 = vpop.f32.mrb[0].mxu0
      %v2892 = vadd.f32 %v1703, %v2891
      %2893 = vmatprep.mubr.bf16.mxu0 %v1519
      %2894 = vmatmul.mubr.bf16.gmra.mrb[0].mxu0 %v1518
      %v2895 = vpop.f32.mrb[0].mxu0
      %v2896 = vadd.f32 %v1699, %v2895
      %v2897 = vpop.f32.mrb[0].mxu0
      %v2898 = vadd.f32 %v1703, %v2897
      %v2899 = vpop.f32.mrb[0].mxu0
      %v2900 = vadd.f32 %v1699, %v2899
      %v2901 = vpop.f32.mrb[0].mxu0
      %v2902 = vadd.f32 %v1703, %v2901
      %2903 = vmatprep.mubr.bf16.mxu0 %v1521
      %2904 = vmatmul.mubr.bf16.gmra.mrb[0].mxu0 %v1520
      %v2905 = vpop.f32.mrb[0].mxu0
      %v2906 = vadd.f32 %v1699, %v2905
      %v2907 = vpop.f32.mrb[0].mxu0
      %v2908 = vadd.f32 %v1703, %v2907
      %v2909 = vpop.f32.mrb[0].mxu0
      %v2910 = vadd.f32 %v1699, %v2909
      %v2911 = vpop.f32.mrb[0].mxu0
      %v2912 = vadd.f32 %v1703, %v2911
      %2913 = vmatprep.mubr.bf16.mxu0 %v1523
      %2914 = vmatmul.mubr.bf16.gmra.mrb[0].mxu0 %v1522
      %v2915 = vpop.f32.mrb[0].mxu0
      %v2916 = vadd.f32 %v1699, %v2915
      %v2917 = vpop.f32.mrb[0].mxu0
      %v2918 = vadd.f32 %v1703, %v2917
      %v2919 = vpop.f32.mrb[0].mxu0
      %v2920 = vadd.f32 %v1699, %v2919
      %v2921 = vpop.f32.mrb[0].mxu0
      %v2922 = vadd.f32 %v1703, %v2921
      %2923 = vdwg.mxu0
      %2924 = vmatprep.subr.bf16.mxu0 %v2223
      %2925 = vmatpush1.bf16.msra.mxu0 %v2222
      %2926 = vmatprep.subr.bf16.mxu0 %v2233
      %2927 = vmatpush1.bf16.msra.mxu0 %v2232
      %2928 = vmatprep.subr.bf16.mxu0 %v2243
      %2929 = vmatpush1.bf16.msra.mxu0 %v2242
      %2930 = vmatprep.subr.bf16.mxu0 %v2253
      %2931 = vmatpush1.bf16.msra.mxu0 %v2252
      %2932 = vmatprep.subr.bf16.mxu0 %v2263
      %2933 = vmatpush1.bf16.msra.mxu0 %v2262
      %2934 = vmatprep.subr.bf16.mxu0 %v2273
      %2935 = vmatpush1.bf16.msra.mxu0 %v2272
      %2936 = vmatprep.subr.bf16.mxu0 %v2283
      %2937 = vmatpush1.bf16.msra.mxu0 %v2282
      %2938 = vmatprep.subr.bf16.mxu0 %v2293
      %2939 = vmatpush1.bf16.msra.mxu0 %v2292
      %2940 = vmatprep.subr.bf16.mxu0 %v2303
      %2941 = vmatpush1.bf16.msra.mxu0 %v2302
      %2942 = vmatprep.subr.bf16.mxu0 %v2313
      %2943 = vmatpush1.bf16.msra.mxu0 %v2312
      %2944 = vmatprep.subr.bf16.mxu0 %v2323
      %2945 = vmatpush1.bf16.msra.mxu0 %v2322
      %2946 = vmatprep.subr.bf16.mxu0 %v2333
      %2947 = vmatpush1.bf16.msra.mxu0 %v2332
      %2948 = vmatprep.subr.bf16.mxu0 %v2343
      %2949 = vmatpush1.bf16.msra.mxu0 %v2342
      %2950 = vmatprep.subr.bf16.mxu0 %v2353
      %2951 = vmatpush1.bf16.msra.mxu0 %v2352
      %2952 = vmatprep.subr.bf16.mxu0 %v2363
      %2953 = vmatpush1.bf16.msra.mxu0 %v2362
      %2954 = vmatprep.subr.bf16.mxu0 %v2373
      %2955 = vmatpush1.bf16.msra.mxu0 %v2372
      %2956 = vmatprep.mubr.bf16.mxu0 %v1493
      %2957 = vmatmul.mubr.bf16.gmra.mrb[0].mxu0 %v1492
      %v2958 = vpop.f32.mrb[0].mxu0
      %v2959 = vadd.f32 %v1707, %v2958
      %v2960 = vpop.f32.mrb[0].mxu0
      %v2961 = vadd.f32 %v1711, %v2960
      %v2962 = vpop.f32.mrb[0].mxu0
      %v2963 = vadd.f32 %v1707, %v2962
      %v2964 = vpop.f32.mrb[0].mxu0
      %v2965 = vadd.f32 %v1711, %v2964
      %2966 = vmatprep.mubr.bf16.mxu0 %v1495
      %2967 = vmatmul.mubr.bf16.gmra.mrb[0].mxu0 %v1494
      %v2968 = vpop.f32.mrb[0].mxu0
      %v2969 = vadd.f32 %v1707, %v2968
      %v2970 = vpop.f32.mrb[0].mxu0
      %v2971 = vadd.f32 %v1711, %v2970
      %v2972 = vpop.f32.mrb[0].mxu0
      %v2973 = vadd.f32 %v1707, %v2972
      %v2974 = vpop.f32.mrb[0].mxu0
      %v2975 = vadd.f32 %v1711, %v2974
      %2976 = vmatprep.mubr.bf16.mxu0 %v1497
      %2977 = vmatmul.mubr.bf16.gmra.mrb[0].mxu0 %v1496
      %v2978 = vpop.f32.mrb[0].mxu0
      %v2979 = vadd.f32 %v1707, %v2978
      %v2980 = vpop.f32.mrb[0].mxu0
      %v2981 = vadd.f32 %v1711, %v2980
      %v2982 = vpop.f32.mrb[0].mxu0
      %v2983 = vadd.f32 %v1707, %v2982
      %v2984 = vpop.f32.mrb[0].mxu0
      %v2985 = vadd.f32 %v1711, %v2984
      %2986 = vmatprep.mubr.bf16.mxu0 %v1499
      %2987 = vmatmul.mubr.bf16.gmra.mrb[0].mxu0 %v1498
      %v2988 = vpop.f32.mrb[0].mxu0
      %v2989 = vadd.f32 %v1707, %v2988
      %v2990 = vpop.f32.mrb[0].mxu0
      %v2991 = vadd.f32 %v1711, %v2990
      %v2992 = vpop.f32.mrb[0].mxu0
      %v2993 = vadd.f32 %v1707, %v2992
      %v2994 = vpop.f32.mrb[0].mxu0
      %v2995 = vadd.f32 %v1711, %v2994
      %2996 = vmatprep.mubr.bf16.mxu0 %v1501
      %2997 = vmatmul.mubr.bf16.gmra.mrb[0].mxu0 %v1500
      %v2998 = vpop.f32.mrb[0].mxu0
      %v2999 = vadd.f32 %v1707, %v2998
      %v3000 = vpop.f32.mrb[0].mxu0
      %v3001 = vadd.f32 %v1711, %v3000
      %v3002 = vpop.f32.mrb[0].mxu0
      %v3003 = vadd.f32 %v1707, %v3002
      %v3004 = vpop.f32.mrb[0].mxu0
      %v3005 = vadd.f32 %v1711, %v3004
      %3006 = vmatprep.mubr.bf16.mxu0 %v1503
      %3007 = vmatmul.mubr.bf16.gmra.mrb[0].mxu0 %v1502
      %v3008 = vpop.f32.mrb[0].mxu0
      %v3009 = vadd.f32 %v1707, %v3008
      %v3010 = vpop.f32.mrb[0].mxu0
      %v3011 = vadd.f32 %v1711, %v3010
      %v3012 = vpop.f32.mrb[0].mxu0
      %v3013 = vadd.f32 %v1707, %v3012
      %v3014 = vpop.f32.mrb[0].mxu0
      %v3015 = vadd.f32 %v1711, %v3014
      %3016 = vmatprep.mubr.bf16.mxu0 %v1505
      %3017 = vmatmul.mubr.bf16.gmra.mrb[0].mxu0 %v1504
      %v3018 = vpop.f32.mrb[0].mxu0
      %v3019 = vadd.f32 %v1707, %v3018
      %v3020 = vpop.f32.mrb[0].mxu0
      %v3021 = vadd.f32 %v1711, %v3020
      %v3022 = vpop.f32.mrb[0].mxu0
      %v3023 = vadd.f32 %v1707, %v3022
      %v3024 = vpop.f32.mrb[0].mxu0
      %v3025 = vadd.f32 %v1711, %v3024
      %3026 = vmatprep.mubr.bf16.mxu0 %v1507
      %3027 = vmatmul.mubr.bf16.gmra.mrb[0].mxu0 %v1506
      %v3028 = vpop.f32.mrb[0].mxu0
      %v3029 = vadd.f32 %v1707, %v3028
      %v3030 = vpop.f32.mrb[0].mxu0
      %v3031 = vadd.f32 %v1711, %v3030
      %v3032 = vpop.f32.mrb[0].mxu0
      %v3033 = vadd.f32 %v1707, %v3032
      %v3034 = vpop.f32.mrb[0].mxu0
      %v3035 = vadd.f32 %v1711, %v3034
      %3036 = vmatprep.mubr.bf16.mxu0 %v1509
      %3037 = vmatmul.mubr.bf16.gmra.mrb[0].mxu0 %v1508
      %v3038 = vpop.f32.mrb[0].mxu0
      %v3039 = vadd.f32 %v1707, %v3038
      %v3040 = vpop.f32.mrb[0].mxu0
      %v3041 = vadd.f32 %v1711, %v3040
      %v3042 = vpop.f32.mrb[0].mxu0
      %v3043 = vadd.f32 %v1707, %v3042
      %v3044 = vpop.f32.mrb[0].mxu0
      %v3045 = vadd.f32 %v1711, %v3044
      %3046 = vmatprep.mubr.bf16.mxu0 %v1511
      %3047 = vmatmul.mubr.bf16.gmra.mrb[0].mxu0 %v1510
      %v3048 = vpop.f32.mrb[0].mxu0
      %v3049 = vadd.f32 %v1707, %v3048
      %v3050 = vpop.f32.mrb[0].mxu0
      %v3051 = vadd.f32 %v1711, %v3050
      %v3052 = vpop.f32.mrb[0].mxu0
      %v3053 = vadd.f32 %v1707, %v3052
      %v3054 = vpop.f32.mrb[0].mxu0
      %v3055 = vadd.f32 %v1711, %v3054
      %3056 = vmatprep.mubr.bf16.mxu0 %v1513
      %3057 = vmatmul.mubr.bf16.gmra.mrb[0].mxu0 %v1512
      %v3058 = vpop.f32.mrb[0].mxu0
      %v3059 = vadd.f32 %v1707, %v3058
      %v3060 = vpop.f32.mrb[0].mxu0
      %v3061 = vadd.f32 %v1711, %v3060
      %v3062 = vpop.f32.mrb[0].mxu0
      %v3063 = vadd.f32 %v1707, %v3062
      %v3064 = vpop.f32.mrb[0].mxu0
      %v3065 = vadd.f32 %v1711, %v3064
      %3066 = vmatprep.mubr.bf16.mxu0 %v1515
      %3067 = vmatmul.mubr.bf16.gmra.mrb[0].mxu0 %v1514
      %v3068 = vpop.f32.mrb[0].mxu0
      %v3069 = vadd.f32 %v1707, %v3068
      %v3070 = vpop.f32.mrb[0].mxu0
      %v3071 = vadd.f32 %v1711, %v3070
      %v3072 = vpop.f32.mrb[0].mxu0
      %v3073 = vadd.f32 %v1707, %v3072
      %v3074 = vpop.f32.mrb[0].mxu0
      %v3075 = vadd.f32 %v1711, %v3074
      %3076 = vmatprep.mubr.bf16.mxu0 %v1517
      %3077 = vmatmul.mubr.bf16.gmra.mrb[0].mxu0 %v1516
      %v3078 = vpop.f32.mrb[0].mxu0
      %v3079 = vadd.f32 %v1707, %v3078
      %v3080 = vpop.f32.mrb[0].mxu0
      %v3081 = vadd.f32 %v1711, %v3080
      %v3082 = vpop.f32.mrb[0].mxu0
      %v3083 = vadd.f32 %v1707, %v3082
      %v3084 = vpop.f32.mrb[0].mxu0
      %v3085 = vadd.f32 %v1711, %v3084
      %3086 = vmatprep.mubr.bf16.mxu0 %v1519
      %3087 = vmatmul.mubr.bf16.gmra.mrb[0].mxu0 %v1518
      %v3088 = vpop.f32.mrb[0].mxu0
      %v3089 = vadd.f32 %v1707, %v3088
      %v3090 = vpop.f32.mrb[0].mxu0
      %v3091 = vadd.f32 %v1711, %v3090
      %v3092 = vpop.f32.mrb[0].mxu0
      %v3093 = vadd.f32 %v1707, %v3092
      %v3094 = vpop.f32.mrb[0].mxu0
      %v3095 = vadd.f32 %v1711, %v3094
      %3096 = vmatprep.mubr.bf16.mxu0 %v1521
      %3097 = vmatmul.mubr.bf16.gmra.mrb[0].mxu0 %v1520
      %v3098 = vpop.f32.mrb[0].mxu0
      %v3099 = vadd.f32 %v1707, %v3098
      %v3100 = vpop.f32.mrb[0].mxu0
      %v3101 = vadd.f32 %v1711, %v3100
      %v3102 = vpop.f32.mrb[0].mxu0
      %v3103 = vadd.f32 %v1707, %v3102
      %v3104 = vpop.f32.mrb[0].mxu0
      %v3105 = vadd.f32 %v1711, %v3104
      %3106 = vmatprep.mubr.bf16.mxu0 %v1523
      %3107 = vmatmul.mubr.bf16.gmra.mrb[0].mxu0 %v1522
      %v3108 = vpop.f32.mrb[0].mxu0
      %v3109 = vadd.f32 %v1707, %v3108
      %v3110 = vpop.f32.mrb[0].mxu0
      %v3111 = vadd.f32 %v1711, %v3110
      %v3112 = vpop.f32.mrb[0].mxu0
      %v3113 = vadd.f32 %v1707, %v3112
      %v3114 = vpop.f32.mrb[0].mxu0
      %v3115 = vadd.f32 %v1711, %v3114
      %3116 = vdwg.mxu0
      %3117 = vmatprep.subr.bf16.mxu0 %v2225
      %3118 = vmatpush1.bf16.msra.mxu0 %v2224
      %3119 = vmatprep.subr.bf16.mxu0 %v2235
      %3120 = vmatpush1.bf16.msra.mxu0 %v2234
      %3121 = vmatprep.subr.bf16.mxu0 %v2245
      %3122 = vmatpush1.bf16.msra.mxu0 %v2244
      %3123 = vmatprep.subr.bf16.mxu0 %v2255
      %3124 = vmatpush1.bf16.msra.mxu0 %v2254
      %3125 = vmatprep.subr.bf16.mxu0 %v2265
      %3126 = vmatpush1.bf16.msra.mxu0 %v2264
      %3127 = vmatprep.subr.bf16.mxu0 %v2275
      %3128 = vmatpush1.bf16.msra.mxu0 %v2274
      %3129 = vmatprep.subr.bf16.mxu0 %v2285
      %3130 = vmatpush1.bf16.msra.mxu0 %v2284
      %3131 = vmatprep.subr.bf16.mxu0 %v2295
      %3132 = vmatpush1.bf16.msra.mxu0 %v2294
      %3133 = vmatprep.subr.bf16.mxu0 %v2305
      %3134 = vmatpush1.bf16.msra.mxu0 %v2304
      %3135 = vmatprep.subr.bf16.mxu0 %v2315
      %3136 = vmatpush1.bf16.msra.mxu0 %v2314
      %3137 = vmatprep.subr.bf16.mxu0 %v2325
      %3138 = vmatpush1.bf16.msra.mxu0 %v2324
      %3139 = vmatprep.subr.bf16.mxu0 %v2335
      %3140 = vmatpush1.bf16.msra.mxu0 %v2334
      %3141 = vmatprep.subr.bf16.mxu0 %v2345
      %3142 = vmatpush1.bf16.msra.mxu0 %v2344
      %3143 = vmatprep.subr.bf16.mxu0 %v2355
      %3144 = vmatpush1.bf16.msra.mxu0 %v2354
      %3145 = vmatprep.subr.bf16.mxu0 %v2365
      %3146 = vmatpush1.bf16.msra.mxu0 %v2364
      %3147 = vmatprep.subr.bf16.mxu0 %v2375
      %3148 = vmatpush1.bf16.msra.mxu0 %v2374
      %3149 = vmatprep.mubr.bf16.mxu0 %v1493
      %3150 = vmatmul.mubr.bf16.gmra.mrb[0].mxu0 %v1492
      %v3151 = vpop.f32.mrb[0].mxu0
      %v3152 = vadd.f32 %v1715, %v3151
      %v3153 = vpop.f32.mrb[0].mxu0
      %v3154 = vadd.f32 %v1719, %v3153
      %v3155 = vpop.f32.mrb[0].mxu0
      %v3156 = vadd.f32 %v1715, %v3155
      %v3157 = vpop.f32.mrb[0].mxu0
      %v3158 = vadd.f32 %v1719, %v3157
      %3159 = vmatprep.mubr.bf16.mxu0 %v1495
      %3160 = vmatmul.mubr.bf16.gmra.mrb[0].mxu0 %v1494
      %v3161 = vpop.f32.mrb[0].mxu0
      %v3162 = vadd.f32 %v1715, %v3161
      %v3163 = vpop.f32.mrb[0].mxu0
      %v3164 = vadd.f32 %v1719, %v3163
      %v3165 = vpop.f32.mrb[0].mxu0
      %v3166 = vadd.f32 %v1715, %v3165
      %v3167 = vpop.f32.mrb[0].mxu0
      %v3168 = vadd.f32 %v1719, %v3167
      %3169 = vmatprep.mubr.bf16.mxu0 %v1497
      %3170 = vmatmul.mubr.bf16.gmra.mrb[0].mxu0 %v1496
      %v3171 = vpop.f32.mrb[0].mxu0
      %v3172 = vadd.f32 %v1715, %v3171
      %v3173 = vpop.f32.mrb[0].mxu0
      %v3174 = vadd.f32 %v1719, %v3173
      %v3175 = vpop.f32.mrb[0].mxu0
      %v3176 = vadd.f32 %v1715, %v3175
      %v3177 = vpop.f32.mrb[0].mxu0
      %v3178 = vadd.f32 %v1719, %v3177
      %3179 = vmatprep.mubr.bf16.mxu0 %v1499
      %3180 = vmatmul.mubr.bf16.gmra.mrb[0].mxu0 %v1498
      %v3181 = vpop.f32.mrb[0].mxu0
      %v3182 = vadd.f32 %v1715, %v3181
      %v3183 = vpop.f32.mrb[0].mxu0
      %v3184 = vadd.f32 %v1719, %v3183
      %v3185 = vpop.f32.mrb[0].mxu0
      %v3186 = vadd.f32 %v1715, %v3185
      %v3187 = vpop.f32.mrb[0].mxu0
      %v3188 = vadd.f32 %v1719, %v3187
      %3189 = vmatprep.mubr.bf16.mxu0 %v1501
      %3190 = vmatmul.mubr.bf16.gmra.mrb[0].mxu0 %v1500
      %v3191 = vpop.f32.mrb[0].mxu0
      %v3192 = vadd.f32 %v1715, %v3191
      %v3193 = vpop.f32.mrb[0].mxu0
      %v3194 = vadd.f32 %v1719, %v3193
      %v3195 = vpop.f32.mrb[0].mxu0
      %v3196 = vadd.f32 %v1715, %v3195
      %v3197 = vpop.f32.mrb[0].mxu0
      %v3198 = vadd.f32 %v1719, %v3197
      %3199 = vmatprep.mubr.bf16.mxu0 %v1503
      %3200 = vmatmul.mubr.bf16.gmra.mrb[0].mxu0 %v1502
      %v3201 = vpop.f32.mrb[0].mxu0
      %v3202 = vadd.f32 %v1715, %v3201
      %v3203 = vpop.f32.mrb[0].mxu0
      %v3204 = vadd.f32 %v1719, %v3203
      %v3205 = vpop.f32.mrb[0].mxu0
      %v3206 = vadd.f32 %v1715, %v3205
      %v3207 = vpop.f32.mrb[0].mxu0
      %v3208 = vadd.f32 %v1719, %v3207
      %3209 = vmatprep.mubr.bf16.mxu0 %v1505
      %3210 = vmatmul.mubr.bf16.gmra.mrb[0].mxu0 %v1504
      %v3211 = vpop.f32.mrb[0].mxu0
      %v3212 = vadd.f32 %v1715, %v3211
      %v3213 = vpop.f32.mrb[0].mxu0
      %v3214 = vadd.f32 %v1719, %v3213
      %v3215 = vpop.f32.mrb[0].mxu0
      %v3216 = vadd.f32 %v1715, %v3215
      %v3217 = vpop.f32.mrb[0].mxu0
      %v3218 = vadd.f32 %v1719, %v3217
      %3219 = vmatprep.mubr.bf16.mxu0 %v1507
      %3220 = vmatmul.mubr.bf16.gmra.mrb[0].mxu0 %v1506
      %v3221 = vpop.f32.mrb[0].mxu0
      %v3222 = vadd.f32 %v1715, %v3221
      %v3223 = vpop.f32.mrb[0].mxu0
      %v3224 = vadd.f32 %v1719, %v3223
      %v3225 = vpop.f32.mrb[0].mxu0
      %v3226 = vadd.f32 %v1715, %v3225
      %v3227 = vpop.f32.mrb[0].mxu0
      %v3228 = vadd.f32 %v1719, %v3227
      %3229 = vmatprep.mubr.bf16.mxu0 %v1509
      %3230 = vmatmul.mubr.bf16.gmra.mrb[0].mxu0 %v1508
      %v3231 = vpop.f32.mrb[0].mxu0
      %v3232 = vadd.f32 %v1715, %v3231
      %v3233 = vpop.f32.mrb[0].mxu0
      %v3234 = vadd.f32 %v1719, %v3233
      %v3235 = vpop.f32.mrb[0].mxu0
      %v3236 = vadd.f32 %v1715, %v3235
      %v3237 = vpop.f32.mrb[0].mxu0
      %v3238 = vadd.f32 %v1719, %v3237
      %3239 = vmatprep.mubr.bf16.mxu0 %v1511
      %3240 = vmatmul.mubr.bf16.gmra.mrb[0].mxu0 %v1510
      %v3241 = vpop.f32.mrb[0].mxu0
      %v3242 = vadd.f32 %v1715, %v3241
      %v3243 = vpop.f32.mrb[0].mxu0
      %v3244 = vadd.f32 %v1719, %v3243
      %v3245 = vpop.f32.mrb[0].mxu0
      %v3246 = vadd.f32 %v1715, %v3245
      %v3247 = vpop.f32.mrb[0].mxu0
      %v3248 = vadd.f32 %v1719, %v3247
      %3249 = vmatprep.mubr.bf16.mxu0 %v1513
      %3250 = vmatmul.mubr.bf16.gmra.mrb[0].mxu0 %v1512
      %v3251 = vpop.f32.mrb[0].mxu0
      %v3252 = vadd.f32 %v1715, %v3251
      %v3253 = vpop.f32.mrb[0].mxu0
      %v3254 = vadd.f32 %v1719, %v3253
      %v3255 = vpop.f32.mrb[0].mxu0
      %v3256 = vadd.f32 %v1715, %v3255
      %v3257 = vpop.f32.mrb[0].mxu0
      %v3258 = vadd.f32 %v1719, %v3257
      %3259 = vmatprep.mubr.bf16.mxu0 %v1515
      %3260 = vmatmul.mubr.bf16.gmra.mrb[0].mxu0 %v1514
      %v3261 = vpop.f32.mrb[0].mxu0
      %v3262 = vadd.f32 %v1715, %v3261
      %v3263 = vpop.f32.mrb[0].mxu0
      %v3264 = vadd.f32 %v1719, %v3263
      %v3265 = vpop.f32.mrb[0].mxu0
      %v3266 = vadd.f32 %v1715, %v3265
      %v3267 = vpop.f32.mrb[0].mxu0
      %v3268 = vadd.f32 %v1719, %v3267
      %3269 = vmatprep.mubr.bf16.mxu0 %v1517
      %3270 = vmatmul.mubr.bf16.gmra.mrb[0].mxu0 %v1516
      %v3271 = vpop.f32.mrb[0].mxu0
      %v3272 = vadd.f32 %v1715, %v3271
      %v3273 = vpop.f32.mrb[0].mxu0
      %v3274 = vadd.f32 %v1719, %v3273
      %v3275 = vpop.f32.mrb[0].mxu0
      %v3276 = vadd.f32 %v1715, %v3275
      %v3277 = vpop.f32.mrb[0].mxu0
      %v3278 = vadd.f32 %v1719, %v3277
      %3279 = vmatprep.mubr.bf16.mxu0 %v1519
      %3280 = vmatmul.mubr.bf16.gmra.mrb[0].mxu0 %v1518
      %v3281 = vpop.f32.mrb[0].mxu0
      %v3282 = vadd.f32 %v1715, %v3281
      %v3283 = vpop.f32.mrb[0].mxu0
      %v3284 = vadd.f32 %v1719, %v3283
      %v3285 = vpop.f32.mrb[0].mxu0
      %v3286 = vadd.f32 %v1715, %v3285
      %v3287 = vpop.f32.mrb[0].mxu0
      %v3288 = vadd.f32 %v1719, %v3287
      %3289 = vmatprep.mubr.bf16.mxu0 %v1521
      %3290 = vmatmul.mubr.bf16.gmra.mrb[0].mxu0 %v1520
      %v3291 = vpop.f32.mrb[0].mxu0
      %v3292 = vadd.f32 %v1715, %v3291
      %v3293 = vpop.f32.mrb[0].mxu0
      %v3294 = vadd.f32 %v1719, %v3293
      %v3295 = vpop.f32.mrb[0].mxu0
      %v3296 = vadd.f32 %v1715, %v3295
      %v3297 = vpop.f32.mrb[0].mxu0
      %v3298 = vadd.f32 %v1719, %v3297
      %3299 = vmatprep.mubr.bf16.mxu0 %v1523
      %3300 = vmatmul.mubr.bf16.gmra.mrb[0].mxu0 %v1522
      %v3301 = vpop.f32.mrb[0].mxu0
      %v3302 = vadd.f32 %v1715, %v3301
      %v3303 = vpop.f32.mrb[0].mxu0
      %v3304 = vadd.f32 %v1719, %v3303
      %v3305 = vpop.f32.mrb[0].mxu0
      %v3306 = vadd.f32 %v1715, %v3305
      %v3307 = vpop.f32.mrb[0].mxu0
      %v3308 = vadd.f32 %v1719, %v3307
      %3309 = vdwg.mxu0
      %3310 = vmatprep.subr.bf16.mxu0 %v2227
      %3311 = vmatpush1.bf16.msra.mxu0 %v2226
      %3312 = vmatprep.subr.bf16.mxu0 %v2237
      %3313 = vmatpush1.bf16.msra.mxu0 %v2236
      %3314 = vmatprep.subr.bf16.mxu0 %v2247
      %3315 = vmatpush1.bf16.msra.mxu0 %v2246
      %3316 = vmatprep.subr.bf16.mxu0 %v2257
      %3317 = vmatpush1.bf16.msra.mxu0 %v2256
      %3318 = vmatprep.subr.bf16.mxu0 %v2267
      %3319 = vmatpush1.bf16.msra.mxu0 %v2266
      %3320 = vmatprep.subr.bf16.mxu0 %v2277
      %3321 = vmatpush1.bf16.msra.mxu0 %v2276
      %3322 = vmatprep.subr.bf16.mxu0 %v2287
      %3323 = vmatpush1.bf16.msra.mxu0 %v2286
      %3324 = vmatprep.subr.bf16.mxu0 %v2297
      %3325 = vmatpush1.bf16.msra.mxu0 %v2296
      %3326 = vmatprep.subr.bf16.mxu0 %v2307
      %3327 = vmatpush1.bf16.msra.mxu0 %v2306
      %3328 = vmatprep.subr.bf16.mxu0 %v2317
      %3329 = vmatpush1.bf16.msra.mxu0 %v2316
      %3330 = vmatprep.subr.bf16.mxu0 %v2327
      %3331 = vmatpush1.bf16.msra.mxu0 %v2326
      %3332 = vmatprep.subr.bf16.mxu0 %v2337
      %3333 = vmatpush1.bf16.msra.mxu0 %v2336
      %3334 = vmatprep.subr.bf16.mxu0 %v2347
      %3335 = vmatpush1.bf16.msra.mxu0 %v2346
      %3336 = vmatprep.subr.bf16.mxu0 %v2357
      %3337 = vmatpush1.bf16.msra.mxu0 %v2356
      %3338 = vmatprep.subr.bf16.mxu0 %v2367
      %3339 = vmatpush1.bf16.msra.mxu0 %v2366
      %3340 = vmatprep.subr.bf16.mxu0 %v2377
      %3341 = vmatpush1.bf16.msra.mxu0 %v2376
      %3342 = vmatprep.mubr.bf16.mxu0 %v1493
      %3343 = vmatmul.mubr.bf16.gmra.mrb[0].mxu0 %v1492
      %v3344 = vpop.f32.mrb[0].mxu0
      %v3345 = vadd.f32 %v1723, %v3344
      %v3346 = vpop.f32.mrb[0].mxu0
      %v3347 = vadd.f32 %v1727, %v3346
      %v3348 = vpop.f32.mrb[0].mxu0
      %v3349 = vadd.f32 %v1723, %v3348
      %v3350 = vpop.f32.mrb[0].mxu0
      %v3351 = vadd.f32 %v1727, %v3350
      %3352 = vmatprep.mubr.bf16.mxu0 %v1495
      %3353 = vmatmul.mubr.bf16.gmra.mrb[0].mxu0 %v1494
      %v3354 = vpop.f32.mrb[0].mxu0
      %v3355 = vadd.f32 %v1723, %v3354
      %v3356 = vpop.f32.mrb[0].mxu0
      %v3357 = vadd.f32 %v1727, %v3356
      %v3358 = vpop.f32.mrb[0].mxu0
      %v3359 = vadd.f32 %v1723, %v3358
      %v3360 = vpop.f32.mrb[0].mxu0
      %v3361 = vadd.f32 %v1727, %v3360
      %3362 = vmatprep.mubr.bf16.mxu0 %v1497
      %3363 = vmatmul.mubr.bf16.gmra.mrb[0].mxu0 %v1496
      %v3364 = vpop.f32.mrb[0].mxu0
      %v3365 = vadd.f32 %v1723, %v3364
      %v3366 = vpop.f32.mrb[0].mxu0
      %v3367 = vadd.f32 %v1727, %v3366
      %v3368 = vpop.f32.mrb[0].mxu0
      %v3369 = vadd.f32 %v1723, %v3368
      %v3370 = vpop.f32.mrb[0].mxu0
      %v3371 = vadd.f32 %v1727, %v3370
      %3372 = vmatprep.mubr.bf16.mxu0 %v1499
      %3373 = vmatmul.mubr.bf16.gmra.mrb[0].mxu0 %v1498
      %v3374 = vpop.f32.mrb[0].mxu0
      %v3375 = vadd.f32 %v1723, %v3374
      %v3376 = vpop.f32.mrb[0].mxu0
      %v3377 = vadd.f32 %v1727, %v3376
      %v3378 = vpop.f32.mrb[0].mxu0
      %v3379 = vadd.f32 %v1723, %v3378
      %v3380 = vpop.f32.mrb[0].mxu0
      %v3381 = vadd.f32 %v1727, %v3380
      %3382 = vmatprep.mubr.bf16.mxu0 %v1501
      %3383 = vmatmul.mubr.bf16.gmra.mrb[0].mxu0 %v1500
      %v3384 = vpop.f32.mrb[0].mxu0
      %v3385 = vadd.f32 %v1723, %v3384
      %v3386 = vpop.f32.mrb[0].mxu0
      %v3387 = vadd.f32 %v1727, %v3386
      %v3388 = vpop.f32.mrb[0].mxu0
      %v3389 = vadd.f32 %v1723, %v3388
      %v3390 = vpop.f32.mrb[0].mxu0
      %v3391 = vadd.f32 %v1727, %v3390
      %3392 = vmatprep.mubr.bf16.mxu0 %v1503
      %3393 = vmatmul.mubr.bf16.gmra.mrb[0].mxu0 %v1502
      %v3394 = vpop.f32.mrb[0].mxu0
      %v3395 = vadd.f32 %v1723, %v3394
      %v3396 = vpop.f32.mrb[0].mxu0
      %v3397 = vadd.f32 %v1727, %v3396
      %v3398 = vpop.f32.mrb[0].mxu0
      %v3399 = vadd.f32 %v1723, %v3398
      %v3400 = vpop.f32.mrb[0].mxu0
      %v3401 = vadd.f32 %v1727, %v3400
      %3402 = vmatprep.mubr.bf16.mxu0 %v1505
      %3403 = vmatmul.mubr.bf16.gmra.mrb[0].mxu0 %v1504
      %v3404 = vpop.f32.mrb[0].mxu0
      %v3405 = vadd.f32 %v1723, %v3404
      %v3406 = vpop.f32.mrb[0].mxu0
      %v3407 = vadd.f32 %v1727, %v3406
      %v3408 = vpop.f32.mrb[0].mxu0
      %v3409 = vadd.f32 %v1723, %v3408
      %v3410 = vpop.f32.mrb[0].mxu0
      %v3411 = vadd.f32 %v1727, %v3410
      %3412 = vmatprep.mubr.bf16.mxu0 %v1507
      %3413 = vmatmul.mubr.bf16.gmra.mrb[0].mxu0 %v1506
      %v3414 = vpop.f32.mrb[0].mxu0
      %v3415 = vadd.f32 %v1723, %v3414
      %v3416 = vpop.f32.mrb[0].mxu0
      %v3417 = vadd.f32 %v1727, %v3416
      %v3418 = vpop.f32.mrb[0].mxu0
      %v3419 = vadd.f32 %v1723, %v3418
      %v3420 = vpop.f32.mrb[0].mxu0
      %v3421 = vadd.f32 %v1727, %v3420
      %3422 = vmatprep.mubr.bf16.mxu0 %v1509
      %3423 = vmatmul.mubr.bf16.gmra.mrb[0].mxu0 %v1508
      %v3424 = vpop.f32.mrb[0].mxu0
      %v3425 = vadd.f32 %v1723, %v3424
      %v3426 = vpop.f32.mrb[0].mxu0
      %v3427 = vadd.f32 %v1727, %v3426
      %v3428 = vpop.f32.mrb[0].mxu0
      %v3429 = vadd.f32 %v1723, %v3428
      %v3430 = vpop.f32.mrb[0].mxu0
      %v3431 = vadd.f32 %v1727, %v3430
      %3432 = vmatprep.mubr.bf16.mxu0 %v1511
      %3433 = vmatmul.mubr.bf16.gmra.mrb[0].mxu0 %v1510
      %v3434 = vpop.f32.mrb[0].mxu0
      %v3435 = vadd.f32 %v1723, %v3434
      %v3436 = vpop.f32.mrb[0].mxu0
      %v3437 = vadd.f32 %v1727, %v3436
      %v3438 = vpop.f32.mrb[0].mxu0
      %v3439 = vadd.f32 %v1723, %v3438
      %v3440 = vpop.f32.mrb[0].mxu0
      %v3441 = vadd.f32 %v1727, %v3440
      %3442 = vmatprep.mubr.bf16.mxu0 %v1513
      %3443 = vmatmul.mubr.bf16.gmra.mrb[0].mxu0 %v1512
      %v3444 = vpop.f32.mrb[0].mxu0
      %v3445 = vadd.f32 %v1723, %v3444
      %v3446 = vpop.f32.mrb[0].mxu0
      %v3447 = vadd.f32 %v1727, %v3446
      %v3448 = vpop.f32.mrb[0].mxu0
      %v3449 = vadd.f32 %v1723, %v3448
      %v3450 = vpop.f32.mrb[0].mxu0
      %v3451 = vadd.f32 %v1727, %v3450
      %3452 = vmatprep.mubr.bf16.mxu0 %v1515
      %3453 = vmatmul.mubr.bf16.gmra.mrb[0].mxu0 %v1514
      %v3454 = vpop.f32.mrb[0].mxu0
      %v3455 = vadd.f32 %v1723, %v3454
      %v3456 = vpop.f32.mrb[0].mxu0
      %v3457 = vadd.f32 %v1727, %v3456
      %v3458 = vpop.f32.mrb[0].mxu0
      %v3459 = vadd.f32 %v1723, %v3458
      %v3460 = vpop.f32.mrb[0].mxu0
      %v3461 = vadd.f32 %v1727, %v3460
      %3462 = vmatprep.mubr.bf16.mxu0 %v1517
      %3463 = vmatmul.mubr.bf16.gmra.mrb[0].mxu0 %v1516
      %v3464 = vpop.f32.mrb[0].mxu0
      %v3465 = vadd.f32 %v1723, %v3464
      %v3466 = vpop.f32.mrb[0].mxu0
      %v3467 = vadd.f32 %v1727, %v3466
      %v3468 = vpop.f32.mrb[0].mxu0
      %v3469 = vadd.f32 %v1723, %v3468
      %v3470 = vpop.f32.mrb[0].mxu0
      %v3471 = vadd.f32 %v1727, %v3470
      %3472 = vmatprep.mubr.bf16.mxu0 %v1519
      %3473 = vmatmul.mubr.bf16.gmra.mrb[0].mxu0 %v1518
      %v3474 = vpop.f32.mrb[0].mxu0
      %v3475 = vadd.f32 %v1723, %v3474
      %v3476 = vpop.f32.mrb[0].mxu0
      %v3477 = vadd.f32 %v1727, %v3476
      %v3478 = vpop.f32.mrb[0].mxu0
      %v3479 = vadd.f32 %v1723, %v3478
      %v3480 = vpop.f32.mrb[0].mxu0
      %v3481 = vadd.f32 %v1727, %v3480
      %3482 = vmatprep.mubr.bf16.mxu0 %v1521
      %3483 = vmatmul.mubr.bf16.gmra.mrb[0].mxu0 %v1520
      %v3484 = vpop.f32.mrb[0].mxu0
      %v3485 = vadd.f32 %v1723, %v3484
      %v3486 = vpop.f32.mrb[0].mxu0
      %v3487 = vadd.f32 %v1727, %v3486
      %v3488 = vpop.f32.mrb[0].mxu0
      %v3489 = vadd.f32 %v1723, %v3488
      %v3490 = vpop.f32.mrb[0].mxu0
      %v3491 = vadd.f32 %v1727, %v3490
      %3492 = vmatprep.mubr.bf16.mxu0 %v1523
      %3493 = vmatmul.mubr.bf16.gmra.mrb[0].mxu0 %v1522
      %v3494 = vpop.f32.mrb[0].mxu0
      %v3495 = vadd.f32 %v1723, %v3494
      %v3496 = vpop.f32.mrb[0].mxu0
      %v3497 = vadd.f32 %v1727, %v3496
      %v3498 = vpop.f32.mrb[0].mxu0
      %v3499 = vadd.f32 %v1723, %v3498
      %v3500 = vpop.f32.mrb[0].mxu0
      %v3501 = vadd.f32 %v1727, %v3500
      %3502 = vdwg.mxu0
      %v3503 = vmul.f32 %v2573, 0.5
      %v3504 = vmul.f32 %v2575, 0.5
      %v3505 = vmul.f32 %v2766, 0.5
      %v3506 = vmul.f32 %v2768, 0.5
      %v3507 = vmul.f32 %v2959, 0.5
      %v3508 = vmul.f32 %v2961, 0.5
      %v3509 = vmul.f32 %v3152, 0.5
      %v3510 = vmul.f32 %v3154, 0.5
      %v3511 = vmul.f32 %v3345, 0.5
      %v3512 = vmul.f32 %v3347, 0.5
      %v3513 = vmul.f32 %v2577, 0.5
      %v3514 = vmul.f32 %v2579, 0.5
      %v3515 = vmul.f32 %v2770, 0.5
      %v3516 = vmul.f32 %v2772, 0.5
      %v3517 = vmul.f32 %v2963, 0.5
      %v3518 = vmul.f32 %v2965, 0.5
      %v3519 = vmul.f32 %v3156, 0.5
      %v3520 = vmul.f32 %v3158, 0.5
      %v3521 = vmul.f32 %v3349, 0.5
      %v3522 = vmul.f32 %v3351, 0.5
      %v3523 = vmul.f32 %v2583, 0.5
      %v3524 = vmul.f32 %v2585, 0.5
      %v3525 = vmul.f32 %v2776, 0.5
      %v3526 = vmul.f32 %v2778, 0.5
      %v3527 = vmul.f32 %v2969, 0.5
      %v3528 = vmul.f32 %v2971, 0.5
      %v3529 = vmul.f32 %v3162, 0.5
      %v3530 = vmul.f32 %v3164, 0.5
      %v3531 = vmul.f32 %v3355, 0.5
      %v3532 = vmul.f32 %v3357, 0.5
      %v3533 = vmul.f32 %v2587, 0.5
      %v3534 = vmul.f32 %v2589, 0.5
      %v3535 = vmul.f32 %v2780, 0.5
      %v3536 = vmul.f32 %v2782, 0.5
      %v3537 = vmul.f32 %v2973, 0.5
      %v3538 = vmul.f32 %v2975, 0.5
      %v3539 = vmul.f32 %v3166, 0.5
      %v3540 = vmul.f32 %v3168, 0.5
      %v3541 = vmul.f32 %v3359, 0.5
      %v3542 = vmul.f32 %v3361, 0.5
      %v3543 = vmul.f32 %v2593, 0.5
      %v3544 = vmul.f32 %v2595, 0.5
      %v3545 = vmul.f32 %v2786, 0.5
      %v3546 = vmul.f32 %v2788, 0.5
      %v3547 = vmul.f32 %v2979, 0.5
      %v3548 = vmul.f32 %v2981, 0.5
      %v3549 = vmul.f32 %v3172, 0.5
      %v3550 = vmul.f32 %v3174, 0.5
      %v3551 = vmul.f32 %v3365, 0.5
      %v3552 = vmul.f32 %v3367, 0.5
      %v3553 = vmul.f32 %v2597, 0.5
      %v3554 = vmul.f32 %v2599, 0.5
      %v3555 = vmul.f32 %v2790, 0.5
      %v3556 = vmul.f32 %v2792, 0.5
      %v3557 = vmul.f32 %v2983, 0.5
      %v3558 = vmul.f32 %v2985, 0.5
      %v3559 = vmul.f32 %v3176, 0.5
      %v3560 = vmul.f32 %v3178, 0.5
      %v3561 = vmul.f32 %v3369, 0.5
      %v3562 = vmul.f32 %v3371, 0.5
      %v3563 = vmul.f32 %v2603, 0.5
      %v3564 = vmul.f32 %v2605, 0.5
      %v3565 = vmul.f32 %v2796, 0.5
      %v3566 = vmul.f32 %v2798, 0.5
      %v3567 = vmul.f32 %v2989, 0.5
      %v3568 = vmul.f32 %v2991, 0.5
      %v3569 = vmul.f32 %v3182, 0.5
      %v3570 = vmul.f32 %v3184, 0.5
      %v3571 = vmul.f32 %v3375, 0.5
      %v3572 = vmul.f32 %v3377, 0.5
      %v3573 = vmul.f32 %v2607, 0.5
      %v3574 = vmul.f32 %v2609, 0.5
      %v3575 = vmul.f32 %v2800, 0.5
      %v3576 = vmul.f32 %v2802, 0.5
      %v3577 = vmul.f32 %v2993, 0.5
      %v3578 = vmul.f32 %v2995, 0.5
      %v3579 = vmul.f32 %v3186, 0.5
      %v3580 = vmul.f32 %v3188, 0.5
      %v3581 = vmul.f32 %v3379, 0.5
      %v3582 = vmul.f32 %v3381, 0.5
      %v3583 = vmul.f32 %v2613, 0.5
      %v3584 = vmul.f32 %v2615, 0.5
      %v3585 = vmul.f32 %v2806, 0.5
      %v3586 = vmul.f32 %v2808, 0.5
      %v3587 = vmul.f32 %v2999, 0.5
      %v3588 = vmul.f32 %v3001, 0.5
      %v3589 = vmul.f32 %v3192, 0.5
      %v3590 = vmul.f32 %v3194, 0.5
      %v3591 = vmul.f32 %v3385, 0.5
      %v3592 = vmul.f32 %v3387, 0.5
      %v3593 = vmul.f32 %v2617, 0.5
      %v3594 = vmul.f32 %v2619, 0.5
      %v3595 = vmul.f32 %v2810, 0.5
      %v3596 = vmul.f32 %v2812, 0.5
      %v3597 = vmul.f32 %v3003, 0.5
      %v3598 = vmul.f32 %v3005, 0.5
      %v3599 = vmul.f32 %v3196, 0.5
      %v3600 = vmul.f32 %v3198, 0.5
      %v3601 = vmul.f32 %v3389, 0.5
      %v3602 = vmul.f32 %v3391, 0.5
      %v3603 = vmul.f32 %v2623, 0.5
      %v3604 = vmul.f32 %v2625, 0.5
      %v3605 = vmul.f32 %v2816, 0.5
      %v3606 = vmul.f32 %v2818, 0.5
      %v3607 = vmul.f32 %v3009, 0.5
      %v3608 = vmul.f32 %v3011, 0.5
      %v3609 = vmul.f32 %v3202, 0.5
      %v3610 = vmul.f32 %v3204, 0.5
      %v3611 = vmul.f32 %v3395, 0.5
      %v3612 = vmul.f32 %v3397, 0.5
      %v3613 = vmul.f32 %v2627, 0.5
      %v3614 = vmul.f32 %v2629, 0.5
      %v3615 = vmul.f32 %v2820, 0.5
      %v3616 = vmul.f32 %v2822, 0.5
      %v3617 = vmul.f32 %v3013, 0.5
      %v3618 = vmul.f32 %v3015, 0.5
      %v3619 = vmul.f32 %v3206, 0.5
      %v3620 = vmul.f32 %v3208, 0.5
      %v3621 = vmul.f32 %v3399, 0.5
      %v3622 = vmul.f32 %v3401, 0.5
      %v3623 = vmul.f32 %v2633, 0.5
      %v3624 = vmul.f32 %v2635, 0.5
      %v3625 = vmul.f32 %v2826, 0.5
      %v3626 = vmul.f32 %v2828, 0.5
      %v3627 = vmul.f32 %v3019, 0.5
      %v3628 = vmul.f32 %v3021, 0.5
      %v3629 = vmul.f32 %v3212, 0.5
      %v3630 = vmul.f32 %v3214, 0.5
      %v3631 = vmul.f32 %v3405, 0.5
      %v3632 = vmul.f32 %v3407, 0.5
      %v3633 = vmul.f32 %v2637, 0.5
      %v3634 = vmul.f32 %v2639, 0.5
      %v3635 = vmul.f32 %v2830, 0.5
      %v3636 = vmul.f32 %v2832, 0.5
      %v3637 = vmul.f32 %v3023, 0.5
      %v3638 = vmul.f32 %v3025, 0.5
      %v3639 = vmul.f32 %v3216, 0.5
      %v3640 = vmul.f32 %v3218, 0.5
      %v3641 = vmul.f32 %v3409, 0.5
      %v3642 = vmul.f32 %v3411, 0.5
      %v3643 = vmul.f32 %v2643, 0.5
      %v3644 = vmul.f32 %v2645, 0.5
      %v3645 = vmul.f32 %v2836, 0.5
      %v3646 = vmul.f32 %v2838, 0.5
      %v3647 = vmul.f32 %v3029, 0.5
      %v3648 = vmul.f32 %v3031, 0.5
      %v3649 = vmul.f32 %v3222, 0.5
      %v3650 = vmul.f32 %v3224, 0.5
      %v3651 = vmul.f32 %v3415, 0.5
      %v3652 = vmul.f32 %v3417, 0.5
      %v3653 = vmul.f32 %v2647, 0.5
      %v3654 = vmul.f32 %v2649, 0.5
      %v3655 = vmul.f32 %v2840, 0.5
      %v3656 = vmul.f32 %v2842, 0.5
      %v3657 = vmul.f32 %v3033, 0.5
      %v3658 = vmul.f32 %v3035, 0.5
      %v3659 = vmul.f32 %v3226, 0.5
      %v3660 = vmul.f32 %v3228, 0.5
      %v3661 = vmul.f32 %v3419, 0.5
      %v3662 = vmul.f32 %v3421, 0.5
      %v3663 = vmul.f32 %v2653, 0.5
      %v3664 = vmul.f32 %v2655, 0.5
      %v3665 = vmul.f32 %v2846, 0.5
      %v3666 = vmul.f32 %v2848, 0.5
      %v3667 = vmul.f32 %v3039, 0.5
      %v3668 = vmul.f32 %v3041, 0.5
      %v3669 = vmul.f32 %v3232, 0.5
      %v3670 = vmul.f32 %v3234, 0.5
      %v3671 = vmul.f32 %v3425, 0.5
      %v3672 = vmul.f32 %v3427, 0.5
      %v3673 = vmul.f32 %v2657, 0.5
      %v3674 = vmul.f32 %v2659, 0.5
      %v3675 = vmul.f32 %v2850, 0.5
      %v3676 = vmul.f32 %v2852, 0.5
      %v3677 = vmul.f32 %v3043, 0.5
      %v3678 = vmul.f32 %v3045, 0.5
      %v3679 = vmul.f32 %v3236, 0.5
      %v3680 = vmul.f32 %v3238, 0.5
      %v3681 = vmul.f32 %v3429, 0.5
      %v3682 = vmul.f32 %v3431, 0.5
      %v3683 = vmul.f32 %v2663, 0.5
      %v3684 = vmul.f32 %v2665, 0.5
      %v3685 = vmul.f32 %v2856, 0.5
      %v3686 = vmul.f32 %v2858, 0.5
      %v3687 = vmul.f32 %v3049, 0.5
      %v3688 = vmul.f32 %v3051, 0.5
      %v3689 = vmul.f32 %v3242, 0.5
      %v3690 = vmul.f32 %v3244, 0.5
      %v3691 = vmul.f32 %v3435, 0.5
      %v3692 = vmul.f32 %v3437, 0.5
      %v3693 = vmul.f32 %v2667, 0.5
      %v3694 = vmul.f32 %v2669, 0.5
      %v3695 = vmul.f32 %v2860, 0.5
      %v3696 = vmul.f32 %v2862, 0.5
      %v3697 = vmul.f32 %v3053, 0.5
      %v3698 = vmul.f32 %v3055, 0.5
      %v3699 = vmul.f32 %v3246, 0.5
      %v3700 = vmul.f32 %v3248, 0.5
      %v3701 = vmul.f32 %v3439, 0.5
      %v3702 = vmul.f32 %v3441, 0.5
      %v3703 = vmul.f32 %v2673, 0.5
      %v3704 = vmul.f32 %v2675, 0.5
      %v3705 = vmul.f32 %v2866, 0.5
      %v3706 = vmul.f32 %v2868, 0.5
      %v3707 = vmul.f32 %v3059, 0.5
      %v3708 = vmul.f32 %v3061, 0.5
      %v3709 = vmul.f32 %v3252, 0.5
      %v3710 = vmul.f32 %v3254, 0.5
      %v3711 = vmul.f32 %v3445, 0.5
      %v3712 = vmul.f32 %v3447, 0.5
      %v3713 = vmul.f32 %v2677, 0.5
      %v3714 = vmul.f32 %v2679, 0.5
      %v3715 = vmul.f32 %v2870, 0.5
      %v3716 = vmul.f32 %v2872, 0.5
      %v3717 = vmul.f32 %v3063, 0.5
      %v3718 = vmul.f32 %v3065, 0.5
      %v3719 = vmul.f32 %v3256, 0.5
      %v3720 = vmul.f32 %v3258, 0.5
      %v3721 = vmul.f32 %v3449, 0.5
      %v3722 = vmul.f32 %v3451, 0.5
      %v3723 = vmul.f32 %v2683, 0.5
      %v3724 = vmul.f32 %v2685, 0.5
      %v3725 = vmul.f32 %v2876, 0.5
      %v3726 = vmul.f32 %v2878, 0.5
      %v3727 = vmul.f32 %v3069, 0.5
      %v3728 = vmul.f32 %v3071, 0.5
      %v3729 = vmul.f32 %v3262, 0.5
      %v3730 = vmul.f32 %v3264, 0.5
      %v3731 = vmul.f32 %v3455, 0.5
      %v3732 = vmul.f32 %v3457, 0.5
      %v3733 = vmul.f32 %v2687, 0.5
      %v3734 = vmul.f32 %v2689, 0.5
      %v3735 = vmul.f32 %v2880, 0.5
      %v3736 = vmul.f32 %v2882, 0.5
      %v3737 = vmul.f32 %v3073, 0.5
      %v3738 = vmul.f32 %v3075, 0.5
      %v3739 = vmul.f32 %v3266, 0.5
      %v3740 = vmul.f32 %v3268, 0.5
      %v3741 = vmul.f32 %v3459, 0.5
      %v3742 = vmul.f32 %v3461, 0.5
      %v3743 = vmul.f32 %v2693, 0.5
      %v3744 = vmul.f32 %v2695, 0.5
      %v3745 = vmul.f32 %v2886, 0.5
      %v3746 = vmul.f32 %v2888, 0.5
      %v3747 = vmul.f32 %v3079, 0.5
      %v3748 = vmul.f32 %v3081, 0.5
      %v3749 = vmul.f32 %v3272, 0.5
      %v3750 = vmul.f32 %v3274, 0.5
      %v3751 = vmul.f32 %v3465, 0.5
      %v3752 = vmul.f32 %v3467, 0.5
      %v3753 = vmul.f32 %v2697, 0.5
      %v3754 = vmul.f32 %v2699, 0.5
      %v3755 = vmul.f32 %v2890, 0.5
      %v3756 = vmul.f32 %v2892, 0.5
      %v3757 = vmul.f32 %v3083, 0.5
      %v3758 = vmul.f32 %v3085, 0.5
      %v3759 = vmul.f32 %v3276, 0.5
      %v3760 = vmul.f32 %v3278, 0.5
      %v3761 = vmul.f32 %v3469, 0.5
      %v3762 = vmul.f32 %v3471, 0.5
      %v3763 = vmul.f32 %v2703, 0.5
      %v3764 = vmul.f32 %v2705, 0.5
      %v3765 = vmul.f32 %v2896, 0.5
      %v3766 = vmul.f32 %v2898, 0.5
      %v3767 = vmul.f32 %v3089, 0.5
      %v3768 = vmul.f32 %v3091, 0.5
      %v3769 = vmul.f32 %v3282, 0.5
      %v3770 = vmul.f32 %v3284, 0.5
      %v3771 = vmul.f32 %v3475, 0.5
      %v3772 = vmul.f32 %v3477, 0.5
      %v3773 = vmul.f32 %v2707, 0.5
      %v3774 = vmul.f32 %v2709, 0.5
      %v3775 = vmul.f32 %v2900, 0.5
      %v3776 = vmul.f32 %v2902, 0.5
      %v3777 = vmul.f32 %v3093, 0.5
      %v3778 = vmul.f32 %v3095, 0.5
      %v3779 = vmul.f32 %v3286, 0.5
      %v3780 = vmul.f32 %v3288, 0.5
      %v3781 = vmul.f32 %v3479, 0.5
      %v3782 = vmul.f32 %v3481, 0.5
      %v3783 = vmul.f32 %v2713, 0.5
      %v3784 = vmul.f32 %v2715, 0.5
      %v3785 = vmul.f32 %v2906, 0.5
      %v3786 = vmul.f32 %v2908, 0.5
      %v3787 = vmul.f32 %v3099, 0.5
      %v3788 = vmul.f32 %v3101, 0.5
      %v3789 = vmul.f32 %v3292, 0.5
      %v3790 = vmul.f32 %v3294, 0.5
      %v3791 = vmul.f32 %v3485, 0.5
      %v3792 = vmul.f32 %v3487, 0.5
      %v3793 = vmul.f32 %v2717, 0.5
      %v3794 = vmul.f32 %v2719, 0.5
      %v3795 = vmul.f32 %v2910, 0.5
      %v3796 = vmul.f32 %v2912, 0.5
      %v3797 = vmul.f32 %v3103, 0.5
      %v3798 = vmul.f32 %v3105, 0.5
      %v3799 = vmul.f32 %v3296, 0.5
      %v3800 = vmul.f32 %v3298, 0.5
      %v3801 = vmul.f32 %v3489, 0.5
      %v3802 = vmul.f32 %v3491, 0.5
      %v3803 = vmul.f32 %v2723, 0.5
      %v3804 = vmul.f32 %v2725, 0.5
      %v3805 = vmul.f32 %v2916, 0.5
      %v3806 = vmul.f32 %v2918, 0.5
      %v3807 = vmul.f32 %v3109, 0.5
      %v3808 = vmul.f32 %v3111, 0.5
      %v3809 = vmul.f32 %v3302, 0.5
      %v3810 = vmul.f32 %v3304, 0.5
      %v3811 = vmul.f32 %v3495, 0.5
      %v3812 = vmul.f32 %v3497, 0.5
      %v3813 = vmul.f32 %v2727, 0.5
      %v3814 = vmul.f32 %v2729, 0.5
      %v3815 = vmul.f32 %v2920, 0.5
      %v3816 = vmul.f32 %v2922, 0.5
      %v3817 = vmul.f32 %v3113, 0.5
      %v3818 = vmul.f32 %v3115, 0.5
      %v3819 = vmul.f32 %v3306, 0.5
      %v3820 = vmul.f32 %v3308, 0.5
      %v3821 = vmul.f32 %v3499, 0.5
      %v3822 = vmul.f32 %v3501, 0.5
      %v3823 = vtanh.pop %v3503
      %v3824 = vtanh.pop %v3504
      %v3825 = vtanh.pop %v3505
      %v3826 = vtanh.pop %v3506
      %v3827 = vtanh.pop %v3507
      %v3828 = vtanh.pop %v3508
      %v3829 = vtanh.pop %v3509
      %v3830 = vtanh.pop %v3510
      %v3831 = vtanh.pop %v3511
      %v3832 = vtanh.pop %v3512
      %v3833 = vtanh.pop %v3513
      %v3834 = vtanh.pop %v3514
      %v3835 = vtanh.pop %v3515
      %v3836 = vtanh.pop %v3516
      %v3837 = vtanh.pop %v3517
      %v3838 = vtanh.pop %v3518
      %v3839 = vtanh.pop %v3519
      %v3840 = vtanh.pop %v3520
      %v3841 = vtanh.pop %v3521
      %v3842 = vtanh.pop %v3522
      %v3843 = vtanh.pop %v3523
      %v3844 = vtanh.pop %v3524
      %v3845 = vtanh.pop %v3525
      %v3846 = vtanh.pop %v3526
      %v3847 = vtanh.pop %v3527
      %v3848 = vtanh.pop %v3528
      %v3849 = vtanh.pop %v3529
      %v3850 = vtanh.pop %v3530
      %v3851 = vtanh.pop %v3531
      %v3852 = vtanh.pop %v3532
      %v3853 = vtanh.pop %v3533
      %v3854 = vtanh.pop %v3534
      %v3855 = vtanh.pop %v3535
      %v3856 = vtanh.pop %v3536
      %v3857 = vtanh.pop %v3537
      %v3858 = vtanh.pop %v3538
      %v3859 = vtanh.pop %v3539
      %v3860 = vtanh.pop %v3540
      %v3861 = vtanh.pop %v3541
      %v3862 = vtanh.pop %v3542
      %v3863 = vtanh.pop %v3543
      %v3864 = vtanh.pop %v3544
      %v3865 = vtanh.pop %v3545
      %v3866 = vtanh.pop %v3546
      %v3867 = vtanh.pop %v3547
      %v3868 = vtanh.pop %v3548
      %v3869 = vtanh.pop %v3549
      %v3870 = vtanh.pop %v3550
      %v3871 = vtanh.pop %v3551
      %v3872 = vtanh.pop %v3552
      %v3873 = vtanh.pop %v3553
      %v3874 = vtanh.pop %v3554
      %v3875 = vtanh.pop %v3555
      %v3876 = vtanh.pop %v3556
      %v3877 = vtanh.pop %v3557
      %v3878 = vtanh.pop %v3558
      %v3879 = vtanh.pop %v3559
      %v3880 = vtanh.pop %v3560
      %v3881 = vtanh.pop %v3561
      %v3882 = vtanh.pop %v3562
      %v3883 = vtanh.pop %v3563
      %v3884 = vtanh.pop %v3564
      %v3885 = vtanh.pop %v3565
      %v3886 = vtanh.pop %v3566
      %v3887 = vtanh.pop %v3567
      %v3888 = vtanh.pop %v3568
      %v3889 = vtanh.pop %v3569
      %v3890 = vtanh.pop %v3570
      %v3891 = vtanh.pop %v3571
      %v3892 = vtanh.pop %v3572
      %v3893 = vtanh.pop %v3573
      %v3894 = vtanh.pop %v3574
      %v3895 = vtanh.pop %v3575
      %v3896 = vtanh.pop %v3576
      %v3897 = vtanh.pop %v3577
      %v3898 = vtanh.pop %v3578
      %v3899 = vtanh.pop %v3579
      %v3900 = vtanh.pop %v3580
      %v3901 = vtanh.pop %v3581
      %v3902 = vtanh.pop %v3582
      %v3903 = vtanh.pop %v3583
      %v3904 = vtanh.pop %v3584
      %v3905 = vtanh.pop %v3585
      %v3906 = vtanh.pop %v3586
      %v3907 = vtanh.pop %v3587
      %v3908 = vtanh.pop %v3588
      %v3909 = vtanh.pop %v3589
      %v3910 = vtanh.pop %v3590
      %v3911 = vtanh.pop %v3591
      %v3912 = vtanh.pop %v3592
      %v3913 = vtanh.pop %v3593
      %v3914 = vtanh.pop %v3594
      %v3915 = vtanh.pop %v3595
      %v3916 = vtanh.pop %v3596
      %v3917 = vtanh.pop %v3597
      %v3918 = vtanh.pop %v3598
      %v3919 = vtanh.pop %v3599
      %v3920 = vtanh.pop %v3600
      %v3921 = vtanh.pop %v3601
      %v3922 = vtanh.pop %v3602
      %v3923 = vtanh.pop %v3603
      %v3924 = vtanh.pop %v3604
      %v3925 = vtanh.pop %v3605
      %v3926 = vtanh.pop %v3606
      %v3927 = vtanh.pop %v3607
      %v3928 = vtanh.pop %v3608
      %v3929 = vtanh.pop %v3609
      %v3930 = vtanh.pop %v3610
      %v3931 = vtanh.pop %v3611
      %v3932 = vtanh.pop %v3612
      %v3933 = vtanh.pop %v3613
      %v3934 = vtanh.pop %v3614
      %v3935 = vtanh.pop %v3615
      %v3936 = vtanh.pop %v3616
      %v3937 = vtanh.pop %v3617
      %v3938 = vtanh.pop %v3618
      %v3939 = vtanh.pop %v3619
      %v3940 = vtanh.pop %v3620
      %v3941 = vtanh.pop %v3621
      %v3942 = vtanh.pop %v3622
      %v3943 = vtanh.pop %v3623
      %v3944 = vtanh.pop %v3624
      %v3945 = vtanh.pop %v3625
      %v3946 = vtanh.pop %v3626
      %v3947 = vtanh.pop %v3627
      %v3948 = vtanh.pop %v3628
      %v3949 = vtanh.pop %v3629
      %v3950 = vtanh.pop %v3630
      %v3951 = vtanh.pop %v3631
      %v3952 = vtanh.pop %v3632
      %v3953 = vtanh.pop %v3633
      %v3954 = vtanh.pop %v3634
      %v3955 = vtanh.pop %v3635
      %v3956 = vtanh.pop %v3636
      %v3957 = vtanh.pop %v3637
      %v3958 = vtanh.pop %v3638
      %v3959 = vtanh.pop %v3639
      %v3960 = vtanh.pop %v3640
      %v3961 = vtanh.pop %v3641
      %v3962 = vtanh.pop %v3642
      %v3963 = vtanh.pop %v3643
      %v3964 = vtanh.pop %v3644
      %v3965 = vtanh.pop %v3645
      %v3966 = vtanh.pop %v3646
      %v3967 = vtanh.pop %v3647
      %v3968 = vtanh.pop %v3648
      %v3969 = vtanh.pop %v3649
      %v3970 = vtanh.pop %v3650
      %v3971 = vtanh.pop %v3651
      %v3972 = vtanh.pop %v3652
      %v3973 = vtanh.pop %v3653
      %v3974 = vtanh.pop %v3654
      %v3975 = vtanh.pop %v3655
      %v3976 = vtanh.pop %v3656
      %v3977 = vtanh.pop %v3657
      %v3978 = vtanh.pop %v3658
      %v3979 = vtanh.pop %v3659
      %v3980 = vtanh.pop %v3660
      %v3981 = vtanh.pop %v3661
      %v3982 = vtanh.pop %v3662
      %v3983 = vtanh.pop %v3663
      %v3984 = vtanh.pop %v3664
      %v3985 = vtanh.pop %v3665
      %v3986 = vtanh.pop %v3666
      %v3987 = vtanh.pop %v3667
      %v3988 = vtanh.pop %v3668
      %v3989 = vtanh.pop %v3669
      %v3990 = vtanh.pop %v3670
      %v3991 = vtanh.pop %v3671
      %v3992 = vtanh.pop %v3672
      %v3993 = vtanh.pop %v3673
      %v3994 = vtanh.pop %v3674
      %v3995 = vtanh.pop %v3675
      %v3996 = vtanh.pop %v3676
      %v3997 = vtanh.pop %v3677
      %v3998 = vtanh.pop %v3678
      %v3999 = vtanh.pop %v3679
      %v4000 = vtanh.pop %v3680
      %v4001 = vtanh.pop %v3681
      %v4002 = vtanh.pop %v3682
      %v4003 = vtanh.pop %v3683
      %v4004 = vtanh.pop %v3684
      %v4005 = vtanh.pop %v3685
      %v4006 = vtanh.pop %v3686
      %v4007 = vtanh.pop %v3687
      %v4008 = vtanh.pop %v3688
      %v4009 = vtanh.pop %v3689
      %v4010 = vtanh.pop %v3690
      %v4011 = vtanh.pop %v3691
      %v4012 = vtanh.pop %v3692
      %v4013 = vtanh.pop %v3693
      %v4014 = vtanh.pop %v3694
      %v4015 = vtanh.pop %v3695
      %v4016 = vtanh.pop %v3696
      %v4017 = vtanh.pop %v3697
      %v4018 = vtanh.pop %v3698
      %v4019 = vtanh.pop %v3699
      %v4020 = vtanh.pop %v3700
      %v4021 = vtanh.pop %v3701
      %v4022 = vtanh.pop %v3702
      %v4023 = vtanh.pop %v3703
      %v4024 = vtanh.pop %v3704
      %v4025 = vtanh.pop %v3705
      %v4026 = vtanh.pop %v3706
      %v4027 = vtanh.pop %v3707
      %v4028 = vtanh.pop %v3708
      %v4029 = vtanh.pop %v3709
      %v4030 = vtanh.pop %v3710
      %v4031 = vtanh.pop %v3711
      %v4032 = vtanh.pop %v3712
      %v4033 = vtanh.pop %v3713
      %v4034 = vtanh.pop %v3714
      %v4035 = vtanh.pop %v3715
      %v4036 = vtanh.pop %v3716
      %v4037 = vtanh.pop %v3717
      %v4038 = vtanh.pop %v3718
      %v4039 = vtanh.pop %v3719
      %v4040 = vtanh.pop %v3720
      %v4041 = vtanh.pop %v3721
      %v4042 = vtanh.pop %v3722
      %v4043 = vtanh.pop %v3723
      %v4044 = vtanh.pop %v3724
      %v4045 = vtanh.pop %v3725
      %v4046 = vtanh.pop %v3726
      %v4047 = vtanh.pop %v3727
      %v4048 = vtanh.pop %v3728
      %v4049 = vtanh.pop %v3729
      %v4050 = vtanh.pop %v3730
      %v4051 = vtanh.pop %v3731
      %v4052 = vtanh.pop %v3732
      %v4053 = vtanh.pop %v3733
      %v4054 = vtanh.pop %v3734
      %v4055 = vtanh.pop %v3735
      %v4056 = vtanh.pop %v3736
      %v4057 = vtanh.pop %v3737
      %v4058 = vtanh.pop %v3738
      %v4059 = vtanh.pop %v3739
      %v4060 = vtanh.pop %v3740
      %v4061 = vtanh.pop %v3741
      %v4062 = vtanh.pop %v3742
      %v4063 = vtanh.pop %v3743
      %v4064 = vtanh.pop %v3744
      %v4065 = vtanh.pop %v3745
      %v4066 = vtanh.pop %v3746
      %v4067 = vtanh.pop %v3747
      %v4068 = vtanh.pop %v3748
      %v4069 = vtanh.pop %v3749
      %v4070 = vtanh.pop %v3750
      %v4071 = vtanh.pop %v3751
      %v4072 = vtanh.pop %v3752
      %v4073 = vtanh.pop %v3753
      %v4074 = vtanh.pop %v3754
      %v4075 = vtanh.pop %v3755
      %v4076 = vtanh.pop %v3756
      %v4077 = vtanh.pop %v3757
      %v4078 = vtanh.pop %v3758
      %v4079 = vtanh.pop %v3759
      %v4080 = vtanh.pop %v3760
      %v4081 = vtanh.pop %v3761
      %v4082 = vtanh.pop %v3762
      %v4083 = vtanh.pop %v3763
      %v4084 = vtanh.pop %v3764
      %v4085 = vtanh.pop %v3765
      %v4086 = vtanh.pop %v3766
      %v4087 = vtanh.pop %v3767
      %v4088 = vtanh.pop %v3768
      %v4089 = vtanh.pop %v3769
      %v4090 = vtanh.pop %v3770
      %v4091 = vtanh.pop %v3771
      %v4092 = vtanh.pop %v3772
      %v4093 = vtanh.pop %v3773
      %v4094 = vtanh.pop %v3774
      %v4095 = vtanh.pop %v3775
      %v4096 = vtanh.pop %v3776
      %v4097 = vtanh.pop %v3777
      %v4098 = vtanh.pop %v3778
      %v4099 = vtanh.pop %v3779
      %v4100 = vtanh.pop %v3780
      %v4101 = vtanh.pop %v3781
      %v4102 = vtanh.pop %v3782
      %v4103 = vtanh.pop %v3783
      %v4104 = vtanh.pop %v3784
      %v4105 = vtanh.pop %v3785
      %v4106 = vtanh.pop %v3786
      %v4107 = vtanh.pop %v3787
      %v4108 = vtanh.pop %v3788
      %v4109 = vtanh.pop %v3789
      %v4110 = vtanh.pop %v3790
      %v4111 = vtanh.pop %v3791
      %v4112 = vtanh.pop %v3792
      %v4113 = vtanh.pop %v3793
      %v4114 = vtanh.pop %v3794
      %v4115 = vtanh.pop %v3795
      %v4116 = vtanh.pop %v3796
      %v4117 = vtanh.pop %v3797
      %v4118 = vtanh.pop %v3798
      %v4119 = vtanh.pop %v3799
      %v4120 = vtanh.pop %v3800
      %v4121 = vtanh.pop %v3801
      %v4122 = vtanh.pop %v3802
      %v4123 = vtanh.pop %v3803
      %v4124 = vtanh.pop %v3804
      %v4125 = vtanh.pop %v3805
      %v4126 = vtanh.pop %v3806
      %v4127 = vtanh.pop %v3807
      %v4128 = vtanh.pop %v3808
      %v4129 = vtanh.pop %v3809
      %v4130 = vtanh.pop %v3810
      %v4131 = vtanh.pop %v3811
      %v4132 = vtanh.pop %v3812
      %v4133 = vtanh.pop %v3813
      %v4134 = vtanh.pop %v3814
      %v4135 = vtanh.pop %v3815
      %v4136 = vtanh.pop %v3816
      %v4137 = vtanh.pop %v3817
      %v4138 = vtanh.pop %v3818
      %v4139 = vtanh.pop %v3819
      %v4140 = vtanh.pop %v3820
      %v4141 = vtanh.pop %v3821
      %v4142 = vtanh.pop %v3822
      %v4143 = vmul.f32 %v3823, 0.5
      %v4144 = vmul.f32 %v3824, 0.5
      %v4145 = vmul.f32 %v3825, 0.5
      %v4146 = vmul.f32 %v3826, 0.5
      %v4147 = vmul.f32 %v3827, 0.5
      %v4148 = vmul.f32 %v3828, 0.5
      %v4149 = vmul.f32 %v3829, 0.5
      %v4150 = vmul.f32 %v3830, 0.5
      %v4151 = vmul.f32 %v3831, 0.5
      %v4152 = vmul.f32 %v3832, 0.5
      %v4153 = vmul.f32 %v3833, 0.5
      %v4154 = vmul.f32 %v3834, 0.5
      %v4155 = vmul.f32 %v3835, 0.5
      %v4156 = vmul.f32 %v3836, 0.5
      %v4157 = vmul.f32 %v3837, 0.5
      %v4158 = vmul.f32 %v3838, 0.5
      %v4159 = vmul.f32 %v3839, 0.5
      %v4160 = vmul.f32 %v3840, 0.5
      %v4161 = vmul.f32 %v3841, 0.5
      %v4162 = vmul.f32 %v3842, 0.5
      %v4163 = vmul.f32 %v3843, 0.5
      %v4164 = vmul.f32 %v3844, 0.5
      %v4165 = vmul.f32 %v3845, 0.5
      %v4166 = vmul.f32 %v3846, 0.5
      %v4167 = vmul.f32 %v3847, 0.5
      %v4168 = vmul.f32 %v3848, 0.5
      %v4169 = vmul.f32 %v3849, 0.5
      %v4170 = vmul.f32 %v3850, 0.5
      %v4171 = vmul.f32 %v3851, 0.5
      %v4172 = vmul.f32 %v3852, 0.5
      %v4173 = vmul.f32 %v3853, 0.5
      %v4174 = vmul.f32 %v3854, 0.5
      %v4175 = vmul.f32 %v3855, 0.5
      %v4176 = vmul.f32 %v3856, 0.5
      %v4177 = vmul.f32 %v3857, 0.5
      %v4178 = vmul.f32 %v3858, 0.5
      %v4179 = vmul.f32 %v3859, 0.5
      %v4180 = vmul.f32 %v3860, 0.5
      %v4181 = vmul.f32 %v3861, 0.5
      %v4182 = vmul.f32 %v3862, 0.5
      %v4183 = vmul.f32 %v3863, 0.5
      %v4184 = vmul.f32 %v3864, 0.5
      %v4185 = vmul.f32 %v3865, 0.5
      %v4186 = vmul.f32 %v3866, 0.5
      %v4187 = vmul.f32 %v3867, 0.5
      %v4188 = vmul.f32 %v3868, 0.5
      %v4189 = vmul.f32 %v3869, 0.5
      %v4190 = vmul.f32 %v3870, 0.5
      %v4191 = vmul.f32 %v3871, 0.5
      %v4192 = vmul.f32 %v3872, 0.5
      %v4193 = vmul.f32 %v3873, 0.5
      %v4194 = vmul.f32 %v3874, 0.5
      %v4195 = vmul.f32 %v3875, 0.5
      %v4196 = vmul.f32 %v3876, 0.5
      %v4197 = vmul.f32 %v3877, 0.5
      %v4198 = vmul.f32 %v3878, 0.5
      %v4199 = vmul.f32 %v3879, 0.5
      %v4200 = vmul.f32 %v3880, 0.5
      %v4201 = vmul.f32 %v3881, 0.5
      %v4202 = vmul.f32 %v3882, 0.5
      %v4203 = vmul.f32 %v3883, 0.5
      %v4204 = vmul.f32 %v3884, 0.5
      %v4205 = vmul.f32 %v3885, 0.5
      %v4206 = vmul.f32 %v3886, 0.5
      %v4207 = vmul.f32 %v3887, 0.5
      %v4208 = vmul.f32 %v3888, 0.5
      %v4209 = vmul.f32 %v3889, 0.5
      %v4210 = vmul.f32 %v3890, 0.5
      %v4211 = vmul.f32 %v3891, 0.5
      %v4212 = vmul.f32 %v3892, 0.5
      %v4213 = vmul.f32 %v3893, 0.5
      %v4214 = vmul.f32 %v3894, 0.5
      %v4215 = vmul.f32 %v3895, 0.5
      %v4216 = vmul.f32 %v3896, 0.5
      %v4217 = vmul.f32 %v3897, 0.5
      %v4218 = vmul.f32 %v3898, 0.5
      %v4219 = vmul.f32 %v3899, 0.5
      %v4220 = vmul.f32 %v3900, 0.5
      %v4221 = vmul.f32 %v3901, 0.5
      %v4222 = vmul.f32 %v3902, 0.5
      %v4223 = vmul.f32 %v3903, 0.5
      %v4224 = vmul.f32 %v3904, 0.5
      %v4225 = vmul.f32 %v3905, 0.5
      %v4226 = vmul.f32 %v3906, 0.5
      %v4227 = vmul.f32 %v3907, 0.5
      %v4228 = vmul.f32 %v3908, 0.5
      %v4229 = vmul.f32 %v3909, 0.5
      %v4230 = vmul.f32 %v3910, 0.5
      %v4231 = vmul.f32 %v3911, 0.5
      %v4232 = vmul.f32 %v3912, 0.5
      %v4233 = vmul.f32 %v3913, 0.5
      %v4234 = vmul.f32 %v3914, 0.5
      %v4235 = vmul.f32 %v3915, 0.5
      %v4236 = vmul.f32 %v3916, 0.5
      %v4237 = vmul.f32 %v3917, 0.5
      %v4238 = vmul.f32 %v3918, 0.5
      %v4239 = vmul.f32 %v3919, 0.5
      %v4240 = vmul.f32 %v3920, 0.5
      %v4241 = vmul.f32 %v3921, 0.5
      %v4242 = vmul.f32 %v3922, 0.5
      %v4243 = vmul.f32 %v3923, 0.5
      %v4244 = vmul.f32 %v3924, 0.5
      %v4245 = vmul.f32 %v3925, 0.5
      %v4246 = vmul.f32 %v3926, 0.5
      %v4247 = vmul.f32 %v3927, 0.5
      %v4248 = vmul.f32 %v3928, 0.5
      %v4249 = vmul.f32 %v3929, 0.5
      %v4250 = vmul.f32 %v3930, 0.5
      %v4251 = vmul.f32 %v3931, 0.5
      %v4252 = vmul.f32 %v3932, 0.5
      %v4253 = vmul.f32 %v3933, 0.5
      %v4254 = vmul.f32 %v3934, 0.5
      %v4255 = vmul.f32 %v3935, 0.5
      %v4256 = vmul.f32 %v3936, 0.5
      %v4257 = vmul.f32 %v3937, 0.5
      %v4258 = vmul.f32 %v3938, 0.5
      %v4259 = vmul.f32 %v3939, 0.5
      %v4260 = vmul.f32 %v3940, 0.5
      %v4261 = vmul.f32 %v3941, 0.5
      %v4262 = vmul.f32 %v3942, 0.5
      %v4263 = vmul.f32 %v3943, 0.5
      %v4264 = vmul.f32 %v3944, 0.5
      %v4265 = vmul.f32 %v3945, 0.5
      %v4266 = vmul.f32 %v3946, 0.5
      %v4267 = vmul.f32 %v3947, 0.5
      %v4268 = vmul.f32 %v3948, 0.5
      %v4269 = vmul.f32 %v3949, 0.5
      %v4270 = vmul.f32 %v3950, 0.5
      %v4271 = vmul.f32 %v3951, 0.5
      %v4272 = vmul.f32 %v3952, 0.5
      %v4273 = vmul.f32 %v3953, 0.5
      %v4274 = vmul.f32 %v3954, 0.5
      %v4275 = vmul.f32 %v3955, 0.5
      %v4276 = vmul.f32 %v3956, 0.5
      %v4277 = vmul.f32 %v3957, 0.5
      %v4278 = vmul.f32 %v3958, 0.5
      %v4279 = vmul.f32 %v3959, 0.5
      %v4280 = vmul.f32 %v3960, 0.5
      %v4281 = vmul.f32 %v3961, 0.5
      %v4282 = vmul.f32 %v3962, 0.5
      %v4283 = vmul.f32 %v3963, 0.5
      %v4284 = vmul.f32 %v3964, 0.5
      %v4285 = vmul.f32 %v3965, 0.5
      %v4286 = vmul.f32 %v3966, 0.5
      %v4287 = vmul.f32 %v3967, 0.5
      %v4288 = vmul.f32 %v3968, 0.5
      %v4289 = vmul.f32 %v3969, 0.5
      %v4290 = vmul.f32 %v3970, 0.5
      %v4291 = vmul.f32 %v3971, 0.5
      %v4292 = vmul.f32 %v3972, 0.5
      %v4293 = vmul.f32 %v3973, 0.5
      %v4294 = vmul.f32 %v3974, 0.5
      %v4295 = vmul.f32 %v3975, 0.5
      %v4296 = vmul.f32 %v3976, 0.5
      %v4297 = vmul.f32 %v3977, 0.5
      %v4298 = vmul.f32 %v3978, 0.5
      %v4299 = vmul.f32 %v3979, 0.5
      %v4300 = vmul.f32 %v3980, 0.5
      %v4301 = vmul.f32 %v3981, 0.5
      %v4302 = vmul.f32 %v3982, 0.5
      %v4303 = vmul.f32 %v3983, 0.5
      %v4304 = vmul.f32 %v3984, 0.5
      %v4305 = vmul.f32 %v3985, 0.5
      %v4306 = vmul.f32 %v3986, 0.5
      %v4307 = vmul.f32 %v3987, 0.5
      %v4308 = vmul.f32 %v3988, 0.5
      %v4309 = vmul.f32 %v3989, 0.5
      %v4310 = vmul.f32 %v3990, 0.5
      %v4311 = vmul.f32 %v3991, 0.5
      %v4312 = vmul.f32 %v3992, 0.5
      %v4313 = vmul.f32 %v3993, 0.5
      %v4314 = vmul.f32 %v3994, 0.5
      %v4315 = vmul.f32 %v3995, 0.5
      %v4316 = vmul.f32 %v3996, 0.5
      %v4317 = vmul.f32 %v3997, 0.5
      %v4318 = vmul.f32 %v3998, 0.5
      %v4319 = vmul.f32 %v3999, 0.5
      %v4320 = vmul.f32 %v4000, 0.5
      %v4321 = vmul.f32 %v4001, 0.5
      %v4322 = vmul.f32 %v4002, 0.5
      %v4323 = vmul.f32 %v4003, 0.5
      %v4324 = vmul.f32 %v4004, 0.5
      %v4325 = vmul.f32 %v4005, 0.5
      %v4326 = vmul.f32 %v4006, 0.5
      %v4327 = vmul.f32 %v4007, 0.5
      %v4328 = vmul.f32 %v4008, 0.5
      %v4329 = vmul.f32 %v4009, 0.5
      %v4330 = vmul.f32 %v4010, 0.5
      %v4331 = vmul.f32 %v4011, 0.5
      %v4332 = vmul.f32 %v4012, 0.5
      %v4333 = vmul.f32 %v4013, 0.5
      %v4334 = vmul.f32 %v4014, 0.5
      %v4335 = vmul.f32 %v4015, 0.5
      %v4336 = vmul.f32 %v4016, 0.5
      %v4337 = vmul.f32 %v4017, 0.5
      %v4338 = vmul.f32 %v4018, 0.5
      %v4339 = vmul.f32 %v4019, 0.5
      %v4340 = vmul.f32 %v4020, 0.5
      %v4341 = vmul.f32 %v4021, 0.5
      %v4342 = vmul.f32 %v4022, 0.5
      %v4343 = vmul.f32 %v4023, 0.5
      %v4344 = vmul.f32 %v4024, 0.5
      %v4345 = vmul.f32 %v4025, 0.5
      %v4346 = vmul.f32 %v4026, 0.5
      %v4347 = vmul.f32 %v4027, 0.5
      %v4348 = vmul.f32 %v4028, 0.5
      %v4349 = vmul.f32 %v4029, 0.5
      %v4350 = vmul.f32 %v4030, 0.5
      %v4351 = vmul.f32 %v4031, 0.5
      %v4352 = vmul.f32 %v4032, 0.5
      %v4353 = vmul.f32 %v4033, 0.5
      %v4354 = vmul.f32 %v4034, 0.5
      %v4355 = vmul.f32 %v4035, 0.5
      %v4356 = vmul.f32 %v4036, 0.5
      %v4357 = vmul.f32 %v4037, 0.5
      %v4358 = vmul.f32 %v4038, 0.5
      %v4359 = vmul.f32 %v4039, 0.5
      %v4360 = vmul.f32 %v4040, 0.5
      %v4361 = vmul.f32 %v4041, 0.5
      %v4362 = vmul.f32 %v4042, 0.5
      %v4363 = vmul.f32 %v4043, 0.5
      %v4364 = vmul.f32 %v4044, 0.5
      %v4365 = vmul.f32 %v4045, 0.5
      %v4366 = vmul.f32 %v4046, 0.5
      %v4367 = vmul.f32 %v4047, 0.5
      %v4368 = vmul.f32 %v4048, 0.5
      %v4369 = vmul.f32 %v4049, 0.5
      %v4370 = vmul.f32 %v4050, 0.5
      %v4371 = vmul.f32 %v4051, 0.5
      %v4372 = vmul.f32 %v4052, 0.5
      %v4373 = vmul.f32 %v4053, 0.5
      %v4374 = vmul.f32 %v4054, 0.5
      %v4375 = vmul.f32 %v4055, 0.5
      %v4376 = vmul.f32 %v4056, 0.5
      %v4377 = vmul.f32 %v4057, 0.5
      %v4378 = vmul.f32 %v4058, 0.5
      %v4379 = vmul.f32 %v4059, 0.5
      %v4380 = vmul.f32 %v4060, 0.5
      %v4381 = vmul.f32 %v4061, 0.5
      %v4382 = vmul.f32 %v4062, 0.5
      %v4383 = vmul.f32 %v4063, 0.5
      %v4384 = vmul.f32 %v4064, 0.5
      %v4385 = vmul.f32 %v4065, 0.5
      %v4386 = vmul.f32 %v4066, 0.5
      %v4387 = vmul.f32 %v4067, 0.5
      %v4388 = vmul.f32 %v4068, 0.5
      %v4389 = vmul.f32 %v4069, 0.5
      %v4390 = vmul.f32 %v4070, 0.5
      %v4391 = vmul.f32 %v4071, 0.5
      %v4392 = vmul.f32 %v4072, 0.5
      %v4393 = vmul.f32 %v4073, 0.5
      %v4394 = vmul.f32 %v4074, 0.5
      %v4395 = vmul.f32 %v4075, 0.5
      %v4396 = vmul.f32 %v4076, 0.5
      %v4397 = vmul.f32 %v4077, 0.5
      %v4398 = vmul.f32 %v4078, 0.5
      %v4399 = vmul.f32 %v4079, 0.5
      %v4400 = vmul.f32 %v4080, 0.5
      %v4401 = vmul.f32 %v4081, 0.5
      %v4402 = vmul.f32 %v4082, 0.5
      %v4403 = vmul.f32 %v4083, 0.5
      %v4404 = vmul.f32 %v4084, 0.5
      %v4405 = vmul.f32 %v4085, 0.5
      %v4406 = vmul.f32 %v4086, 0.5
      %v4407 = vmul.f32 %v4087, 0.5
      %v4408 = vmul.f32 %v4088, 0.5
      %v4409 = vmul.f32 %v4089, 0.5
      %v4410 = vmul.f32 %v4090, 0.5
      %v4411 = vmul.f32 %v4091, 0.5
      %v4412 = vmul.f32 %v4092, 0.5
      %v4413 = vmul.f32 %v4093, 0.5
      %v4414 = vmul.f32 %v4094, 0.5
      %v4415 = vmul.f32 %v4095, 0.5
      %v4416 = vmul.f32 %v4096, 0.5
      %v4417 = vmul.f32 %v4097, 0.5
      %v4418 = vmul.f32 %v4098, 0.5
      %v4419 = vmul.f32 %v4099, 0.5
      %v4420 = vmul.f32 %v4100, 0.5
      %v4421 = vmul.f32 %v4101, 0.5
      %v4422 = vmul.f32 %v4102, 0.5
      %v4423 = vmul.f32 %v4103, 0.5
      %v4424 = vmul.f32 %v4104, 0.5
      %v4425 = vmul.f32 %v4105, 0.5
      %v4426 = vmul.f32 %v4106, 0.5
      %v4427 = vmul.f32 %v4107, 0.5
      %v4428 = vmul.f32 %v4108, 0.5
      %v4429 = vmul.f32 %v4109, 0.5
      %v4430 = vmul.f32 %v4110, 0.5
      %v4431 = vmul.f32 %v4111, 0.5
      %v4432 = vmul.f32 %v4112, 0.5
      %v4433 = vmul.f32 %v4113, 0.5
      %v4434 = vmul.f32 %v4114, 0.5
      %v4435 = vmul.f32 %v4115, 0.5
      %v4436 = vmul.f32 %v4116, 0.5
      %v4437 = vmul.f32 %v4117, 0.5
      %v4438 = vmul.f32 %v4118, 0.5
      %v4439 = vmul.f32 %v4119, 0.5
      %v4440 = vmul.f32 %v4120, 0.5
      %v4441 = vmul.f32 %v4121, 0.5
      %v4442 = vmul.f32 %v4122, 0.5
      %v4443 = vmul.f32 %v4123, 0.5
      %v4444 = vmul.f32 %v4124, 0.5
      %v4445 = vmul.f32 %v4125, 0.5
      %v4446 = vmul.f32 %v4126, 0.5
      %v4447 = vmul.f32 %v4127, 0.5
      %v4448 = vmul.f32 %v4128, 0.5
      %v4449 = vmul.f32 %v4129, 0.5
      %v4450 = vmul.f32 %v4130, 0.5
      %v4451 = vmul.f32 %v4131, 0.5
      %v4452 = vmul.f32 %v4132, 0.5
      %v4453 = vmul.f32 %v4133, 0.5
      %v4454 = vmul.f32 %v4134, 0.5
      %v4455 = vmul.f32 %v4135, 0.5
      %v4456 = vmul.f32 %v4136, 0.5
      %v4457 = vmul.f32 %v4137, 0.5
      %v4458 = vmul.f32 %v4138, 0.5
      %v4459 = vmul.f32 %v4139, 0.5
      %v4460 = vmul.f32 %v4140, 0.5
      %v4461 = vmul.f32 %v4141, 0.5
      %v4462 = vmul.f32 %v4142, 0.5
      %v4463 = vadd.f32 %v4143, 0.5
      %v4464 = vadd.f32 %v4144, 0.5
      %v4465 = vadd.f32 %v4145, 0.5
      %v4466 = vadd.f32 %v4146, 0.5
      %v4467 = vadd.f32 %v4147, 0.5
      %v4468 = vadd.f32 %v4148, 0.5
      %v4469 = vadd.f32 %v4149, 0.5
      %v4470 = vadd.f32 %v4150, 0.5
      %v4471 = vadd.f32 %v4151, 0.5
      %v4472 = vadd.f32 %v4152, 0.5
      %v4473 = vadd.f32 %v4153, 0.5
      %v4474 = vadd.f32 %v4154, 0.5
      %v4475 = vadd.f32 %v4155, 0.5
      %v4476 = vadd.f32 %v4156, 0.5
      %v4477 = vadd.f32 %v4157, 0.5
      %v4478 = vadd.f32 %v4158, 0.5
      %v4479 = vadd.f32 %v4159, 0.5
      %v4480 = vadd.f32 %v4160, 0.5
      %v4481 = vadd.f32 %v4161, 0.5
      %v4482 = vadd.f32 %v4162, 0.5
      %v4483 = vadd.f32 %v4163, 0.5
      %v4484 = vadd.f32 %v4164, 0.5
      %v4485 = vadd.f32 %v4165, 0.5
      %v4486 = vadd.f32 %v4166, 0.5
      %v4487 = vadd.f32 %v4167, 0.5
      %v4488 = vadd.f32 %v4168, 0.5
      %v4489 = vadd.f32 %v4169, 0.5
      %v4490 = vadd.f32 %v4170, 0.5
      %v4491 = vadd.f32 %v4171, 0.5
      %v4492 = vadd.f32 %v4172, 0.5
      %v4493 = vadd.f32 %v4173, 0.5
      %v4494 = vadd.f32 %v4174, 0.5
      %v4495 = vadd.f32 %v4175, 0.5
      %v4496 = vadd.f32 %v4176, 0.5
      %v4497 = vadd.f32 %v4177, 0.5
      %v4498 = vadd.f32 %v4178, 0.5
      %v4499 = vadd.f32 %v4179, 0.5
      %v4500 = vadd.f32 %v4180, 0.5
      %v4501 = vadd.f32 %v4181, 0.5
      %v4502 = vadd.f32 %v4182, 0.5
      %v4503 = vadd.f32 %v4183, 0.5
      %v4504 = vadd.f32 %v4184, 0.5
      %v4505 = vadd.f32 %v4185, 0.5
      %v4506 = vadd.f32 %v4186, 0.5
      %v4507 = vadd.f32 %v4187, 0.5
      %v4508 = vadd.f32 %v4188, 0.5
      %v4509 = vadd.f32 %v4189, 0.5
      %v4510 = vadd.f32 %v4190, 0.5
      %v4511 = vadd.f32 %v4191, 0.5
      %v4512 = vadd.f32 %v4192, 0.5
      %v4513 = vadd.f32 %v4193, 0.5
      %v4514 = vadd.f32 %v4194, 0.5
      %v4515 = vadd.f32 %v4195, 0.5
      %v4516 = vadd.f32 %v4196, 0.5
      %v4517 = vadd.f32 %v4197, 0.5
      %v4518 = vadd.f32 %v4198, 0.5
      %v4519 = vadd.f32 %v4199, 0.5
      %v4520 = vadd.f32 %v4200, 0.5
      %v4521 = vadd.f32 %v4201, 0.5
      %v4522 = vadd.f32 %v4202, 0.5
      %v4523 = vadd.f32 %v4203, 0.5
      %v4524 = vadd.f32 %v4204, 0.5
      %v4525 = vadd.f32 %v4205, 0.5
      %v4526 = vadd.f32 %v4206, 0.5
      %v4527 = vadd.f32 %v4207, 0.5
      %v4528 = vadd.f32 %v4208, 0.5
      %v4529 = vadd.f32 %v4209, 0.5
      %v4530 = vadd.f32 %v4210, 0.5
      %v4531 = vadd.f32 %v4211, 0.5
      %v4532 = vadd.f32 %v4212, 0.5
      %v4533 = vadd.f32 %v4213, 0.5
      %v4534 = vadd.f32 %v4214, 0.5
      %v4535 = vadd.f32 %v4215, 0.5
      %v4536 = vadd.f32 %v4216, 0.5
      %v4537 = vadd.f32 %v4217, 0.5
      %v4538 = vadd.f32 %v4218, 0.5
      %v4539 = vadd.f32 %v4219, 0.5
      %v4540 = vadd.f32 %v4220, 0.5
      %v4541 = vadd.f32 %v4221, 0.5
      %v4542 = vadd.f32 %v4222, 0.5
      %v4543 = vadd.f32 %v4223, 0.5
      %v4544 = vadd.f32 %v4224, 0.5
      %v4545 = vadd.f32 %v4225, 0.5
      %v4546 = vadd.f32 %v4226, 0.5
      %v4547 = vadd.f32 %v4227, 0.5
      %v4548 = vadd.f32 %v4228, 0.5
      %v4549 = vadd.f32 %v4229, 0.5
      %v4550 = vadd.f32 %v4230, 0.5
      %v4551 = vadd.f32 %v4231, 0.5
      %v4552 = vadd.f32 %v4232, 0.5
      %v4553 = vadd.f32 %v4233, 0.5
      %v4554 = vadd.f32 %v4234, 0.5
      %v4555 = vadd.f32 %v4235, 0.5
      %v4556 = vadd.f32 %v4236, 0.5
      %v4557 = vadd.f32 %v4237, 0.5
      %v4558 = vadd.f32 %v4238, 0.5
      %v4559 = vadd.f32 %v4239, 0.5
      %v4560 = vadd.f32 %v4240, 0.5
      %v4561 = vadd.f32 %v4241, 0.5
      %v4562 = vadd.f32 %v4242, 0.5
      %v4563 = vadd.f32 %v4243, 0.5
      %v4564 = vadd.f32 %v4244, 0.5
      %v4565 = vadd.f32 %v4245, 0.5
      %v4566 = vadd.f32 %v4246, 0.5
      %v4567 = vadd.f32 %v4247, 0.5
      %v4568 = vadd.f32 %v4248, 0.5
      %v4569 = vadd.f32 %v4249, 0.5
      %v4570 = vadd.f32 %v4250, 0.5
      %v4571 = vadd.f32 %v4251, 0.5
      %v4572 = vadd.f32 %v4252, 0.5
      %v4573 = vadd.f32 %v4253, 0.5
      %v4574 = vadd.f32 %v4254, 0.5
      %v4575 = vadd.f32 %v4255, 0.5
      %v4576 = vadd.f32 %v4256, 0.5
      %v4577 = vadd.f32 %v4257, 0.5
      %v4578 = vadd.f32 %v4258, 0.5
      %v4579 = vadd.f32 %v4259, 0.5
      %v4580 = vadd.f32 %v4260, 0.5
      %v4581 = vadd.f32 %v4261, 0.5
      %v4582 = vadd.f32 %v4262, 0.5
      %v4583 = vadd.f32 %v4263, 0.5
      %v4584 = vadd.f32 %v4264, 0.5
      %v4585 = vadd.f32 %v4265, 0.5
      %v4586 = vadd.f32 %v4266, 0.5
      %v4587 = vadd.f32 %v4267, 0.5
      %v4588 = vadd.f32 %v4268, 0.5
      %v4589 = vadd.f32 %v4269, 0.5
      %v4590 = vadd.f32 %v4270, 0.5
      %v4591 = vadd.f32 %v4271, 0.5
      %v4592 = vadd.f32 %v4272, 0.5
      %v4593 = vadd.f32 %v4273, 0.5
      %v4594 = vadd.f32 %v4274, 0.5
      %v4595 = vadd.f32 %v4275, 0.5
      %v4596 = vadd.f32 %v4276, 0.5
      %v4597 = vadd.f32 %v4277, 0.5
      %v4598 = vadd.f32 %v4278, 0.5
      %v4599 = vadd.f32 %v4279, 0.5
      %v4600 = vadd.f32 %v4280, 0.5
      %v4601 = vadd.f32 %v4281, 0.5
      %v4602 = vadd.f32 %v4282, 0.5
      %v4603 = vadd.f32 %v4283, 0.5
      %v4604 = vadd.f32 %v4284, 0.5
      %v4605 = vadd.f32 %v4285, 0.5
      %v4606 = vadd.f32 %v4286, 0.5
      %v4607 = vadd.f32 %v4287, 0.5
      %v4608 = vadd.f32 %v4288, 0.5
      %v4609 = vadd.f32 %v4289, 0.5
      %v4610 = vadd.f32 %v4290, 0.5
      %v4611 = vadd.f32 %v4291, 0.5
      %v4612 = vadd.f32 %v4292, 0.5
      %v4613 = vadd.f32 %v4293, 0.5
      %v4614 = vadd.f32 %v4294, 0.5
      %v4615 = vadd.f32 %v4295, 0.5
      %v4616 = vadd.f32 %v4296, 0.5
      %v4617 = vadd.f32 %v4297, 0.5
      %v4618 = vadd.f32 %v4298, 0.5
      %v4619 = vadd.f32 %v4299, 0.5
      %v4620 = vadd.f32 %v4300, 0.5
      %v4621 = vadd.f32 %v4301, 0.5
      %v4622 = vadd.f32 %v4302, 0.5
      %v4623 = vadd.f32 %v4303, 0.5
      %v4624 = vadd.f32 %v4304, 0.5
      %v4625 = vadd.f32 %v4305, 0.5
      %v4626 = vadd.f32 %v4306, 0.5
      %v4627 = vadd.f32 %v4307, 0.5
      %v4628 = vadd.f32 %v4308, 0.5
      %v4629 = vadd.f32 %v4309, 0.5
      %v4630 = vadd.f32 %v4310, 0.5
      %v4631 = vadd.f32 %v4311, 0.5
      %v4632 = vadd.f32 %v4312, 0.5
      %v4633 = vadd.f32 %v4313, 0.5
      %v4634 = vadd.f32 %v4314, 0.5
      %v4635 = vadd.f32 %v4315, 0.5
      %v4636 = vadd.f32 %v4316, 0.5
      %v4637 = vadd.f32 %v4317, 0.5
      %v4638 = vadd.f32 %v4318, 0.5
      %v4639 = vadd.f32 %v4319, 0.5
      %v4640 = vadd.f32 %v4320, 0.5
      %v4641 = vadd.f32 %v4321, 0.5
      %v4642 = vadd.f32 %v4322, 0.5
      %v4643 = vadd.f32 %v4323, 0.5
      %v4644 = vadd.f32 %v4324, 0.5
      %v4645 = vadd.f32 %v4325, 0.5
      %v4646 = vadd.f32 %v4326, 0.5
      %v4647 = vadd.f32 %v4327, 0.5
      %v4648 = vadd.f32 %v4328, 0.5
      %v4649 = vadd.f32 %v4329, 0.5
      %v4650 = vadd.f32 %v4330, 0.5
      %v4651 = vadd.f32 %v4331, 0.5
      %v4652 = vadd.f32 %v4332, 0.5
      %v4653 = vadd.f32 %v4333, 0.5
      %v4654 = vadd.f32 %v4334, 0.5
      %v4655 = vadd.f32 %v4335, 0.5
      %v4656 = vadd.f32 %v4336, 0.5
      %v4657 = vadd.f32 %v4337, 0.5
      %v4658 = vadd.f32 %v4338, 0.5
      %v4659 = vadd.f32 %v4339, 0.5
      %v4660 = vadd.f32 %v4340, 0.5
      %v4661 = vadd.f32 %v4341, 0.5
      %v4662 = vadd.f32 %v4342, 0.5
      %v4663 = vadd.f32 %v4343, 0.5
      %v4664 = vadd.f32 %v4344, 0.5
      %v4665 = vadd.f32 %v4345, 0.5
      %v4666 = vadd.f32 %v4346, 0.5
      %v4667 = vadd.f32 %v4347, 0.5
      %v4668 = vadd.f32 %v4348, 0.5
      %v4669 = vadd.f32 %v4349, 0.5
      %v4670 = vadd.f32 %v4350, 0.5
      %v4671 = vadd.f32 %v4351, 0.5
      %v4672 = vadd.f32 %v4352, 0.5
      %v4673 = vadd.f32 %v4353, 0.5
      %v4674 = vadd.f32 %v4354, 0.5
      %v4675 = vadd.f32 %v4355, 0.5
      %v4676 = vadd.f32 %v4356, 0.5
      %v4677 = vadd.f32 %v4357, 0.5
      %v4678 = vadd.f32 %v4358, 0.5
      %v4679 = vadd.f32 %v4359, 0.5
      %v4680 = vadd.f32 %v4360, 0.5
      %v4681 = vadd.f32 %v4361, 0.5
      %v4682 = vadd.f32 %v4362, 0.5
      %v4683 = vadd.f32 %v4363, 0.5
      %v4684 = vadd.f32 %v4364, 0.5
      %v4685 = vadd.f32 %v4365, 0.5
      %v4686 = vadd.f32 %v4366, 0.5
      %v4687 = vadd.f32 %v4367, 0.5
      %v4688 = vadd.f32 %v4368, 0.5
      %v4689 = vadd.f32 %v4369, 0.5
      %v4690 = vadd.f32 %v4370, 0.5
      %v4691 = vadd.f32 %v4371, 0.5
      %v4692 = vadd.f32 %v4372, 0.5
      %v4693 = vadd.f32 %v4373, 0.5
      %v4694 = vadd.f32 %v4374, 0.5
      %v4695 = vadd.f32 %v4375, 0.5
      %v4696 = vadd.f32 %v4376, 0.5
      %v4697 = vadd.f32 %v4377, 0.5
      %v4698 = vadd.f32 %v4378, 0.5
      %v4699 = vadd.f32 %v4379, 0.5
      %v4700 = vadd.f32 %v4380, 0.5
      %v4701 = vadd.f32 %v4381, 0.5
      %v4702 = vadd.f32 %v4382, 0.5
      %v4703 = vadd.f32 %v4383, 0.5
      %v4704 = vadd.f32 %v4384, 0.5
      %v4705 = vadd.f32 %v4385, 0.5
      %v4706 = vadd.f32 %v4386, 0.5
      %v4707 = vadd.f32 %v4387, 0.5
      %v4708 = vadd.f32 %v4388, 0.5
      %v4709 = vadd.f32 %v4389, 0.5
      %v4710 = vadd.f32 %v4390, 0.5
      %v4711 = vadd.f32 %v4391, 0.5
      %v4712 = vadd.f32 %v4392, 0.5
      %v4713 = vadd.f32 %v4393, 0.5
      %v4714 = vadd.f32 %v4394, 0.5
      %v4715 = vadd.f32 %v4395, 0.5
      %v4716 = vadd.f32 %v4396, 0.5
      %v4717 = vadd.f32 %v4397, 0.5
      %v4718 = vadd.f32 %v4398, 0.5
      %v4719 = vadd.f32 %v4399, 0.5
      %v4720 = vadd.f32 %v4400, 0.5
      %v4721 = vadd.f32 %v4401, 0.5
      %v4722 = vadd.f32 %v4402, 0.5
      %v4723 = vadd.f32 %v4403, 0.5
      %v4724 = vadd.f32 %v4404, 0.5
      %v4725 = vadd.f32 %v4405, 0.5
      %v4726 = vadd.f32 %v4406, 0.5
      %v4727 = vadd.f32 %v4407, 0.5
      %v4728 = vadd.f32 %v4408, 0.5
      %v4729 = vadd.f32 %v4409, 0.5
      %v4730 = vadd.f32 %v4410, 0.5
      %v4731 = vadd.f32 %v4411, 0.5
      %v4732 = vadd.f32 %v4412, 0.5
      %v4733 = vadd.f32 %v4413, 0.5
      %v4734 = vadd.f32 %v4414, 0.5
      %v4735 = vadd.f32 %v4415, 0.5
      %v4736 = vadd.f32 %v4416, 0.5
      %v4737 = vadd.f32 %v4417, 0.5
      %v4738 = vadd.f32 %v4418, 0.5
      %v4739 = vadd.f32 %v4419, 0.5
      %v4740 = vadd.f32 %v4420, 0.5
      %v4741 = vadd.f32 %v4421, 0.5
      %v4742 = vadd.f32 %v4422, 0.5
      %v4743 = vadd.f32 %v4423, 0.5
      %v4744 = vadd.f32 %v4424, 0.5
      %v4745 = vadd.f32 %v4425, 0.5
      %v4746 = vadd.f32 %v4426, 0.5
      %v4747 = vadd.f32 %v4427, 0.5
      %v4748 = vadd.f32 %v4428, 0.5
      %v4749 = vadd.f32 %v4429, 0.5
      %v4750 = vadd.f32 %v4430, 0.5
      %v4751 = vadd.f32 %v4431, 0.5
      %v4752 = vadd.f32 %v4432, 0.5
      %v4753 = vadd.f32 %v4433, 0.5
      %v4754 = vadd.f32 %v4434, 0.5
      %v4755 = vadd.f32 %v4435, 0.5
      %v4756 = vadd.f32 %v4436, 0.5
      %v4757 = vadd.f32 %v4437, 0.5
      %v4758 = vadd.f32 %v4438, 0.5
      %v4759 = vadd.f32 %v4439, 0.5
      %v4760 = vadd.f32 %v4440, 0.5
      %v4761 = vadd.f32 %v4441, 0.5
      %v4762 = vadd.f32 %v4442, 0.5
      %v4763 = vadd.f32 %v4443, 0.5
      %v4764 = vadd.f32 %v4444, 0.5
      %v4765 = vadd.f32 %v4445, 0.5
      %v4766 = vadd.f32 %v4446, 0.5
      %v4767 = vadd.f32 %v4447, 0.5
      %v4768 = vadd.f32 %v4448, 0.5
      %v4769 = vadd.f32 %v4449, 0.5
      %v4770 = vadd.f32 %v4450, 0.5
      %v4771 = vadd.f32 %v4451, 0.5
      %v4772 = vadd.f32 %v4452, 0.5
      %v4773 = vadd.f32 %v4453, 0.5
      %v4774 = vadd.f32 %v4454, 0.5
      %v4775 = vadd.f32 %v4455, 0.5
      %v4776 = vadd.f32 %v4456, 0.5
      %v4777 = vadd.f32 %v4457, 0.5
      %v4778 = vadd.f32 %v4458, 0.5
      %v4779 = vadd.f32 %v4459, 0.5
      %v4780 = vadd.f32 %v4460, 0.5
      %v4781 = vadd.f32 %v4461, 0.5
      %v4782 = vadd.f32 %v4462, 0.5
      %v4783 = vmul.f32 %v2573, %v4463
      %v4784 = vmul.f32 %v2575, %v4464
      %v4785 = vmul.f32 %v2766, %v4465
      %v4786 = vmul.f32 %v2768, %v4466
      %v4787 = vmul.f32 %v2959, %v4467
      %v4788 = vmul.f32 %v2961, %v4468
      %v4789 = vmul.f32 %v3152, %v4469
      %v4790 = vmul.f32 %v3154, %v4470
      %v4791 = vmul.f32 %v3345, %v4471
      %v4792 = vmul.f32 %v3347, %v4472
      %v4793 = vmul.f32 %v2577, %v4473
      %v4794 = vmul.f32 %v2579, %v4474
      %v4795 = vmul.f32 %v2770, %v4475
      %v4796 = vmul.f32 %v2772, %v4476
      %v4797 = vmul.f32 %v2963, %v4477
      %v4798 = vmul.f32 %v2965, %v4478
      %v4799 = vmul.f32 %v3156, %v4479
      %v4800 = vmul.f32 %v3158, %v4480
      %v4801 = vmul.f32 %v3349, %v4481
      %v4802 = vmul.f32 %v3351, %v4482
      %v4803 = vmul.f32 %v2583, %v4483
      %v4804 = vmul.f32 %v2585, %v4484
      %v4805 = vmul.f32 %v2776, %v4485
      %v4806 = vmul.f32 %v2778, %v4486
      %v4807 = vmul.f32 %v2969, %v4487
      %v4808 = vmul.f32 %v2971, %v4488
      %v4809 = vmul.f32 %v3162, %v4489
      %v4810 = vmul.f32 %v3164, %v4490
      %v4811 = vmul.f32 %v3355, %v4491
      %v4812 = vmul.f32 %v3357, %v4492
      %v4813 = vmul.f32 %v2587, %v4493
      %v4814 = vmul.f32 %v2589, %v4494
      %v4815 = vmul.f32 %v2780, %v4495
      %v4816 = vmul.f32 %v2782, %v4496
      %v4817 = vmul.f32 %v2973, %v4497
      %v4818 = vmul.f32 %v2975, %v4498
      %v4819 = vmul.f32 %v3166, %v4499
      %v4820 = vmul.f32 %v3168, %v4500
      %v4821 = vmul.f32 %v3359, %v4501
      %v4822 = vmul.f32 %v3361, %v4502
      %v4823 = vmul.f32 %v2593, %v4503
      %v4824 = vmul.f32 %v2595, %v4504
      %v4825 = vmul.f32 %v2786, %v4505
      %v4826 = vmul.f32 %v2788, %v4506
      %v4827 = vmul.f32 %v2979, %v4507
      %v4828 = vmul.f32 %v2981, %v4508
      %v4829 = vmul.f32 %v3172, %v4509
      %v4830 = vmul.f32 %v3174, %v4510
      %v4831 = vmul.f32 %v3365, %v4511
      %v4832 = vmul.f32 %v3367, %v4512
      %v4833 = vmul.f32 %v2597, %v4513
      %v4834 = vmul.f32 %v2599, %v4514
      %v4835 = vmul.f32 %v2790, %v4515
      %v4836 = vmul.f32 %v2792, %v4516
      %v4837 = vmul.f32 %v2983, %v4517
      %v4838 = vmul.f32 %v2985, %v4518
      %v4839 = vmul.f32 %v3176, %v4519
      %v4840 = vmul.f32 %v3178, %v4520
      %v4841 = vmul.f32 %v3369, %v4521
      %v4842 = vmul.f32 %v3371, %v4522
      %v4843 = vmul.f32 %v2603, %v4523
      %v4844 = vmul.f32 %v2605, %v4524
      %v4845 = vmul.f32 %v2796, %v4525
      %v4846 = vmul.f32 %v2798, %v4526
      %v4847 = vmul.f32 %v2989, %v4527
      %v4848 = vmul.f32 %v2991, %v4528
      %v4849 = vmul.f32 %v3182, %v4529
      %v4850 = vmul.f32 %v3184, %v4530
      %v4851 = vmul.f32 %v3375, %v4531
      %v4852 = vmul.f32 %v3377, %v4532
      %v4853 = vmul.f32 %v2607, %v4533
      %v4854 = vmul.f32 %v2609, %v4534
      %v4855 = vmul.f32 %v2800, %v4535
      %v4856 = vmul.f32 %v2802, %v4536
      %v4857 = vmul.f32 %v2993, %v4537
      %v4858 = vmul.f32 %v2995, %v4538
      %v4859 = vmul.f32 %v3186, %v4539
      %v4860 = vmul.f32 %v3188, %v4540
      %v4861 = vmul.f32 %v3379, %v4541
      %v4862 = vmul.f32 %v3381, %v4542
      %v4863 = vmul.f32 %v2613, %v4543
      %v4864 = vmul.f32 %v2615, %v4544
      %v4865 = vmul.f32 %v2806, %v4545
      %v4866 = vmul.f32 %v2808, %v4546
      %v4867 = vmul.f32 %v2999, %v4547
      %v4868 = vmul.f32 %v3001, %v4548
      %v4869 = vmul.f32 %v3192, %v4549
      %v4870 = vmul.f32 %v3194, %v4550
      %v4871 = vmul.f32 %v3385, %v4551
      %v4872 = vmul.f32 %v3387, %v4552
      %v4873 = vmul.f32 %v2617, %v4553
      %v4874 = vmul.f32 %v2619, %v4554
      %v4875 = vmul.f32 %v2810, %v4555
      %v4876 = vmul.f32 %v2812, %v4556
      %v4877 = vmul.f32 %v3003, %v4557
      %v4878 = vmul.f32 %v3005, %v4558
      %v4879 = vmul.f32 %v3196, %v4559
      %v4880 = vmul.f32 %v3198, %v4560
      %v4881 = vmul.f32 %v3389, %v4561
      %v4882 = vmul.f32 %v3391, %v4562
      %v4883 = vmul.f32 %v2623, %v4563
      %v4884 = vmul.f32 %v2625, %v4564
      %v4885 = vmul.f32 %v2816, %v4565
      %v4886 = vmul.f32 %v2818, %v4566
      %v4887 = vmul.f32 %v3009, %v4567
      %v4888 = vmul.f32 %v3011, %v4568
      %v4889 = vmul.f32 %v3202, %v4569
      %v4890 = vmul.f32 %v3204, %v4570
      %v4891 = vmul.f32 %v3395, %v4571
      %v4892 = vmul.f32 %v3397, %v4572
      %v4893 = vmul.f32 %v2627, %v4573
      %v4894 = vmul.f32 %v2629, %v4574
      %v4895 = vmul.f32 %v2820, %v4575
      %v4896 = vmul.f32 %v2822, %v4576
      %v4897 = vmul.f32 %v3013, %v4577
      %v4898 = vmul.f32 %v3015, %v4578
      %v4899 = vmul.f32 %v3206, %v4579
      %v4900 = vmul.f32 %v3208, %v4580
      %v4901 = vmul.f32 %v3399, %v4581
      %v4902 = vmul.f32 %v3401, %v4582
      %v4903 = vmul.f32 %v2633, %v4583
      %v4904 = vmul.f32 %v2635, %v4584
      %v4905 = vmul.f32 %v2826, %v4585
      %v4906 = vmul.f32 %v2828, %v4586
      %v4907 = vmul.f32 %v3019, %v4587
      %v4908 = vmul.f32 %v3021, %v4588
      %v4909 = vmul.f32 %v3212, %v4589
      %v4910 = vmul.f32 %v3214, %v4590
      %v4911 = vmul.f32 %v3405, %v4591
      %v4912 = vmul.f32 %v3407, %v4592
      %v4913 = vmul.f32 %v2637, %v4593
      %v4914 = vmul.f32 %v2639, %v4594
      %v4915 = vmul.f32 %v2830, %v4595
      %v4916 = vmul.f32 %v2832, %v4596
      %v4917 = vmul.f32 %v3023, %v4597
      %v4918 = vmul.f32 %v3025, %v4598
      %v4919 = vmul.f32 %v3216, %v4599
      %v4920 = vmul.f32 %v3218, %v4600
      %v4921 = vmul.f32 %v3409, %v4601
      %v4922 = vmul.f32 %v3411, %v4602
      %v4923 = vmul.f32 %v2643, %v4603
      %v4924 = vmul.f32 %v2645, %v4604
      %v4925 = vmul.f32 %v2836, %v4605
      %v4926 = vmul.f32 %v2838, %v4606
      %v4927 = vmul.f32 %v3029, %v4607
      %v4928 = vmul.f32 %v3031, %v4608
      %v4929 = vmul.f32 %v3222, %v4609
      %v4930 = vmul.f32 %v3224, %v4610
      %v4931 = vmul.f32 %v3415, %v4611
      %v4932 = vmul.f32 %v3417, %v4612
      %v4933 = vmul.f32 %v2647, %v4613
      %v4934 = vmul.f32 %v2649, %v4614
      %v4935 = vmul.f32 %v2840, %v4615
      %v4936 = vmul.f32 %v2842, %v4616
      %v4937 = vmul.f32 %v3033, %v4617
      %v4938 = vmul.f32 %v3035, %v4618
      %v4939 = vmul.f32 %v3226, %v4619
      %v4940 = vmul.f32 %v3228, %v4620
      %v4941 = vmul.f32 %v3419, %v4621
      %v4942 = vmul.f32 %v3421, %v4622
      %v4943 = vmul.f32 %v2653, %v4623
      %v4944 = vmul.f32 %v2655, %v4624
      %v4945 = vmul.f32 %v2846, %v4625
      %v4946 = vmul.f32 %v2848, %v4626
      %v4947 = vmul.f32 %v3039, %v4627
      %v4948 = vmul.f32 %v3041, %v4628
      %v4949 = vmul.f32 %v3232, %v4629
      %v4950 = vmul.f32 %v3234, %v4630
      %v4951 = vmul.f32 %v3425, %v4631
      %v4952 = vmul.f32 %v3427, %v4632
      %v4953 = vmul.f32 %v2657, %v4633
      %v4954 = vmul.f32 %v2659, %v4634
      %v4955 = vmul.f32 %v2850, %v4635
      %v4956 = vmul.f32 %v2852, %v4636
      %v4957 = vmul.f32 %v3043, %v4637
      %v4958 = vmul.f32 %v3045, %v4638
      %v4959 = vmul.f32 %v3236, %v4639
      %v4960 = vmul.f32 %v3238, %v4640
      %v4961 = vmul.f32 %v3429, %v4641
      %v4962 = vmul.f32 %v3431, %v4642
      %v4963 = vmul.f32 %v2663, %v4643
      %v4964 = vmul.f32 %v2665, %v4644
      %v4965 = vmul.f32 %v2856, %v4645
      %v4966 = vmul.f32 %v2858, %v4646
      %v4967 = vmul.f32 %v3049, %v4647
      %v4968 = vmul.f32 %v3051, %v4648
      %v4969 = vmul.f32 %v3242, %v4649
      %v4970 = vmul.f32 %v3244, %v4650
      %v4971 = vmul.f32 %v3435, %v4651
      %v4972 = vmul.f32 %v3437, %v4652
      %v4973 = vmul.f32 %v2667, %v4653
      %v4974 = vmul.f32 %v2669, %v4654
      %v4975 = vmul.f32 %v2860, %v4655
      %v4976 = vmul.f32 %v2862, %v4656
      %v4977 = vmul.f32 %v3053, %v4657
      %v4978 = vmul.f32 %v3055, %v4658
      %v4979 = vmul.f32 %v3246, %v4659
      %v4980 = vmul.f32 %v3248, %v4660
      %v4981 = vmul.f32 %v3439, %v4661
      %v4982 = vmul.f32 %v3441, %v4662
      %v4983 = vmul.f32 %v2673, %v4663
      %v4984 = vmul.f32 %v2675, %v4664
      %v4985 = vmul.f32 %v2866, %v4665
      %v4986 = vmul.f32 %v2868, %v4666
      %v4987 = vmul.f32 %v3059, %v4667
      %v4988 = vmul.f32 %v3061, %v4668
      %v4989 = vmul.f32 %v3252, %v4669
      %v4990 = vmul.f32 %v3254, %v4670
      %v4991 = vmul.f32 %v3445, %v4671
      %v4992 = vmul.f32 %v3447, %v4672
      %v4993 = vmul.f32 %v2677, %v4673
      %v4994 = vmul.f32 %v2679, %v4674
      %v4995 = vmul.f32 %v2870, %v4675
      %v4996 = vmul.f32 %v2872, %v4676
      %v4997 = vmul.f32 %v3063, %v4677
      %v4998 = vmul.f32 %v3065, %v4678
      %v4999 = vmul.f32 %v3256, %v4679
      %v5000 = vmul.f32 %v3258, %v4680
      %v5001 = vmul.f32 %v3449, %v4681
      %v5002 = vmul.f32 %v3451, %v4682
      %v5003 = vmul.f32 %v2683, %v4683
      %v5004 = vmul.f32 %v2685, %v4684
      %v5005 = vmul.f32 %v2876, %v4685
      %v5006 = vmul.f32 %v2878, %v4686
      %v5007 = vmul.f32 %v3069, %v4687
      %v5008 = vmul.f32 %v3071, %v4688
      %v5009 = vmul.f32 %v3262, %v4689
      %v5010 = vmul.f32 %v3264, %v4690
      %v5011 = vmul.f32 %v3455, %v4691
      %v5012 = vmul.f32 %v3457, %v4692
      %v5013 = vmul.f32 %v2687, %v4693
      %v5014 = vmul.f32 %v2689, %v4694
      %v5015 = vmul.f32 %v2880, %v4695
      %v5016 = vmul.f32 %v2882, %v4696
      %v5017 = vmul.f32 %v3073, %v4697
      %v5018 = vmul.f32 %v3075, %v4698
      %v5019 = vmul.f32 %v3266, %v4699
      %v5020 = vmul.f32 %v3268, %v4700
      %v5021 = vmul.f32 %v3459, %v4701
      %v5022 = vmul.f32 %v3461, %v4702
      %v5023 = vmul.f32 %v2693, %v4703
      %v5024 = vmul.f32 %v2695, %v4704
      %v5025 = vmul.f32 %v2886, %v4705
      %v5026 = vmul.f32 %v2888, %v4706
      %v5027 = vmul.f32 %v3079, %v4707
      %v5028 = vmul.f32 %v3081, %v4708
      %v5029 = vmul.f32 %v3272, %v4709
      %v5030 = vmul.f32 %v3274, %v4710
      %v5031 = vmul.f32 %v3465, %v4711
      %v5032 = vmul.f32 %v3467, %v4712
      %v5033 = vmul.f32 %v2697, %v4713
      %v5034 = vmul.f32 %v2699, %v4714
      %v5035 = vmul.f32 %v2890, %v4715
      %v5036 = vmul.f32 %v2892, %v4716
      %v5037 = vmul.f32 %v3083, %v4717
      %v5038 = vmul.f32 %v3085, %v4718
      %v5039 = vmul.f32 %v3276, %v4719
      %v5040 = vmul.f32 %v3278, %v4720
      %v5041 = vmul.f32 %v3469, %v4721
      %v5042 = vmul.f32 %v3471, %v4722
      %v5043 = vmul.f32 %v2703, %v4723
      %v5044 = vmul.f32 %v2705, %v4724
      %v5045 = vmul.f32 %v2896, %v4725
      %v5046 = vmul.f32 %v2898, %v4726
      %v5047 = vmul.f32 %v3089, %v4727
      %v5048 = vmul.f32 %v3091, %v4728
      %v5049 = vmul.f32 %v3282, %v4729
      %v5050 = vmul.f32 %v3284, %v4730
      %v5051 = vmul.f32 %v3475, %v4731
      %v5052 = vmul.f32 %v3477, %v4732
      %v5053 = vmul.f32 %v2707, %v4733
      %v5054 = vmul.f32 %v2709, %v4734
      %v5055 = vmul.f32 %v2900, %v4735
      %v5056 = vmul.f32 %v2902, %v4736
      %v5057 = vmul.f32 %v3093, %v4737
      %v5058 = vmul.f32 %v3095, %v4738
      %v5059 = vmul.f32 %v3286, %v4739
      %v5060 = vmul.f32 %v3288, %v4740
      %v5061 = vmul.f32 %v3479, %v4741
      %v5062 = vmul.f32 %v3481, %v4742
      %v5063 = vmul.f32 %v2713, %v4743
      %v5064 = vmul.f32 %v2715, %v4744
      %v5065 = vmul.f32 %v2906, %v4745
      %v5066 = vmul.f32 %v2908, %v4746
      %v5067 = vmul.f32 %v3099, %v4747
      %v5068 = vmul.f32 %v3101, %v4748
      %v5069 = vmul.f32 %v3292, %v4749
      %v5070 = vmul.f32 %v3294, %v4750
      %v5071 = vmul.f32 %v3485, %v4751
      %v5072 = vmul.f32 %v3487, %v4752
      %v5073 = vmul.f32 %v2717, %v4753
      %v5074 = vmul.f32 %v2719, %v4754
      %v5075 = vmul.f32 %v2910, %v4755
      %v5076 = vmul.f32 %v2912, %v4756
      %v5077 = vmul.f32 %v3103, %v4757
      %v5078 = vmul.f32 %v3105, %v4758
      %v5079 = vmul.f32 %v3296, %v4759
      %v5080 = vmul.f32 %v3298, %v4760
      %v5081 = vmul.f32 %v3489, %v4761
      %v5082 = vmul.f32 %v3491, %v4762
      %v5083 = vmul.f32 %v2723, %v4763
      %v5084 = vmul.f32 %v2725, %v4764
      %v5085 = vmul.f32 %v2916, %v4765
      %v5086 = vmul.f32 %v2918, %v4766
      %v5087 = vmul.f32 %v3109, %v4767
      %v5088 = vmul.f32 %v3111, %v4768
      %v5089 = vmul.f32 %v3302, %v4769
      %v5090 = vmul.f32 %v3304, %v4770
      %v5091 = vmul.f32 %v3495, %v4771
      %v5092 = vmul.f32 %v3497, %v4772
      %v5093 = vmul.f32 %v2727, %v4773
      %v5094 = vmul.f32 %v2729, %v4774
      %v5095 = vmul.f32 %v2920, %v4775
      %v5096 = vmul.f32 %v2922, %v4776
      %v5097 = vmul.f32 %v3113, %v4777
      %v5098 = vmul.f32 %v3115, %v4778
      %v5099 = vmul.f32 %v3306, %v4779
      %v5100 = vmul.f32 %v3308, %v4780
      %v5101 = vmul.f32 %v3499, %v4781
      %v5102 = vmul.f32 %v3501, %v4782
      %v5103 = vld [vmem:[#allocation2] sm:$0xff]
      %v5104 = vld [vmem:[#allocation2 + $0x8] sm:$0xff]
      %v5105 = vld [vmem:[#allocation2 + $0x10] sm:$0xff]
      %v5106 = vld [vmem:[#allocation2 + $0x18] sm:$0xff]
      %v5107 = vld [vmem:[#allocation2 + $0x20] sm:$0xff]
      %v5108 = vld [vmem:[#allocation2 + $0x28] sm:$0xff]
      %v5109 = vld [vmem:[#allocation2 + $0x30] sm:$0xff]
      %v5110 = vld [vmem:[#allocation2 + $0x38] sm:$0xff]
      %v5111 = vld [vmem:[#allocation2 + $0x40] sm:$0xff]
      %v5112 = vld [vmem:[#allocation2 + $0x48] sm:$0xff]
      %v5113 = vadd.f32 %v4783, %v4793
      %v5114 = vadd.f32 %v5113, %v4803
      %v5115 = vadd.f32 %v5114, %v4813
      %v5116 = vadd.f32 %v5115, %v4823
      %v5117 = vadd.f32 %v5116, %v4833
      %v5118 = vadd.f32 %v5117, %v4843
      %v5119 = vadd.f32 %v5118, %v4853
      %v5120 = vadd.f32 %v5119, %v4863
      %v5121 = vadd.f32 %v5120, %v4873
      %v5122 = vadd.f32 %v5121, %v4883
      %v5123 = vadd.f32 %v5122, %v4893
      %v5124 = vadd.f32 %v5123, %v4903
      %v5125 = vadd.f32 %v5124, %v4913
      %v5126 = vadd.f32 %v5125, %v4923
      %v5127 = vadd.f32 %v5126, %v4933
      %v5128 = vadd.f32 %v5127, %v4943
      %v5129 = vadd.f32 %v5128, %v4953
      %v5130 = vadd.f32 %v5129, %v4963
      %v5131 = vadd.f32 %v5130, %v4973
      %v5132 = vadd.f32 %v5131, %v4983
      %v5133 = vadd.f32 %v5132, %v4993
      %v5134 = vadd.f32 %v5133, %v5003
      %v5135 = vadd.f32 %v5134, %v5013
      %v5136 = vadd.f32 %v5135, %v5023
      %v5137 = vadd.f32 %v5136, %v5033
      %v5138 = vadd.f32 %v5137, %v5043
      %v5139 = vadd.f32 %v5138, %v5053
      %v5140 = vadd.f32 %v5139, %v5063
      %v5141 = vadd.f32 %v5140, %v5073
      %v5142 = vadd.f32 %v5141, %v5083
      %v5143 = vadd.f32 %v5142, %v5093
      %v5144 = vadd.f32 %v4784, %v4794
      %v5145 = vadd.f32 %v5144, %v4804
      %v5146 = vadd.f32 %v5145, %v4814
      %v5147 = vadd.f32 %v5146, %v4824
      %v5148 = vadd.f32 %v5147, %v4834
      %v5149 = vadd.f32 %v5148, %v4844
      %v5150 = vadd.f32 %v5149, %v4854
      %v5151 = vadd.f32 %v5150, %v4864
      %v5152 = vadd.f32 %v5151, %v4874
      %v5153 = vadd.f32 %v5152, %v4884
      %v5154 = vadd.f32 %v5153, %v4894
      %v5155 = vadd.f32 %v5154, %v4904
      %v5156 = vadd.f32 %v5155, %v4914
      %v5157 = vadd.f32 %v5156, %v4924
      %v5158 = vadd.f32 %v5157, %v4934
      %v5159 = vadd.f32 %v5158, %v4944
      %v5160 = vadd.f32 %v5159, %v4954
      %v5161 = vadd.f32 %v5160, %v4964
      %v5162 = vadd.f32 %v5161, %v4974
      %v5163 = vadd.f32 %v5162, %v4984
      %v5164 = vadd.f32 %v5163, %v4994
      %v5165 = vadd.f32 %v5164, %v5004
      %v5166 = vadd.f32 %v5165, %v5014
      %v5167 = vadd.f32 %v5166, %v5024
      %v5168 = vadd.f32 %v5167, %v5034
      %v5169 = vadd.f32 %v5168, %v5044
      %v5170 = vadd.f32 %v5169, %v5054
      %v5171 = vadd.f32 %v5170, %v5064
      %v5172 = vadd.f32 %v5171, %v5074
      %v5173 = vadd.f32 %v5172, %v5084
      %v5174 = vadd.f32 %v5173, %v5094
      %v5175 = vadd.f32 %v4785, %v4795
      %v5176 = vadd.f32 %v5175, %v4805
      %v5177 = vadd.f32 %v5176, %v4815
      %v5178 = vadd.f32 %v5177, %v4825
      %v5179 = vadd.f32 %v5178, %v4835
      %v5180 = vadd.f32 %v5179, %v4845
      %v5181 = vadd.f32 %v5180, %v4855
      %v5182 = vadd.f32 %v5181, %v4865
      %v5183 = vadd.f32 %v5182, %v4875
      %v5184 = vadd.f32 %v5183, %v4885
      %v5185 = vadd.f32 %v5184, %v4895
      %v5186 = vadd.f32 %v5185, %v4905
      %v5187 = vadd.f32 %v5186, %v4915
      %v5188 = vadd.f32 %v5187, %v4925
      %v5189 = vadd.f32 %v5188, %v4935
      %v5190 = vadd.f32 %v5189, %v4945
      %v5191 = vadd.f32 %v5190, %v4955
      %v5192 = vadd.f32 %v5191, %v4965
      %v5193 = vadd.f32 %v5192, %v4975
      %v5194 = vadd.f32 %v5193, %v4985
      %v5195 = vadd.f32 %v5194, %v4995
      %v5196 = vadd.f32 %v5195, %v5005
      %v5197 = vadd.f32 %v5196, %v5015
      %v5198 = vadd.f32 %v5197, %v5025
      %v5199 = vadd.f32 %v5198, %v5035
      %v5200 = vadd.f32 %v5199, %v5045
      %v5201 = vadd.f32 %v5200, %v5055
      %v5202 = vadd.f32 %v5201, %v5065
      %v5203 = vadd.f32 %v5202, %v5075
      %v5204 = vadd.f32 %v5203, %v5085
      %v5205 = vadd.f32 %v5204, %v5095
      %v5206 = vadd.f32 %v4786, %v4796
      %v5207 = vadd.f32 %v5206, %v4806
      %v5208 = vadd.f32 %v5207, %v4816
      %v5209 = vadd.f32 %v5208, %v4826
      %v5210 = vadd.f32 %v5209, %v4836
      %v5211 = vadd.f32 %v5210, %v4846
      %v5212 = vadd.f32 %v5211, %v4856
      %v5213 = vadd.f32 %v5212, %v4866
      %v5214 = vadd.f32 %v5213, %v4876
      %v5215 = vadd.f32 %v5214, %v4886
      %v5216 = vadd.f32 %v5215, %v4896
      %v5217 = vadd.f32 %v5216, %v4906
      %v5218 = vadd.f32 %v5217, %v4916
      %v5219 = vadd.f32 %v5218, %v4926
      %v5220 = vadd.f32 %v5219, %v4936
      %v5221 = vadd.f32 %v5220, %v4946
      %v5222 = vadd.f32 %v5221, %v4956
      %v5223 = vadd.f32 %v5222, %v4966
      %v5224 = vadd.f32 %v5223, %v4976
      %v5225 = vadd.f32 %v5224, %v4986
      %v5226 = vadd.f32 %v5225, %v4996
      %v5227 = vadd.f32 %v5226, %v5006
      %v5228 = vadd.f32 %v5227, %v5016
      %v5229 = vadd.f32 %v5228, %v5026
      %v5230 = vadd.f32 %v5229, %v5036
      %v5231 = vadd.f32 %v5230, %v5046
      %v5232 = vadd.f32 %v5231, %v5056
      %v5233 = vadd.f32 %v5232, %v5066
      %v5234 = vadd.f32 %v5233, %v5076
      %v5235 = vadd.f32 %v5234, %v5086
      %v5236 = vadd.f32 %v5235, %v5096
      %v5237 = vadd.f32 %v4787, %v4797
      %v5238 = vadd.f32 %v5237, %v4807
      %v5239 = vadd.f32 %v5238, %v4817
      %v5240 = vadd.f32 %v5239, %v4827
      %v5241 = vadd.f32 %v5240, %v4837
      %v5242 = vadd.f32 %v5241, %v4847
      %v5243 = vadd.f32 %v5242, %v4857
      %v5244 = vadd.f32 %v5243, %v4867
      %v5245 = vadd.f32 %v5244, %v4877
      %v5246 = vadd.f32 %v5245, %v4887
      %v5247 = vadd.f32 %v5246, %v4897
      %v5248 = vadd.f32 %v5247, %v4907
      %v5249 = vadd.f32 %v5248, %v4917
      %v5250 = vadd.f32 %v5249, %v4927
      %v5251 = vadd.f32 %v5250, %v4937
      %v5252 = vadd.f32 %v5251, %v4947
      %v5253 = vadd.f32 %v5252, %v4957
      %v5254 = vadd.f32 %v5253, %v4967
      %v5255 = vadd.f32 %v5254, %v4977
      %v5256 = vadd.f32 %v5255, %v4987
      %v5257 = vadd.f32 %v5256, %v4997
      %v5258 = vadd.f32 %v5257, %v5007
      %v5259 = vadd.f32 %v5258, %v5017
      %v5260 = vadd.f32 %v5259, %v5027
      %v5261 = vadd.f32 %v5260, %v5037
      %v5262 = vadd.f32 %v5261, %v5047
      %v5263 = vadd.f32 %v5262, %v5057
      %v5264 = vadd.f32 %v5263, %v5067
      %v5265 = vadd.f32 %v5264, %v5077
      %v5266 = vadd.f32 %v5265, %v5087
      %v5267 = vadd.f32 %v5266, %v5097
      %v5268 = vadd.f32 %v4788, %v4798
      %v5269 = vadd.f32 %v5268, %v4808
      %v5270 = vadd.f32 %v5269, %v4818
      %v5271 = vadd.f32 %v5270, %v4828
      %v5272 = vadd.f32 %v5271, %v4838
      %v5273 = vadd.f32 %v5272, %v4848
      %v5274 = vadd.f32 %v5273, %v4858
      %v5275 = vadd.f32 %v5274, %v4868
      %v5276 = vadd.f32 %v5275, %v4878
      %v5277 = vadd.f32 %v5276, %v4888
      %v5278 = vadd.f32 %v5277, %v4898
      %v5279 = vadd.f32 %v5278, %v4908
      %v5280 = vadd.f32 %v5279, %v4918
      %v5281 = vadd.f32 %v5280, %v4928
      %v5282 = vadd.f32 %v5281, %v4938
      %v5283 = vadd.f32 %v5282, %v4948
      %v5284 = vadd.f32 %v5283, %v4958
      %v5285 = vadd.f32 %v5284, %v4968
      %v5286 = vadd.f32 %v5285, %v4978
      %v5287 = vadd.f32 %v5286, %v4988
      %v5288 = vadd.f32 %v5287, %v4998
      %v5289 = vadd.f32 %v5288, %v5008
      %v5290 = vadd.f32 %v5289, %v5018
      %v5291 = vadd.f32 %v5290, %v5028
      %v5292 = vadd.f32 %v5291, %v5038
      %v5293 = vadd.f32 %v5292, %v5048
      %v5294 = vadd.f32 %v5293, %v5058
      %v5295 = vadd.f32 %v5294, %v5068
      %v5296 = vadd.f32 %v5295, %v5078
      %v5297 = vadd.f32 %v5296, %v5088
      %v5298 = vadd.f32 %v5297, %v5098
      %v5299 = vadd.f32 %v4789, %v4799
      %v5300 = vadd.f32 %v5299, %v4809
      %v5301 = vadd.f32 %v5300, %v4819
      %v5302 = vadd.f32 %v5301, %v4829
      %v5303 = vadd.f32 %v5302, %v4839
      %v5304 = vadd.f32 %v5303, %v4849
      %v5305 = vadd.f32 %v5304, %v4859
      %v5306 = vadd.f32 %v5305, %v4869
      %v5307 = vadd.f32 %v5306, %v4879
      %v5308 = vadd.f32 %v5307, %v4889
      %v5309 = vadd.f32 %v5308, %v4899
      %v5310 = vadd.f32 %v5309, %v4909
      %v5311 = vadd.f32 %v5310, %v4919
      %v5312 = vadd.f32 %v5311, %v4929
      %v5313 = vadd.f32 %v5312, %v4939
      %v5314 = vadd.f32 %v5313, %v4949
      %v5315 = vadd.f32 %v5314, %v4959
      %v5316 = vadd.f32 %v5315, %v4969
      %v5317 = vadd.f32 %v5316, %v4979
      %v5318 = vadd.f32 %v5317, %v4989
      %v5319 = vadd.f32 %v5318, %v4999
      %v5320 = vadd.f32 %v5319, %v5009
      %v5321 = vadd.f32 %v5320, %v5019
      %v5322 = vadd.f32 %v5321, %v5029
      %v5323 = vadd.f32 %v5322, %v5039
      %v5324 = vadd.f32 %v5323, %v5049
      %v5325 = vadd.f32 %v5324, %v5059
      %v5326 = vadd.f32 %v5325, %v5069
      %v5327 = vadd.f32 %v5326, %v5079
      %v5328 = vadd.f32 %v5327, %v5089
      %v5329 = vadd.f32 %v5328, %v5099
      %v5330 = vadd.f32 %v4790, %v4800
      %v5331 = vadd.f32 %v5330, %v4810
      %v5332 = vadd.f32 %v5331, %v4820
      %v5333 = vadd.f32 %v5332, %v4830
      %v5334 = vadd.f32 %v5333, %v4840
      %v5335 = vadd.f32 %v5334, %v4850
      %v5336 = vadd.f32 %v5335, %v4860
      %v5337 = vadd.f32 %v5336, %v4870
      %v5338 = vadd.f32 %v5337, %v4880
      %v5339 = vadd.f32 %v5338, %v4890
      %v5340 = vadd.f32 %v5339, %v4900
      %v5341 = vadd.f32 %v5340, %v4910
      %v5342 = vadd.f32 %v5341, %v4920
      %v5343 = vadd.f32 %v5342, %v4930
      %v5344 = vadd.f32 %v5343, %v4940
      %v5345 = vadd.f32 %v5344, %v4950
      %v5346 = vadd.f32 %v5345, %v4960
      %v5347 = vadd.f32 %v5346, %v4970
      %v5348 = vadd.f32 %v5347, %v4980
      %v5349 = vadd.f32 %v5348, %v4990
      %v5350 = vadd.f32 %v5349, %v5000
      %v5351 = vadd.f32 %v5350, %v5010
      %v5352 = vadd.f32 %v5351, %v5020
      %v5353 = vadd.f32 %v5352, %v5030
      %v5354 = vadd.f32 %v5353, %v5040
      %v5355 = vadd.f32 %v5354, %v5050
      %v5356 = vadd.f32 %v5355, %v5060
      %v5357 = vadd.f32 %v5356, %v5070
      %v5358 = vadd.f32 %v5357, %v5080
      %v5359 = vadd.f32 %v5358, %v5090
      %v5360 = vadd.f32 %v5359, %v5100
      %v5361 = vadd.f32 %v4791, %v4801
      %v5362 = vadd.f32 %v5361, %v4811
      %v5363 = vadd.f32 %v5362, %v4821
      %v5364 = vadd.f32 %v5363, %v4831
      %v5365 = vadd.f32 %v5364, %v4841
      %v5366 = vadd.f32 %v5365, %v4851
      %v5367 = vadd.f32 %v5366, %v4861
      %v5368 = vadd.f32 %v5367, %v4871
      %v5369 = vadd.f32 %v5368, %v4881
      %v5370 = vadd.f32 %v5369, %v4891
      %v5371 = vadd.f32 %v5370, %v4901
      %v5372 = vadd.f32 %v5371, %v4911
      %v5373 = vadd.f32 %v5372, %v4921
      %v5374 = vadd.f32 %v5373, %v4931
      %v5375 = vadd.f32 %v5374, %v4941
      %v5376 = vadd.f32 %v5375, %v4951
      %v5377 = vadd.f32 %v5376, %v4961
      %v5378 = vadd.f32 %v5377, %v4971
      %v5379 = vadd.f32 %v5378, %v4981
      %v5380 = vadd.f32 %v5379, %v4991
      %v5381 = vadd.f32 %v5380, %v5001
      %v5382 = vadd.f32 %v5381, %v5011
      %v5383 = vadd.f32 %v5382, %v5021
      %v5384 = vadd.f32 %v5383, %v5031
      %v5385 = vadd.f32 %v5384, %v5041
      %v5386 = vadd.f32 %v5385, %v5051
      %v5387 = vadd.f32 %v5386, %v5061
      %v5388 = vadd.f32 %v5387, %v5071
      %v5389 = vadd.f32 %v5388, %v5081
      %v5390 = vadd.f32 %v5389, %v5091
      %v5391 = vadd.f32 %v5390, %v5101
      %v5392 = vadd.f32 %v4792, %v4802
      %v5393 = vadd.f32 %v5392, %v4812
      %v5394 = vadd.f32 %v5393, %v4822
      %v5395 = vadd.f32 %v5394, %v4832
      %v5396 = vadd.f32 %v5395, %v4842
      %v5397 = vadd.f32 %v5396, %v4852
      %v5398 = vadd.f32 %v5397, %v4862
      %v5399 = vadd.f32 %v5398, %v4872
      %v5400 = vadd.f32 %v5399, %v4882
      %v5401 = vadd.f32 %v5400, %v4892
      %v5402 = vadd.f32 %v5401, %v4902
      %v5403 = vadd.f32 %v5402, %v4912
      %v5404 = vadd.f32 %v5403, %v4922
      %v5405 = vadd.f32 %v5404, %v4932
      %v5406 = vadd.f32 %v5405, %v4942
      %v5407 = vadd.f32 %v5406, %v4952
      %v5408 = vadd.f32 %v5407, %v4962
      %v5409 = vadd.f32 %v5408, %v4972
      %v5410 = vadd.f32 %v5409, %v4982
      %v5411 = vadd.f32 %v5410, %v4992
      %v5412 = vadd.f32 %v5411, %v5002
      %v5413 = vadd.f32 %v5412, %v5012
      %v5414 = vadd.f32 %v5413, %v5022
      %v5415 = vadd.f32 %v5414, %v5032
      %v5416 = vadd.f32 %v5415, %v5042
      %v5417 = vadd.f32 %v5416, %v5052
      %v5418 = vadd.f32 %v5417, %v5062
      %v5419 = vadd.f32 %v5418, %v5072
      %v5420 = vadd.f32 %v5419, %v5082
      %v5421 = vadd.f32 %v5420, %v5092
      %v5422 = vadd.f32 %v5421, %v5102
      %v5423 = vadd.f32 %v5103, %v5143
      %v5424 = vadd.f32 %v5104, %v5174
      %v5425 = vadd.f32 %v5105, %v5205
      %v5426 = vadd.f32 %v5106, %v5236
      %v5427 = vadd.f32 %v5107, %v5267
      %v5428 = vadd.f32 %v5108, %v5298
      %v5429 = vadd.f32 %v5109, %v5329
      %v5430 = vadd.f32 %v5110, %v5360
      %v5431 = vadd.f32 %v5111, %v5391
      %v5432 = vadd.f32 %v5112, %v5422
      %5433 = vst [vmem:[#allocation2] sm:$0xff] %v5423
      %5434 = vst [vmem:[#allocation2 + $0x8] sm:$0xff] %v5424
      %5435 = vst [vmem:[#allocation2 + $0x10] sm:$0xff] %v5425
      %5436 = vst [vmem:[#allocation2 + $0x18] sm:$0xff] %v5426
      %5437 = vst [vmem:[#allocation2 + $0x20] sm:$0xff] %v5427
      %5438 = vst [vmem:[#allocation2 + $0x28] sm:$0xff] %v5428
      %5439 = vst [vmem:[#allocation2 + $0x30] sm:$0xff] %v5429
      %5440 = vst [vmem:[#allocation2 + $0x38] sm:$0xff] %v5430
      %5441 = vst [vmem:[#allocation2 + $0x40] sm:$0xff] %v5431
      %5442 = vst [vmem:[#allocation2 + $0x48] sm:$0xff] %v5432
      // Predicated region
      $region61: #{catornot_forward.1} parent=55 // pred_check
        %p5443 = pneg %p360
      $region62: #{catornot_forward.1} parent=55 // pred_check_branch
        %5445 = sbr.rel (%p5443) target = $region64
      $region63: #{catornot_forward.1} parent=55 // pred_region
        %v5446 = vld [vmem:[#allocation2] sm:$0xff]
        %v5447 = vld [vmem:[#allocation2 + $0x8] sm:$0xff]
        %v5448 = vld [vmem:[#allocation2 + $0x10] sm:$0xff]
        %v5449 = vld [vmem:[#allocation2 + $0x18] sm:$0xff]
        %v5450 = vld [vmem:[#allocation2 + $0x20] sm:$0xff]
        %v5451 = vld [vmem:[#allocation2 + $0x28] sm:$0xff]
        %v5452 = vld [vmem:[#allocation2 + $0x30] sm:$0xff]
        %v5453 = vld [vmem:[#allocation2 + $0x38] sm:$0xff]
        %v5454 = vld [vmem:[#allocation2 + $0x40] sm:$0xff]
        %v5455 = vld [vmem:[#allocation2 + $0x48] sm:$0xff]
        %v5456 = vrot.slane %v5446, 4
        %v5457 = vadd.f32 %v5446, %v5456
        %v5458 = vrot.slane %v5457, 2
        %v5459 = vadd.f32 %v5457, %v5458
        %v5460 = vrot.slane %v5459, 1
        %v5461 = vadd.f32 %v5459, %v5460
        %v5462 = vrot.slane %v5447, 4
        %v5463 = vadd.f32 %v5447, %v5462
        %v5464 = vrot.slane %v5463, 2
        %v5465 = vadd.f32 %v5463, %v5464
        %v5466 = vrot.slane %v5465, 1
        %v5467 = vadd.f32 %v5465, %v5466
        %v5468 = vrot.slane %v5448, 4
        %v5469 = vadd.f32 %v5448, %v5468
        %v5470 = vrot.slane %v5469, 2
        %v5471 = vadd.f32 %v5469, %v5470
        %v5472 = vrot.slane %v5471, 1
        %v5473 = vadd.f32 %v5471, %v5472
        %v5474 = vrot.slane %v5449, 4
        %v5475 = vadd.f32 %v5449, %v5474
        %v5476 = vrot.slane %v5475, 2
        %v5477 = vadd.f32 %v5475, %v5476
        %v5478 = vrot.slane %v5477, 1
        %v5479 = vadd.f32 %v5477, %v5478
        %v5480 = vrot.slane %v5450, 4
        %v5481 = vadd.f32 %v5450, %v5480
        %v5482 = vrot.slane %v5481, 2
        %v5483 = vadd.f32 %v5481, %v5482
        %v5484 = vrot.slane %v5483, 1
        %v5485 = vadd.f32 %v5483, %v5484
        %v5486 = vrot.slane %v5451, 4
        %v5487 = vadd.f32 %v5451, %v5486
        %v5488 = vrot.slane %v5487, 2
        %v5489 = vadd.f32 %v5487, %v5488
        %v5490 = vrot.slane %v5489, 1
        %v5491 = vadd.f32 %v5489, %v5490
        %v5492 = vrot.slane %v5452, 4
        %v5493 = vadd.f32 %v5452, %v5492
        %v5494 = vrot.slane %v5493, 2
        %v5495 = vadd.f32 %v5493, %v5494
        %v5496 = vrot.slane %v5495, 1
        %v5497 = vadd.f32 %v5495, %v5496
        %v5498 = vrot.slane %v5453, 4
        %v5499 = vadd.f32 %v5453, %v5498
        %v5500 = vrot.slane %v5499, 2
        %v5501 = vadd.f32 %v5499, %v5500
        %v5502 = vrot.slane %v5501, 1
        %v5503 = vadd.f32 %v5501, %v5502
        %v5504 = vrot.slane %v5454, 4
        %v5505 = vadd.f32 %v5454, %v5504
        %v5506 = vrot.slane %v5505, 2
        %v5507 = vadd.f32 %v5505, %v5506
        %v5508 = vrot.slane %v5507, 1
        %v5509 = vadd.f32 %v5507, %v5508
        %v5510 = vrot.slane %v5455, 4
        %v5511 = vadd.f32 %v5455, %v5510
        %v5512 = vrot.slane %v5511, 2
        %v5513 = vadd.f32 %v5511, %v5512
        %v5514 = vrot.slane %v5513, 1
        %v5515 = vadd.f32 %v5513, %v5514
        %v5516 = vmul.f32 %v5461, 0.00390625
        %v5517 = vmul.f32 %v5467, 0.00390625
        %v5518 = vmul.f32 %v5473, 0.00390625
        %v5519 = vmul.f32 %v5479, 0.00390625
        %v5520 = vmul.f32 %v5485, 0.00390625
        %v5521 = vmul.f32 %v5491, 0.00390625
        %v5522 = vmul.f32 %v5497, 0.00390625
        %v5523 = vmul.f32 %v5503, 0.00390625
        %v5524 = vmul.f32 %v5509, 0.00390625
        %v5525 = vmul.f32 %v5515, 0.00390625
        %v5526 = vpack.c.bf16 %v5516, %v5516
        %v5527 = vpack.c.bf16 %v5517, %v5517
        %v5528 = vpack.c.bf16 %v5518, %v5518
        %v5529 = vpack.c.bf16 %v5519, %v5519
        %v5530 = vpack.c.bf16 %v5520, %v5520
        %v5531 = vpack.c.bf16 %v5521, %v5521
        %v5532 = vpack.c.bf16 %v5522, %v5522
        %v5533 = vpack.c.bf16 %v5523, %v5523
        %v5534 = vpack.c.bf16 %v5524, %v5524
        %v5535 = vpack.c.bf16 %v5525, %v5525
        %v5536 = vld [vmem:[%s7] sm:$0xf]
        %v5537 = vld [vmem:[%s7 + $0x4] sm:$0xf]
        %v5538 = vld [vmem:[%s7 + $0x8] sm:$0xf]
        %v5539 = vld [vmem:[%s7 + $0xc] sm:$0xf]
        %v5540 = vld [vmem:[%s7 + $0x10] sm:$0xf]
        %v5541 = vld [vmem:[%s7 + $0x14] sm:$0xf]
        %v5542 = vld [vmem:[%s7 + $0x18] sm:$0xf]
        %v5543 = vld [vmem:[%s7 + $0x1c] sm:$0xf]
        %v5544 = vld [vmem:[%s7 + $0x20] sm:$0xf]
        %v5545 = vld [vmem:[%s7 + $0x24] sm:$0xf]
        %v5546 = vld [vmem:[%s7 + $0x28] sm:$0xf]
        %v5547 = vld [vmem:[%s7 + $0x2c] sm:$0xf]
        %v5548 = vld [vmem:[%s7 + $0x30] sm:$0xf]
        %v5549 = vld [vmem:[%s7 + $0x34] sm:$0xf]
        %v5550 = vld [vmem:[%s7 + $0x38] sm:$0xf]
        %v5551 = vld [vmem:[%s7 + $0x3c] sm:$0xf]
        %v5552 = vld [vmem:[%s7 + $0x40] sm:$0xf]
        %v5553 = vld [vmem:[%s7 + $0x44] sm:$0xf]
        %v5554 = vld [vmem:[%s7 + $0x48] sm:$0xf]
        %v5555 = vld [vmem:[%s7 + $0x4c] sm:$0xf]
        %v5556 = vld [vmem:[%s7 + $0x50] sm:$0xf]
        %v5557 = vld [vmem:[%s7 + $0x54] sm:$0xf]
        %v5558 = vld [vmem:[%s7 + $0x58] sm:$0xf]
        %v5559 = vld [vmem:[%s7 + $0x5c] sm:$0xf]
        %v5560 = vld [vmem:[%s7 + $0x60] sm:$0xf]
        %v5561 = vld [vmem:[%s7 + $0x64] sm:$0xf]
        %v5562 = vld [vmem:[%s7 + $0x68] sm:$0xf]
        %v5563 = vld [vmem:[%s7 + $0x6c] sm:$0xf]
        %v5564 = vld [vmem:[%s7 + $0x70] sm:$0xf]
        %v5565 = vld [vmem:[%s7 + $0x74] sm:$0xf]
        %v5566 = vld [vmem:[%s7 + $0x78] sm:$0xf]
        %v5567 = vld [vmem:[%s7 + $0x7c] sm:$0xf]
        %v5568 = vld [vmem:[%s7 + $0x80] sm:$0xf]
        %v5569 = vld [vmem:[%s7 + $0x84] sm:$0xf]
        %v5570 = vld [vmem:[%s7 + $0x88] sm:$0xf]
        %v5571 = vld [vmem:[%s7 + $0x8c] sm:$0xf]
        %v5572 = vld [vmem:[%s7 + $0x90] sm:$0xf]
        %v5573 = vld [vmem:[%s7 + $0x94] sm:$0xf]
        %v5574 = vld [vmem:[%s7 + $0x98] sm:$0xf]
        %v5575 = vld [vmem:[%s7 + $0x9c] sm:$0xf]
        %v5576 = vld [vmem:[%s7 + $0xa0] sm:$0xf]
        %v5577 = vld [vmem:[%s7 + $0xa4] sm:$0xf]
        %v5578 = vld [vmem:[%s7 + $0xa8] sm:$0xf]
        %v5579 = vld [vmem:[%s7 + $0xac] sm:$0xf]
        %v5580 = vld [vmem:[%s7 + $0xb0] sm:$0xf]
        %v5581 = vld [vmem:[%s7 + $0xb4] sm:$0xf]
        %v5582 = vld [vmem:[%s7 + $0xb8] sm:$0xf]
        %v5583 = vld [vmem:[%s7 + $0xbc] sm:$0xf]
        %v5584 = vld [vmem:[%s7 + $0xc0] sm:$0xf]
        %v5585 = vld [vmem:[%s7 + $0xc4] sm:$0xf]
        %v5586 = vld [vmem:[%s7 + $0xc8] sm:$0xf]
        %v5587 = vld [vmem:[%s7 + $0xcc] sm:$0xf]
        %v5588 = vld [vmem:[%s7 + $0xd0] sm:$0xf]
        %v5589 = vld [vmem:[%s7 + $0xd4] sm:$0xf]
        %v5590 = vld [vmem:[%s7 + $0xd8] sm:$0xf]
        %v5591 = vld [vmem:[%s7 + $0xdc] sm:$0xf]
        %v5592 = vld [vmem:[%s7 + $0xe0] sm:$0xf]
        %v5593 = vld [vmem:[%s7 + $0xe4] sm:$0xf]
        %v5594 = vld [vmem:[%s7 + $0xe8] sm:$0xf]
        %v5595 = vld [vmem:[%s7 + $0xec] sm:$0xf]
        %v5596 = vld [vmem:[%s7 + $0xf0] sm:$0xf]
        %v5597 = vld [vmem:[%s7 + $0xf4] sm:$0xf]
        %v5598 = vld [vmem:[%s7 + $0xf8] sm:$0xf]
        %v5599 = vld [vmem:[%s7 + $0xfc] sm:$0xf]
        %v5600 = vld [vmem:[%s7 + $0x100] sm:$0xf]
        %v5601 = vld [vmem:[%s7 + $0x104] sm:$0xf]
        %v5602 = vld [vmem:[%s7 + $0x108] sm:$0xf]
        %v5603 = vld [vmem:[%s7 + $0x10c] sm:$0xf]
        %v5604 = vld [vmem:[%s7 + $0x110] sm:$0xf]
        %v5605 = vld [vmem:[%s7 + $0x114] sm:$0xf]
        %v5606 = vld [vmem:[%s7 + $0x118] sm:$0xf]
        %v5607 = vld [vmem:[%s7 + $0x11c] sm:$0xf]
        %v5608 = vld [vmem:[%s7 + $0x120] sm:$0xf]
        %v5609 = vld [vmem:[%s7 + $0x124] sm:$0xf]
        %v5610 = vld [vmem:[%s7 + $0x128] sm:$0xf]
        %v5611 = vld [vmem:[%s7 + $0x12c] sm:$0xf]
        %v5612 = vld [vmem:[%s7 + $0x130] sm:$0xf]
        %v5613 = vld [vmem:[%s7 + $0x134] sm:$0xf]
        %v5614 = vld [vmem:[%s7 + $0x138] sm:$0xf]
        %v5615 = vld [vmem:[%s7 + $0x13c] sm:$0xf]
        %v5616 = vld [vmem:[%s7 + $0x140] sm:$0xf]
        %v5617 = vld [vmem:[%s7 + $0x144] sm:$0xf]
        %v5618 = vld [vmem:[%s7 + $0x148] sm:$0xf]
        %v5619 = vld [vmem:[%s7 + $0x14c] sm:$0xf]
        %v5620 = vld [vmem:[%s7 + $0x150] sm:$0xf]
        %v5621 = vld [vmem:[%s7 + $0x154] sm:$0xf]
        %v5622 = vld [vmem:[%s7 + $0x158] sm:$0xf]
        %v5623 = vld [vmem:[%s7 + $0x15c] sm:$0xf]
        %v5624 = vld [vmem:[%s7 + $0x160] sm:$0xf]
        %v5625 = vld [vmem:[%s7 + $0x164] sm:$0xf]
        %v5626 = vld [vmem:[%s7 + $0x168] sm:$0xf]
        %v5627 = vld [vmem:[%s7 + $0x16c] sm:$0xf]
        %v5628 = vld [vmem:[%s7 + $0x170] sm:$0xf]
        %v5629 = vld [vmem:[%s7 + $0x174] sm:$0xf]
        %v5630 = vld [vmem:[%s7 + $0x178] sm:$0xf]
        %v5631 = vld [vmem:[%s7 + $0x17c] sm:$0xf]
        %v5632 = vld [vmem:[%s7 + $0x180] sm:$0xf]
        %v5633 = vld [vmem:[%s7 + $0x184] sm:$0xf]
        %v5634 = vld [vmem:[%s7 + $0x188] sm:$0xf]
        %v5635 = vld [vmem:[%s7 + $0x18c] sm:$0xf]
        %v5636 = vld [vmem:[%s7 + $0x190] sm:$0xf]
        %v5637 = vld [vmem:[%s7 + $0x194] sm:$0xf]
        %v5638 = vld [vmem:[%s7 + $0x198] sm:$0xf]
        %v5639 = vld [vmem:[%s7 + $0x19c] sm:$0xf]
        %v5640 = vld [vmem:[%s7 + $0x1a0] sm:$0xf]
        %v5641 = vld [vmem:[%s7 + $0x1a4] sm:$0xf]
        %v5642 = vld [vmem:[%s7 + $0x1a8] sm:$0xf]
        %v5643 = vld [vmem:[%s7 + $0x1ac] sm:$0xf]
        %v5644 = vld [vmem:[%s7 + $0x1b0] sm:$0xf]
        %v5645 = vld [vmem:[%s7 + $0x1b4] sm:$0xf]
        %v5646 = vld [vmem:[%s7 + $0x1b8] sm:$0xf]
        %v5647 = vld [vmem:[%s7 + $0x1bc] sm:$0xf]
        %v5648 = vld [vmem:[%s7 + $0x1c0] sm:$0xf]
        %v5649 = vld [vmem:[%s7 + $0x1c4] sm:$0xf]
        %v5650 = vld [vmem:[%s7 + $0x1c8] sm:$0xf]
        %v5651 = vld [vmem:[%s7 + $0x1cc] sm:$0xf]
        %v5652 = vld [vmem:[%s7 + $0x1d0] sm:$0xf]
        %v5653 = vld [vmem:[%s7 + $0x1d4] sm:$0xf]
        %v5654 = vld [vmem:[%s7 + $0x1d8] sm:$0xf]
        %v5655 = vld [vmem:[%s7 + $0x1dc] sm:$0xf]
        %v5656 = vld [vmem:[%s7 + $0x1e0] sm:$0xf]
        %v5657 = vld [vmem:[%s7 + $0x1e4] sm:$0xf]
        %v5658 = vld [vmem:[%s7 + $0x1e8] sm:$0xf]
        %v5659 = vld [vmem:[%s7 + $0x1ec] sm:$0xf]
        %v5660 = vld [vmem:[%s7 + $0x1f0] sm:$0xf]
        %v5661 = vld [vmem:[%s7 + $0x1f4] sm:$0xf]
        %v5662 = vld [vmem:[%s7 + $0x1f8] sm:$0xf]
        %v5663 = vld [vmem:[%s7 + $0x1fc] sm:$0xf]
        %v5664 = vld [vmem:[%s7 + $0x200] sm:$0xf]
        %v5665 = vld [vmem:[%s7 + $0x204] sm:$0xf]
        %v5666 = vld [vmem:[%s7 + $0x208] sm:$0xf]
        %v5667 = vld [vmem:[%s7 + $0x20c] sm:$0xf]
        %v5668 = vld [vmem:[%s7 + $0x210] sm:$0xf]
        %v5669 = vld [vmem:[%s7 + $0x214] sm:$0xf]
        %v5670 = vld [vmem:[%s7 + $0x218] sm:$0xf]
        %v5671 = vld [vmem:[%s7 + $0x21c] sm:$0xf]
        %v5672 = vld [vmem:[%s7 + $0x220] sm:$0xf]
        %v5673 = vld [vmem:[%s7 + $0x224] sm:$0xf]
        %v5674 = vld [vmem:[%s7 + $0x228] sm:$0xf]
        %v5675 = vld [vmem:[%s7 + $0x22c] sm:$0xf]
        %v5676 = vld [vmem:[%s7 + $0x230] sm:$0xf]
        %v5677 = vld [vmem:[%s7 + $0x234] sm:$0xf]
        %v5678 = vld [vmem:[%s7 + $0x238] sm:$0xf]
        %v5679 = vld [vmem:[%s7 + $0x23c] sm:$0xf]
        %v5680 = vld [vmem:[%s7 + $0x240] sm:$0xf]
        %v5681 = vld [vmem:[%s7 + $0x244] sm:$0xf]
        %v5682 = vld [vmem:[%s7 + $0x248] sm:$0xf]
        %v5683 = vld [vmem:[%s7 + $0x24c] sm:$0xf]
        %v5684 = vld [vmem:[%s7 + $0x250] sm:$0xf]
        %v5685 = vld [vmem:[%s7 + $0x254] sm:$0xf]
        %v5686 = vld [vmem:[%s7 + $0x258] sm:$0xf]
        %v5687 = vld [vmem:[%s7 + $0x25c] sm:$0xf]
        %v5688 = vld [vmem:[%s7 + $0x260] sm:$0xf]
        %v5689 = vld [vmem:[%s7 + $0x264] sm:$0xf]
        %v5690 = vld [vmem:[%s7 + $0x268] sm:$0xf]
        %v5691 = vld [vmem:[%s7 + $0x26c] sm:$0xf]
        %v5692 = vld [vmem:[%s7 + $0x270] sm:$0xf]
        %v5693 = vld [vmem:[%s7 + $0x274] sm:$0xf]
        %v5694 = vld [vmem:[%s7 + $0x278] sm:$0xf]
        %v5695 = vld [vmem:[%s7 + $0x27c] sm:$0xf]
        %v5696 = vld [vmem:[%s8] sm:$0x1]
        %v5698 = vlaneseq
        %v5699 = vshrl.u32 %v5698, 7
        %v5700 = vsub.s32 0, %v5699
        %v5701 = vrot.slane %v5696, %v5700
        %v5863 = vunpack.c.l.b16 %v5536
        %v5864 = vunpack.c.l.b16 %v5537
        %v5865 = vunpack.c.l.b16 %v5538
        %v5866 = vunpack.c.l.b16 %v5539
        %v5867 = vunpack.c.l.b16 %v5540
        %v5868 = vunpack.c.l.b16 %v5541
        %v5869 = vunpack.c.l.b16 %v5542
        %v5870 = vunpack.c.l.b16 %v5543
        %v5871 = vunpack.c.l.b16 %v5544
        %v5872 = vunpack.c.l.b16 %v5545
        %v5873 = vunpack.c.l.b16 %v5546
        %v5874 = vunpack.c.l.b16 %v5547
        %v5875 = vunpack.c.l.b16 %v5548
        %v5876 = vunpack.c.l.b16 %v5549
        %v5877 = vunpack.c.l.b16 %v5550
        %v5878 = vunpack.c.l.b16 %v5551
        %v5879 = vunpack.c.l.b16 %v5552
        %v5880 = vunpack.c.l.b16 %v5553
        %v5881 = vunpack.c.l.b16 %v5554
        %v5882 = vunpack.c.l.b16 %v5555
        %v5883 = vunpack.c.l.b16 %v5556
        %v5884 = vunpack.c.l.b16 %v5557
        %v5885 = vunpack.c.l.b16 %v5558
        %v5886 = vunpack.c.l.b16 %v5559
        %v5887 = vunpack.c.l.b16 %v5560
        %v5888 = vunpack.c.l.b16 %v5561
        %v5889 = vunpack.c.l.b16 %v5562
        %v5890 = vunpack.c.l.b16 %v5563
        %v5891 = vunpack.c.l.b16 %v5564
        %v5892 = vunpack.c.l.b16 %v5565
        %v5893 = vunpack.c.l.b16 %v5566
        %v5894 = vunpack.c.l.b16 %v5567
        %v5895 = vunpack.c.l.b16 %v5568
        %v5896 = vunpack.c.l.b16 %v5569
        %v5897 = vunpack.c.l.b16 %v5570
        %v5898 = vunpack.c.l.b16 %v5571
        %v5899 = vunpack.c.l.b16 %v5572
        %v5900 = vunpack.c.l.b16 %v5573
        %v5901 = vunpack.c.l.b16 %v5574
        %v5902 = vunpack.c.l.b16 %v5575
        %v5903 = vunpack.c.l.b16 %v5576
        %v5904 = vunpack.c.l.b16 %v5577
        %v5905 = vunpack.c.l.b16 %v5578
        %v5906 = vunpack.c.l.b16 %v5579
        %v5907 = vunpack.c.l.b16 %v5580
        %v5908 = vunpack.c.l.b16 %v5581
        %v5909 = vunpack.c.l.b16 %v5582
        %v5910 = vunpack.c.l.b16 %v5583
        %v5911 = vunpack.c.l.b16 %v5584
        %v5912 = vunpack.c.l.b16 %v5585
        %v5913 = vunpack.c.l.b16 %v5586
        %v5914 = vunpack.c.l.b16 %v5587
        %v5915 = vunpack.c.l.b16 %v5588
        %v5916 = vunpack.c.l.b16 %v5589
        %v5917 = vunpack.c.l.b16 %v5590
        %v5918 = vunpack.c.l.b16 %v5591
        %v5919 = vunpack.c.l.b16 %v5592
        %v5920 = vunpack.c.l.b16 %v5593
        %v5921 = vunpack.c.l.b16 %v5594
        %v5922 = vunpack.c.l.b16 %v5595
        %v5923 = vunpack.c.l.b16 %v5596
        %v5924 = vunpack.c.l.b16 %v5597
        %v5925 = vunpack.c.l.b16 %v5598
        %v5926 = vunpack.c.l.b16 %v5599
        %v5927 = vunpack.c.l.b16 %v5600
        %v5928 = vunpack.c.l.b16 %v5601
        %v5929 = vunpack.c.l.b16 %v5602
        %v5930 = vunpack.c.l.b16 %v5603
        %v5931 = vunpack.c.l.b16 %v5604
        %v5932 = vunpack.c.l.b16 %v5605
        %v5933 = vunpack.c.l.b16 %v5606
        %v5934 = vunpack.c.l.b16 %v5607
        %v5935 = vunpack.c.l.b16 %v5608
        %v5936 = vunpack.c.l.b16 %v5609
        %v5937 = vunpack.c.l.b16 %v5610
        %v5938 = vunpack.c.l.b16 %v5611
        %v5939 = vunpack.c.l.b16 %v5612
        %v5940 = vunpack.c.l.b16 %v5613
        %v5941 = vunpack.c.l.b16 %v5614
        %v5942 = vunpack.c.l.b16 %v5615
        %v5943 = vunpack.c.l.b16 %v5616
        %v5944 = vunpack.c.l.b16 %v5617
        %v5945 = vunpack.c.l.b16 %v5618
        %v5946 = vunpack.c.l.b16 %v5619
        %v5947 = vunpack.c.l.b16 %v5620
        %v5948 = vunpack.c.l.b16 %v5621
        %v5949 = vunpack.c.l.b16 %v5622
        %v5950 = vunpack.c.l.b16 %v5623
        %v5951 = vunpack.c.l.b16 %v5624
        %v5952 = vunpack.c.l.b16 %v5625
        %v5953 = vunpack.c.l.b16 %v5626
        %v5954 = vunpack.c.l.b16 %v5627
        %v5955 = vunpack.c.l.b16 %v5628
        %v5956 = vunpack.c.l.b16 %v5629
        %v5957 = vunpack.c.l.b16 %v5630
        %v5958 = vunpack.c.l.b16 %v5631
        %v5959 = vunpack.c.l.b16 %v5632
        %v5960 = vunpack.c.l.b16 %v5633
        %v5961 = vunpack.c.l.b16 %v5634
        %v5962 = vunpack.c.l.b16 %v5635
        %v5963 = vunpack.c.l.b16 %v5636
        %v5964 = vunpack.c.l.b16 %v5637
        %v5965 = vunpack.c.l.b16 %v5638
        %v5966 = vunpack.c.l.b16 %v5639
        %v5967 = vunpack.c.l.b16 %v5640
        %v5968 = vunpack.c.l.b16 %v5641
        %v5969 = vunpack.c.l.b16 %v5642
        %v5970 = vunpack.c.l.b16 %v5643
        %v5971 = vunpack.c.l.b16 %v5644
        %v5972 = vunpack.c.l.b16 %v5645
        %v5973 = vunpack.c.l.b16 %v5646
        %v5974 = vunpack.c.l.b16 %v5647
        %v5975 = vunpack.c.l.b16 %v5648
        %v5976 = vunpack.c.l.b16 %v5649
        %v5977 = vunpack.c.l.b16 %v5650
        %v5978 = vunpack.c.l.b16 %v5651
        %v5979 = vunpack.c.l.b16 %v5652
        %v5980 = vunpack.c.l.b16 %v5653
        %v5981 = vunpack.c.l.b16 %v5654
        %v5982 = vunpack.c.l.b16 %v5655
        %v5983 = vunpack.c.l.b16 %v5656
        %v5984 = vunpack.c.l.b16 %v5657
        %v5985 = vunpack.c.l.b16 %v5658
        %v5986 = vunpack.c.l.b16 %v5659
        %v5987 = vunpack.c.l.b16 %v5660
        %v5988 = vunpack.c.l.b16 %v5661
        %v5989 = vunpack.c.l.b16 %v5662
        %v5990 = vunpack.c.l.b16 %v5663
        %v5991 = vunpack.c.l.b16 %v5664
        %v5992 = vunpack.c.l.b16 %v5665
        %v5993 = vunpack.c.l.b16 %v5666
        %v5994 = vunpack.c.l.b16 %v5667
        %v5995 = vunpack.c.l.b16 %v5668
        %v5996 = vunpack.c.l.b16 %v5669
        %v5997 = vunpack.c.l.b16 %v5670
        %v5998 = vunpack.c.l.b16 %v5671
        %v5999 = vunpack.c.l.b16 %v5672
        %v6000 = vunpack.c.l.b16 %v5673
        %v6001 = vunpack.c.l.b16 %v5674
        %v6002 = vunpack.c.l.b16 %v5675
        %v6003 = vunpack.c.l.b16 %v5676
        %v6004 = vunpack.c.l.b16 %v5677
        %v6005 = vunpack.c.l.b16 %v5678
        %v6006 = vunpack.c.l.b16 %v5679
        %v6007 = vunpack.c.l.b16 %v5680
        %v6008 = vunpack.c.l.b16 %v5681
        %v6009 = vunpack.c.l.b16 %v5682
        %v6010 = vunpack.c.l.b16 %v5683
        %v6011 = vunpack.c.l.b16 %v5684
        %v6012 = vunpack.c.l.b16 %v5685
        %v6013 = vunpack.c.l.b16 %v5686
        %v6014 = vunpack.c.l.b16 %v5687
        %v6015 = vunpack.c.l.b16 %v5688
        %v6016 = vunpack.c.l.b16 %v5689
        %v6017 = vunpack.c.l.b16 %v5690
        %v6018 = vunpack.c.l.b16 %v5691
        %v6019 = vunpack.c.l.b16 %v5692
        %v6020 = vunpack.c.l.b16 %v5693
        %v6021 = vunpack.c.l.b16 %v5694
        %v6022 = vunpack.c.l.b16 %v5695
        %v6023 = vpack.c.b16 %v5864, %v5863
        %v6024 = vpack.c.b16 %v5866, %v5865
        %v6025 = vpack.c.b16 %v5868, %v5867
        %v6026 = vpack.c.b16 %v5870, %v5869
        %v6027 = vpack.c.b16 %v5872, %v5871
        %v6028 = vpack.c.b16 %v5874, %v5873
        %v6029 = vpack.c.b16 %v5876, %v5875
        %v6030 = vpack.c.b16 %v5878, %v5877
        %v6031 = vpack.c.b16 %v5880, %v5879
        %v6032 = vpack.c.b16 %v5882, %v5881
        %v6033 = vpack.c.b16 %v5884, %v5883
        %v6034 = vpack.c.b16 %v5886, %v5885
        %v6035 = vpack.c.b16 %v5888, %v5887
        %v6036 = vpack.c.b16 %v5890, %v5889
        %v6037 = vpack.c.b16 %v5892, %v5891
        %v6038 = vpack.c.b16 %v5894, %v5893
        %v6039 = vpack.c.b16 %v5896, %v5895
        %v6040 = vpack.c.b16 %v5898, %v5897
        %v6041 = vpack.c.b16 %v5900, %v5899
        %v6042 = vpack.c.b16 %v5902, %v5901
        %v6043 = vpack.c.b16 %v5904, %v5903
        %v6044 = vpack.c.b16 %v5906, %v5905
        %v6045 = vpack.c.b16 %v5908, %v5907
        %v6046 = vpack.c.b16 %v5910, %v5909
        %v6047 = vpack.c.b16 %v5912, %v5911
        %v6048 = vpack.c.b16 %v5914, %v5913
        %v6049 = vpack.c.b16 %v5916, %v5915
        %v6050 = vpack.c.b16 %v5918, %v5917
        %v6051 = vpack.c.b16 %v5920, %v5919
        %v6052 = vpack.c.b16 %v5922, %v5921
        %v6053 = vpack.c.b16 %v5924, %v5923
        %v6054 = vpack.c.b16 %v5926, %v5925
        %v6055 = vpack.c.b16 %v5928, %v5927
        %v6056 = vpack.c.b16 %v5930, %v5929
        %v6057 = vpack.c.b16 %v5932, %v5931
        %v6058 = vpack.c.b16 %v5934, %v5933
        %v6059 = vpack.c.b16 %v5936, %v5935
        %v6060 = vpack.c.b16 %v5938, %v5937
        %v6061 = vpack.c.b16 %v5940, %v5939
        %v6062 = vpack.c.b16 %v5942, %v5941
        %v6063 = vpack.c.b16 %v5944, %v5943
        %v6064 = vpack.c.b16 %v5946, %v5945
        %v6065 = vpack.c.b16 %v5948, %v5947
        %v6066 = vpack.c.b16 %v5950, %v5949
        %v6067 = vpack.c.b16 %v5952, %v5951
        %v6068 = vpack.c.b16 %v5954, %v5953
        %v6069 = vpack.c.b16 %v5956, %v5955
        %v6070 = vpack.c.b16 %v5958, %v5957
        %v6071 = vpack.c.b16 %v5960, %v5959
        %v6072 = vpack.c.b16 %v5962, %v5961
        %v6073 = vpack.c.b16 %v5964, %v5963
        %v6074 = vpack.c.b16 %v5966, %v5965
        %v6075 = vpack.c.b16 %v5968, %v5967
        %v6076 = vpack.c.b16 %v5970, %v5969
        %v6077 = vpack.c.b16 %v5972, %v5971
        %v6078 = vpack.c.b16 %v5974, %v5973
        %v6079 = vpack.c.b16 %v5976, %v5975
        %v6080 = vpack.c.b16 %v5978, %v5977
        %v6081 = vpack.c.b16 %v5980, %v5979
        %v6082 = vpack.c.b16 %v5982, %v5981
        %v6083 = vpack.c.b16 %v5984, %v5983
        %v6084 = vpack.c.b16 %v5986, %v5985
        %v6085 = vpack.c.b16 %v5988, %v5987
        %v6086 = vpack.c.b16 %v5990, %v5989
        %v6087 = vpack.c.b16 %v5992, %v5991
        %v6088 = vpack.c.b16 %v5994, %v5993
        %v6089 = vpack.c.b16 %v5996, %v5995
        %v6090 = vpack.c.b16 %v5998, %v5997
        %v6091 = vpack.c.b16 %v6000, %v5999
        %v6092 = vpack.c.b16 %v6002, %v6001
        %v6093 = vpack.c.b16 %v6004, %v6003
        %v6094 = vpack.c.b16 %v6006, %v6005
        %v6095 = vpack.c.b16 %v6008, %v6007
        %v6096 = vpack.c.b16 %v6010, %v6009
        %v6097 = vpack.c.b16 %v6012, %v6011
        %v6098 = vpack.c.b16 %v6014, %v6013
        %v6099 = vpack.c.b16 %v6016, %v6015
        %v6100 = vpack.c.b16 %v6018, %v6017
        %v6101 = vpack.c.b16 %v6020, %v6019
        %v6102 = vpack.c.b16 %v6022, %v6021
        %6183 = vmatprep.subr.bf16.mxu0 0
        %6184 = vmatpush1.bf16.msra.mxu0 %v6023
        %6185 = vmatprep.subr.bf16.mxu0 0
        %6186 = vmatpush1.bf16.msra.mxu0 %v6024
        %6187 = vmatprep.subr.bf16.mxu0 0
        %6188 = vmatpush1.bf16.msra.mxu0 %v6025
        %6189 = vmatprep.subr.bf16.mxu0 0
        %6190 = vmatpush1.bf16.msra.mxu0 %v6026
        %6191 = vmatprep.subr.bf16.mxu0 0
        %6192 = vmatpush1.bf16.msra.mxu0 %v6027
        %6193 = vmatprep.subr.bf16.mxu0 0
        %6194 = vmatpush1.bf16.msra.mxu0 %v6028
        %6195 = vmatprep.subr.bf16.mxu0 0
        %6196 = vmatpush1.bf16.msra.mxu0 %v6029
        %6197 = vmatprep.subr.bf16.mxu0 0
        %6198 = vmatpush1.bf16.msra.mxu0 %v6030
        %6199 = vmatprep.subr.bf16.mxu0 0
        %6200 = vmatpush1.bf16.msra.mxu0 %v6031
        %6201 = vmatprep.subr.bf16.mxu0 0
        %6202 = vmatpush1.bf16.msra.mxu0 %v6032
        %6203 = vmatprep.subr.bf16.mxu0 0
        %6204 = vmatpush1.bf16.msra.mxu0 %v6033
        %6205 = vmatprep.subr.bf16.mxu0 0
        %6206 = vmatpush1.bf16.msra.mxu0 %v6034
        %6207 = vmatprep.subr.bf16.mxu0 0
        %6208 = vmatpush1.bf16.msra.mxu0 %v6035
        %6209 = vmatprep.subr.bf16.mxu0 0
        %6210 = vmatpush1.bf16.msra.mxu0 %v6036
        %6211 = vmatprep.subr.bf16.mxu0 0
        %6212 = vmatpush1.bf16.msra.mxu0 %v6037
        %6213 = vmatprep.subr.bf16.mxu0 0
        %6214 = vmatpush1.bf16.msra.mxu0 %v6038
        %6215 = vmatprep.mubr.bf16.mxu0 %v5527
        %6216 = vmatmul.mubr.bf16.gmra.mrb[0].mxu0 %v5526
        %v6217 = vpop.f32.mrb[0].mxu0
        %v6218 = vadd.f32 %v5701, %v6217
        %v6219 = vpop.f32.mrb[0].mxu0
        %v6220 = vpop.f32.mrb[0].mxu0
        %v6221 = vpop.f32.mrb[0].mxu0
        %6222 = vdwg.mxu0
        %6223 = vmatprep.subr.bf16.mxu0 0
        %6224 = vmatpush1.bf16.msra.mxu0 %v6039
        %6225 = vmatprep.subr.bf16.mxu0 0
        %6226 = vmatpush1.bf16.msra.mxu0 %v6040
        %6227 = vmatprep.subr.bf16.mxu0 0
        %6228 = vmatpush1.bf16.msra.mxu0 %v6041
        %6229 = vmatprep.subr.bf16.mxu0 0
        %6230 = vmatpush1.bf16.msra.mxu0 %v6042
        %6231 = vmatprep.subr.bf16.mxu0 0
        %6232 = vmatpush1.bf16.msra.mxu0 %v6043
        %6233 = vmatprep.subr.bf16.mxu0 0
        %6234 = vmatpush1.bf16.msra.mxu0 %v6044
        %6235 = vmatprep.subr.bf16.mxu0 0
        %6236 = vmatpush1.bf16.msra.mxu0 %v6045
        %6237 = vmatprep.subr.bf16.mxu0 0
        %6238 = vmatpush1.bf16.msra.mxu0 %v6046
        %6239 = vmatprep.subr.bf16.mxu0 0
        %6240 = vmatpush1.bf16.msra.mxu0 %v6047
        %6241 = vmatprep.subr.bf16.mxu0 0
        %6242 = vmatpush1.bf16.msra.mxu0 %v6048
        %6243 = vmatprep.subr.bf16.mxu0 0
        %6244 = vmatpush1.bf16.msra.mxu0 %v6049
        %6245 = vmatprep.subr.bf16.mxu0 0
        %6246 = vmatpush1.bf16.msra.mxu0 %v6050
        %6247 = vmatprep.subr.bf16.mxu0 0
        %6248 = vmatpush1.bf16.msra.mxu0 %v6051
        %6249 = vmatprep.subr.bf16.mxu0 0
        %6250 = vmatpush1.bf16.msra.mxu0 %v6052
        %6251 = vmatprep.subr.bf16.mxu0 0
        %6252 = vmatpush1.bf16.msra.mxu0 %v6053
        %6253 = vmatprep.subr.bf16.mxu0 0
        %6254 = vmatpush1.bf16.msra.mxu0 %v6054
        %6255 = vmatprep.mubr.bf16.mxu0 %v5529
        %6256 = vmatmul.mubr.bf16.gmra.mrb[0].mxu0 %v5528
        %v6257 = vpop.f32.mrb[0].mxu0
        %v6258 = vadd.f32 %v6218, %v6257
        %v6259 = vpop.f32.mrb[0].mxu0
        %v6260 = vpop.f32.mrb[0].mxu0
        %v6261 = vpop.f32.mrb[0].mxu0
        %6262 = vdwg.mxu0
        %6263 = vmatprep.subr.bf16.mxu0 0
        %6264 = vmatpush1.bf16.msra.mxu0 %v6055
        %6265 = vmatprep.subr.bf16.mxu0 0
        %6266 = vmatpush1.bf16.msra.mxu0 %v6056
        %6267 = vmatprep.subr.bf16.mxu0 0
        %6268 = vmatpush1.bf16.msra.mxu0 %v6057
        %6269 = vmatprep.subr.bf16.mxu0 0
        %6270 = vmatpush1.bf16.msra.mxu0 %v6058
        %6271 = vmatprep.subr.bf16.mxu0 0
        %6272 = vmatpush1.bf16.msra.mxu0 %v6059
        %6273 = vmatprep.subr.bf16.mxu0 0
        %6274 = vmatpush1.bf16.msra.mxu0 %v6060
        %6275 = vmatprep.subr.bf16.mxu0 0
        %6276 = vmatpush1.bf16.msra.mxu0 %v6061
        %6277 = vmatprep.subr.bf16.mxu0 0
        %6278 = vmatpush1.bf16.msra.mxu0 %v6062
        %6279 = vmatprep.subr.bf16.mxu0 0
        %6280 = vmatpush1.bf16.msra.mxu0 %v6063
        %6281 = vmatprep.subr.bf16.mxu0 0
        %6282 = vmatpush1.bf16.msra.mxu0 %v6064
        %6283 = vmatprep.subr.bf16.mxu0 0
        %6284 = vmatpush1.bf16.msra.mxu0 %v6065
        %6285 = vmatprep.subr.bf16.mxu0 0
        %6286 = vmatpush1.bf16.msra.mxu0 %v6066
        %6287 = vmatprep.subr.bf16.mxu0 0
        %6288 = vmatpush1.bf16.msra.mxu0 %v6067
        %6289 = vmatprep.subr.bf16.mxu0 0
        %6290 = vmatpush1.bf16.msra.mxu0 %v6068
        %6291 = vmatprep.subr.bf16.mxu0 0
        %6292 = vmatpush1.bf16.msra.mxu0 %v6069
        %6293 = vmatprep.subr.bf16.mxu0 0
        %6294 = vmatpush1.bf16.msra.mxu0 %v6070
        %6295 = vmatprep.mubr.bf16.mxu0 %v5531
        %6296 = vmatmul.mubr.bf16.gmra.mrb[0].mxu0 %v5530
        %v6297 = vpop.f32.mrb[0].mxu0
        %v6298 = vadd.f32 %v6258, %v6297
        %v6299 = vpop.f32.mrb[0].mxu0
        %v6300 = vpop.f32.mrb[0].mxu0
        %v6301 = vpop.f32.mrb[0].mxu0
        %6302 = vdwg.mxu0
        %6303 = vmatprep.subr.bf16.mxu0 0
        %6304 = vmatpush1.bf16.msra.mxu0 %v6071
        %6305 = vmatprep.subr.bf16.mxu0 0
        %6306 = vmatpush1.bf16.msra.mxu0 %v6072
        %6307 = vmatprep.subr.bf16.mxu0 0
        %6308 = vmatpush1.bf16.msra.mxu0 %v6073
        %6309 = vmatprep.subr.bf16.mxu0 0
        %6310 = vmatpush1.bf16.msra.mxu0 %v6074
        %6311 = vmatprep.subr.bf16.mxu0 0
        %6312 = vmatpush1.bf16.msra.mxu0 %v6075
        %6313 = vmatprep.subr.bf16.mxu0 0
        %6314 = vmatpush1.bf16.msra.mxu0 %v6076
        %6315 = vmatprep.subr.bf16.mxu0 0
        %6316 = vmatpush1.bf16.msra.mxu0 %v6077
        %6317 = vmatprep.subr.bf16.mxu0 0
        %6318 = vmatpush1.bf16.msra.mxu0 %v6078
        %6319 = vmatprep.subr.bf16.mxu0 0
        %6320 = vmatpush1.bf16.msra.mxu0 %v6079
        %6321 = vmatprep.subr.bf16.mxu0 0
        %6322 = vmatpush1.bf16.msra.mxu0 %v6080
        %6323 = vmatprep.subr.bf16.mxu0 0
        %6324 = vmatpush1.bf16.msra.mxu0 %v6081
        %6325 = vmatprep.subr.bf16.mxu0 0
        %6326 = vmatpush1.bf16.msra.mxu0 %v6082
        %6327 = vmatprep.subr.bf16.mxu0 0
        %6328 = vmatpush1.bf16.msra.mxu0 %v6083
        %6329 = vmatprep.subr.bf16.mxu0 0
        %6330 = vmatpush1.bf16.msra.mxu0 %v6084
        %6331 = vmatprep.subr.bf16.mxu0 0
        %6332 = vmatpush1.bf16.msra.mxu0 %v6085
        %6333 = vmatprep.subr.bf16.mxu0 0
        %6334 = vmatpush1.bf16.msra.mxu0 %v6086
        %6335 = vmatprep.mubr.bf16.mxu0 %v5533
        %6336 = vmatmul.mubr.bf16.gmra.mrb[0].mxu0 %v5532
        %v6337 = vpop.f32.mrb[0].mxu0
        %v6338 = vadd.f32 %v6298, %v6337
        %v6339 = vpop.f32.mrb[0].mxu0
        %v6340 = vpop.f32.mrb[0].mxu0
        %v6341 = vpop.f32.mrb[0].mxu0
        %6342 = vdwg.mxu0
        %6343 = vmatprep.subr.bf16.mxu0 0
        %6344 = vmatpush1.bf16.msra.mxu0 %v6087
        %6345 = vmatprep.subr.bf16.mxu0 0
        %6346 = vmatpush1.bf16.msra.mxu0 %v6088
        %6347 = vmatprep.subr.bf16.mxu0 0
        %6348 = vmatpush1.bf16.msra.mxu0 %v6089
        %6349 = vmatprep.subr.bf16.mxu0 0
        %6350 = vmatpush1.bf16.msra.mxu0 %v6090
        %6351 = vmatprep.subr.bf16.mxu0 0
        %6352 = vmatpush1.bf16.msra.mxu0 %v6091
        %6353 = vmatprep.subr.bf16.mxu0 0
        %6354 = vmatpush1.bf16.msra.mxu0 %v6092
        %6355 = vmatprep.subr.bf16.mxu0 0
        %6356 = vmatpush1.bf16.msra.mxu0 %v6093
        %6357 = vmatprep.subr.bf16.mxu0 0
        %6358 = vmatpush1.bf16.msra.mxu0 %v6094
        %6359 = vmatprep.subr.bf16.mxu0 0
        %6360 = vmatpush1.bf16.msra.mxu0 %v6095
        %6361 = vmatprep.subr.bf16.mxu0 0
        %6362 = vmatpush1.bf16.msra.mxu0 %v6096
        %6363 = vmatprep.subr.bf16.mxu0 0
        %6364 = vmatpush1.bf16.msra.mxu0 %v6097
        %6365 = vmatprep.subr.bf16.mxu0 0
        %6366 = vmatpush1.bf16.msra.mxu0 %v6098
        %6367 = vmatprep.subr.bf16.mxu0 0
        %6368 = vmatpush1.bf16.msra.mxu0 %v6099
        %6369 = vmatprep.subr.bf16.mxu0 0
        %6370 = vmatpush1.bf16.msra.mxu0 %v6100
        %6371 = vmatprep.subr.bf16.mxu0 0
        %6372 = vmatpush1.bf16.msra.mxu0 %v6101
        %6373 = vmatprep.subr.bf16.mxu0 0
        %6374 = vmatpush1.bf16.msra.mxu0 %v6102
        %6375 = vmatprep.mubr.bf16.mxu0 %v5535
        %6376 = vmatmul.mubr.bf16.gmra.mrb[0].mxu0 %v5534
        %v6377 = vpop.f32.mrb[0].mxu0
        %v6378 = vadd.f32 %v6338, %v6377
        %v6379 = vpop.f32.mrb[0].mxu0
        %v6380 = vpop.f32.mrb[0].mxu0
        %v6381 = vpop.f32.mrb[0].mxu0
        %6382 = vdwg.mxu0
        %6383 = vst [vmem:[%s358] sm:$0xff] %v6378
      $region64: #{catornot_forward.1} parent=55 // pred_fallthru
        _
      %p6384 = scmp.lt.s32.totalorder %s24, 1
      %s6385 = scalar_select %p6384, %s24, 1
      %s6386 = smul.addr %s6385, 8
      %s6387 = scalar_lea.vmem %s9, %s6386
      // Predicated region
      $region65: #{catornot_forward.1} parent=55 // pred_check
        %p6388 = pneg %p246
      $region66: #{catornot_forward.1} parent=55 // pred_check_branch
        %6390 = sbr.rel (%p6388) target = $region68
      $region67: #{catornot_forward.1} parent=55 // pred_region
        _
      $region68: #{catornot_forward.1} parent=55 // pred_fallthru
        _
    $region56: #{catornot_forward.1} parent=5 // pred_fallthru
      _
    %p6391 = scmp.le.s32.totalorder 2, %s15
    // Predicated region
    $region69: #{catornot_forward.1} parent=5 // pred_check
      %p6392 = pneg %p6391
    $region70: #{catornot_forward.1} parent=5 // pred_check_branch
      %6394 = sbr.rel (%p6392) target = $region72
    $region71: #{catornot_forward.1} parent=5 // pred_region
      %s6395 = ssub.s32 %s15, 2
      // Predicated region
      $region73: #{catornot_forward.1} parent=71 // pred_check
        %p6396 = pneg %p252
      $region74: #{catornot_forward.1} parent=71 // pred_check_branch
        %6398 = sbr.rel (%p6396) target = $region76
      $region75: #{catornot_forward.1} parent=71 // pred_region
        %p6399 = scmp.lt.s32.totalorder %s26, 1
        %s6400 = scalar_select %p6399, %s26, 1
        %s6401 = smul.addr %s6400, 8
        %s6402 = scalar_lea.vmem %s9, %s6401
      $region76: #{catornot_forward.1} parent=71 // pred_fallthru
        _
    $region72: #{catornot_forward.1} parent=5 // pred_fallthru
      _
  $region6: #{catornot_forward.1} parent=0 // loop_footer
    %s19 = sadd.s32 1, %s15
  $region7: #{catornot_forward.1} parent=0 // loop_footer_branch
    %14 = sbr.rel target = $region3
  $region8: #{catornot_forward.1} parent=0 // loop_exit
    _

</llo_original>
